<compile_context>
chip_gen: v7x
topology: tpu7x:2x2x1
jax: 0.10.0
libtpu: 0.0.40
codegen_flags: <defaults>
</compile_context>

<pallas_src>
import functools
import math

import jax
import jax.numpy as jnp
from jax import lax
from jax.experimental import pallas as pl
from jax.experimental.pallas import tpu as pltpu

_TRAVERSALS = ('x', 'x_shift', 'y', 'y_shift')


def _gelu_tanh(x):
    # TODO(synk): PyTorch F.gelu defaults to the exact erf form; the tanh
    # approximation is used here (and in the in-script reference) to stay on
    # ops with guaranteed Mosaic lowering (tanh is a single EUP op).
    c0 = math.sqrt(2.0 / math.pi)
    return 0.5 * x * (1.0 + jnp.tanh(c0 * (x + 0.044715 * x * x * x)))


def _layer_norm(x, gamma, beta, eps):
    mu = jnp.mean(x, axis=-1, keepdims=True)
    xc = x - mu
    var = jnp.mean(xc * xc, axis=-1, keepdims=True)
    return xc * lax.rsqrt(var + eps) * gamma + beta


def _basic_layer_kernel(src_ref, pe_ref,
                        wqk_ref, bqk_ref, wv_ref, bv_ref,
                        wo_ref, bo_ref,
                        g1_ref, be1_ref,
                        w1_ref, bf1_ref, w2_ref, bf2_ref,
                        g2_ref, be2_ref,
                        out_ref, *, num_heads, scale, eps, activation):
    gt, gs, c = src_ref.shape          # (groups_per_tile, group_size, channels)
    m = gt * gs
    hd = c // num_heads

    x3 = src_ref[...].astype(jnp.float32)
    pe3 = pe_ref[...].astype(jnp.float32)

    x2 = x3.reshape(m, c)              # v  = x
    qk2 = (x3 + pe3).reshape(m, c)     # q = k = x + pe

    def mm(a, b):
        return jnp.dot(a, b, preferred_element_type=jnp.float32)

    # --- fused Q/K projection (one (C, 2C) matmul), separate V projection ---
    qk = mm(qk2, wqk_ref[...]) + bqk_ref[...]     # (m, 2c) = [q | k]
    v = mm(x2, wv_ref[...]) + bv_ref[...]         # (m, c)

    # --- per-group multi-head attention (static unroll over heads) ---
    head_outs = []
    for h in range(num_heads):
        lo = h * hd
        qh = qk[:, lo:lo + hd].reshape(gt, gs, hd)
        kh = qk[:, c + lo:c + lo + hd].reshape(gt, gs, hd)
        vh = v[:, lo:lo + hd].reshape(gt, gs, hd)
        s = jnp.einsum('gqd,gkd->gqk', qh, kh,
                       preferred_element_type=jnp.float32) * scale
        s = s - jnp.max(s, axis=-1, keepdims=True)
        p = jnp.exp(s)
        p = p / jnp.sum(p, axis=-1, keepdims=True)
        oh = jnp.einsum('gqk,gkd->gqd', p, vh,
                        preferred_element_type=jnp.float32)
        head_outs.append(oh.reshape(m, hd))
    attn = head_outs[0] if num_heads == 1 else jnp.concatenate(head_outs, axis=-1)

    attn = mm(attn, wo_ref[...]) + bo_ref[...]

    # --- residual + LayerNorm 1 ---
    h1 = _layer_norm(x2 + attn, g1_ref[...], be1_ref[...], eps)

    # --- MLP: fc1 -> act -> fc2 ---
    f = mm(h1, w1_ref[...]) + bf1_ref[...]
    if activation == 'relu':
        f = jnp.maximum(f, 0.0)
    elif activation == 'gelu':
        f = _gelu_tanh(f)
    else:
        # TODO(synk): 'glu' is shape-inconsistent in the original BasicLayer
        # (fc2 expects 2*C inputs); not supported here.
        raise NotImplementedError(f"activation {activation!r} not supported")
    f = mm(f, w2_ref[...]) + bf2_ref[...]

    # --- residual + LayerNorm 2 ---
    h2 = _layer_norm(h1 + f, g2_ref[...], be2_ref[...], eps)

    out_ref[...] = h2.reshape(gt, gs, c).astype(out_ref.dtype)


def basic_layer_pallas(src, pe, params, *, num_heads, group_size, eps,
                       activation, groups_per_tile=8):
    """One BasicLayer forward.  src/pe: [N, C] with N % group_size == 0."""
    n, c = src.shape
    assert n % group_size == 0, "flat2win must pad N to a multiple of group_size"
    ng = n // group_size
    hd = c // num_heads
    assert hd * num_heads == c
    scale = float(hd) ** -0.5

    # Large-tile grid over groups; pad the group axis to a tile multiple.
    gt = max(1, min(groups_per_tile, ng))
    ng_pad = ((ng + gt - 1) // gt) * gt

    src3 = src.reshape(ng, group_size, c)
    pe3 = pe.reshape(ng, group_size, c)
    if ng_pad != ng:
        z = jnp.zeros((ng_pad - ng, group_size, c), src.dtype)
        src3 = jnp.concatenate([src3, z], axis=0)
        pe3 = jnp.concatenate([pe3, z.astype(pe.dtype)], axis=0)

    # Layout plumbing at trace time (outside the kernel): transpose weights so
    # the kernel is pure (tokens, C) @ (C, D); reshape 1-D params to (1, D);
    # concatenate Wq|Wk so q and k come out of a single matmul.
    f32 = jnp.float32
    wq, wk, wv = jnp.split(params['in_proj_weight'].astype(f32), 3, axis=0)
    bq, bk, bv = jnp.split(params['in_proj_bias'].astype(f32), 3)
    weights = [
        jnp.concatenate([wq.T, wk.T], axis=1),                        # (c, 2c)
        jnp.concatenate([bq, bk]).reshape(1, 2 * c),
        wv.T, bv.reshape(1, c),
        params['out_proj_weight'].astype(f32).T,
        params['out_proj_bias'].astype(f32).reshape(1, c),
        params['norm1_weight'].astype(f32).reshape(1, c),
        params['norm1_bias'].astype(f32).reshape(1, c),
        params['fc1_weight'].astype(f32).T,
        params['fc1_bias'].astype(f32).reshape(1, 2 * c),
        params['fc2_weight'].astype(f32).T,
        params['fc2_bias'].astype(f32).reshape(1, c),
        params['norm2_weight'].astype(f32).reshape(1, c),
        params['norm2_bias'].astype(f32).reshape(1, c),
    ]

    kernel = functools.partial(_basic_layer_kernel, num_heads=num_heads,
                               scale=scale, eps=eps, activation=activation)

    data_spec = pl.BlockSpec((gt, group_size, c), lambda i: (i, 0, 0))
    # Constant index_map -> weights stay VMEM-resident across grid steps.
    w_specs = [pl.BlockSpec(w.shape, lambda i: (0, 0)) for w in weights]

    out3 = pl.pallas_call(
        kernel,
        out_shape=jax.ShapeDtypeStruct((ng_pad, group_size, c), src.dtype),
        grid_spec=pltpu.PrefetchScalarGridSpec(
            num_scalar_prefetch=0,
            grid=(ng_pad // gt,),
            in_specs=[data_spec, data_spec] + w_specs,
            out_specs=data_spec),
        compiler_params=pltpu.CompilerParams(
            dimension_semantics=("parallel",)),
    )(src3, pe3, *weights)

    return out3[:ng].reshape(ng * group_size, c)


def basic_block_pallas(x, pe, mappings, layer_params, *, num_heads, group_size,
                       eps=1e-5, activation='gelu', groups_per_tile=8):
    """BasicBlock.forward: 4 traversals, gather -> BasicLayer -> scatter."""
    for k, name in enumerate(_TRAVERSALS):
        idx = mappings[name]
        f2w = mappings['flat2win']
        w2f = mappings['win2flat']
        src = jnp.take(jnp.take(x, idx, axis=0), f2w, axis=0)
        peg = jnp.take(jnp.take(pe, idx, axis=0), f2w, axis=0)
        out = basic_layer_pallas(src, peg, layer_params[k],
                                 num_heads=num_heads, group_size=group_size,
                                 eps=eps, activation=activation,
                                 groups_per_tile=groups_per_tile)
        x = x.at[idx].set(jnp.take(out, w2f, axis=0))
    return x


# ----------------------------- pure-JAX reference ---------------------------

def _layer_norm_ref(x, gamma, beta, eps):
    mu = jnp.mean(x, axis=-1, keepdims=True)
    var = jnp.mean((x - mu) ** 2, axis=-1, keepdims=True)
    return (x - mu) / jnp.sqrt(var + eps) * gamma + beta


def basic_layer_ref(src, pe, p, *, num_heads, group_size, eps, activation):
    n, c = src.shape
    ng = n // group_size
    hd = c // num_heads
    scale = float(hd) ** -0.5
    hp = lax.Precision.HIGHEST

    x = src.reshape(ng, group_size, c).astype(jnp.float32)
    peg = pe.reshape(ng, group_size, c).astype(jnp.float32)
    qk_in = x + peg

    wq, wk, wv = jnp.split(p['in_proj_weight'].astype(jnp.float32), 3, axis=0)
    bq, bk, bv = jnp.split(p['in_proj_bias'].astype(jnp.float32), 3)
    q = jnp.einsum('gtc,dc->gtd', qk_in, wq, precision=hp) + bq
    k = jnp.einsum('gtc,dc->gtd', qk_in, wk, precision=hp) + bk
    v = jnp.einsum('gtc,dc->gtd', x, wv, precision=hp) + bv

    q = q.reshape(ng, group_size, num_heads, hd)
    k = k.reshape(ng, group_size, num_heads, hd)
    v = v.reshape(ng, group_size, num_heads, hd)
    s = jnp.einsum('gqhd,gkhd->ghqk', q, k, precision=hp) * scale
    a = jax.nn.softmax(s, axis=-1)
    o = jnp.einsum('ghqk,gkhd->gqhd', a, v, precision=hp).reshape(ng, group_size, c)
    o = jnp.einsum('gtc,dc->gtd', o, p['out_proj_weight'].astype(jnp.float32),
                   precision=hp) + p['out_proj_bias']

    h1 = _layer_norm_ref(x + o, p['norm1_weight'], p['norm1_bias'], eps)

    f = jnp.einsum('gtc,dc->gtd', h1, p['fc1_weight'].astype(jnp.float32),
                   precision=hp) + p['fc1_bias']
    if activation == 'relu':
        f = jnp.maximum(f, 0.0)
    elif activation == 'gelu':
        f = _gelu_tanh(f)
    else:
        raise NotImplementedError(activation)
    f = jnp.einsum('gtc,dc->gtd', f, p['fc2_weight'].astype(jnp.float32),
                   precision=hp) + p['fc2_bias']

    h2 = _layer_norm_ref(h1 + f, p['norm2_weight'], p['norm2_bias'], eps)
    return h2.reshape(n, c).astype(src.dtype)


def basic_block_ref(x, pe, mappings, layer_params, *, num_heads, group_size,
                    eps=1e-5, activation='gelu'):
    for k, name in enumerate(_TRAVERSALS):
        idx = mappings[name]
        f2w = mappings['flat2win']
        w2f = mappings['win2flat']
        out = basic_layer_ref(x[idx][f2w], pe[idx][f2w], layer_params[k],
                              num_heads=num_heads, group_size=group_size,
                              eps=eps, activation=activation)
        x = x.at[idx].set(out[w2f])
    return x


def init_layer_params(key, c):
    ks = jax.random.split(key, 12)
    b_in = 1.0 / math.sqrt(c)
    b_hid = 1.0 / math.sqrt(2 * c)

    def u(k, shape, lo, hi):
        return jax.random.uniform(k, shape, jnp.float32, lo, hi)

    return dict(
        in_proj_weight=u(ks[0], (3 * c, c), -b_in, b_in),
        in_proj_bias=u(ks[1], (3 * c,), -b_in, b_in),
        out_proj_weight=u(ks[2], (c, c), -b_in, b_in),
        out_proj_bias=u(ks[3], (c,), -b_in, b_in),
        norm1_weight=u(ks[4], (c,), 0.5, 1.5),
        norm1_bias=u(ks[5], (c,), -0.5, 0.5),
        norm2_weight=u(ks[6], (c,), 0.5, 1.5),
        norm2_bias=u(ks[7], (c,), -0.5, 0.5),
        fc1_weight=u(ks[8], (2 * c, c), -b_in, b_in),
        fc1_bias=u(ks[9], (2 * c,), -b_in, b_in),
        fc2_weight=u(ks[10], (c, 2 * c), -b_hid, b_hid),
        fc2_bias=u(ks[11], (c,), -b_hid, b_hid),
    )


if __name__ == "__main__":
    # Small deterministic config implied by the forward:
    #   N voxel tokens of C channels, 4 traversals, groups of `group_size`
    #   tokens, `num_heads` attention heads, gelu MLP.
    N, C = 512, 32
    num_heads = 2
    group_size = 16
    activation = 'gelu'
    eps = 1e-5

    key = jax.random.PRNGKey(0)
    k_x, k_pe, k_map, k_par = jax.random.split(key, 4)

    x = jax.random.normal(k_x, (N, C), jnp.float32)
    pe = 0.1 * jax.random.normal(k_pe, (N, C), jnp.float32)

    mk = jax.random.split(k_map, 5)
    flat2win = jax.random.permutation(mk[4], N)
    mappings = {
        'x': jax.random.permutation(mk[0], N),
        'x_shift': jax.random.permutation(mk[1], N),
        'y': jax.random.permutation(mk[2], N),
        'y_shift': jax.random.permutation(mk[3], N),
        'flat2win': flat2win,
        'win2flat': jnp.argsort(flat2win),   # inverse permutation (no padding case)
    }

    layer_params = [init_layer_params(k, C) for k in jax.random.split(k_par, 4)]

    run = jax.jit(functools.partial(
        basic_block_pallas, num_heads=num_heads, group_size=group_size,
        eps=eps, activation=activation,
        groups_per_tile=8))   # 4 grid steps of 8x16=128 tokens each

    out = jax.block_until_ready(run(x, pe, mappings, layer_params))

    ref = basic_block_ref(x, pe, mappings, layer_params,
                          num_heads=num_heads, group_size=group_size,
                          eps=eps, activation=activation)

    assert out.shape == (N, C)
    # Tolerance covers possible MXU f32 pass-precision differences vs the
    # Precision.HIGHEST pure-JAX reference; real bugs show up as O(1) errors.
    err = float(jnp.max(jnp.abs(out - ref)))
    assert err < 2e-2, f"max abs err {err}"
    print("KERNEL_OK")
</pallas_src>

<mosaic_0001>
module attributes {stable_mosaic.version = 11 : i64} {
  func.func @_basic_layer_kernel(%arg0: i32, %arg1: memref<8x16x32xf32, #tpu.memory_space<vmem>>, %arg2: memref<8x16x32xf32, #tpu.memory_space<vmem>>, %arg3: memref<32x64xf32, #tpu.memory_space<vmem>>, %arg4: memref<1x64xf32, #tpu.memory_space<vmem>>, %arg5: memref<32x32xf32, #tpu.memory_space<vmem>>, %arg6: memref<1x32xf32, #tpu.memory_space<vmem>>, %arg7: memref<32x32xf32, #tpu.memory_space<vmem>>, %arg8: memref<1x32xf32, #tpu.memory_space<vmem>>, %arg9: memref<1x32xf32, #tpu.memory_space<vmem>>, %arg10: memref<1x32xf32, #tpu.memory_space<vmem>>, %arg11: memref<32x64xf32, #tpu.memory_space<vmem>>, %arg12: memref<1x64xf32, #tpu.memory_space<vmem>>, %arg13: memref<64x32xf32, #tpu.memory_space<vmem>>, %arg14: memref<1x32xf32, #tpu.memory_space<vmem>>, %arg15: memref<1x32xf32, #tpu.memory_space<vmem>>, %arg16: memref<1x32xf32, #tpu.memory_space<vmem>>, %arg17: memref<8x16x32xf32, #tpu.memory_space<vmem>>) attributes {dimension_semantics = [#tpu.dimension_semantics<parallel>], iteration_bounds = array<i64: 4>, scalar_prefetch = 0 : i64, scratch_operands = 0 : i64, tpu.core_type = #tpu.core_type<tc>, window_params = [{transform_indices = @transform_0, window_bounds = array<i64: 8, 16, 32>}, {transform_indices = @transform_1, window_bounds = array<i64: 8, 16, 32>}, {pipeline_mode = #tpu.pipeline_mode<synchronous>, transform_indices = @transform_2, window_bounds = array<i64: 32, 64>}, {pipeline_mode = #tpu.pipeline_mode<synchronous>, transform_indices = @transform_3, window_bounds = array<i64: 1, 64>}, {pipeline_mode = #tpu.pipeline_mode<synchronous>, transform_indices = @transform_4, window_bounds = array<i64: 32, 32>}, {pipeline_mode = #tpu.pipeline_mode<synchronous>, transform_indices = @transform_5, window_bounds = array<i64: 1, 32>}, {pipeline_mode = #tpu.pipeline_mode<synchronous>, transform_indices = @transform_6, window_bounds = array<i64: 32, 32>}, {pipeline_mode = #tpu.pipeline_mode<synchronous>, transform_indices = @transform_7, window_bounds = array<i64: 1, 32>}, {pipeline_mode = #tpu.pipeline_mode<synchronous>, transform_indices = @transform_8, window_bounds = array<i64: 1, 32>}, {pipeline_mode = #tpu.pipeline_mode<synchronous>, transform_indices = @transform_9, window_bounds = array<i64: 1, 32>}, {pipeline_mode = #tpu.pipeline_mode<synchronous>, transform_indices = @transform_10, window_bounds = array<i64: 32, 64>}, {pipeline_mode = #tpu.pipeline_mode<synchronous>, transform_indices = @transform_11, window_bounds = array<i64: 1, 64>}, {pipeline_mode = #tpu.pipeline_mode<synchronous>, transform_indices = @transform_12, window_bounds = array<i64: 64, 32>}, {pipeline_mode = #tpu.pipeline_mode<synchronous>, transform_indices = @transform_13, window_bounds = array<i64: 1, 32>}, {pipeline_mode = #tpu.pipeline_mode<synchronous>, transform_indices = @transform_14, window_bounds = array<i64: 1, 32>}, {pipeline_mode = #tpu.pipeline_mode<synchronous>, transform_indices = @transform_15, window_bounds = array<i64: 1, 32>}, {transform_indices = @transform_16, window_bounds = array<i64: 8, 16, 32>}]} {
    %c0 = arith.constant 0 : index
    %c0_0 = arith.constant 0 : index
    %c0_1 = arith.constant 0 : index
    %0 = vector.load %arg1[%c0, %c0_0, %c0_1] : memref<8x16x32xf32, #tpu.memory_space<vmem>>, vector<8x16x32xf32>
    %c0_2 = arith.constant 0 : index
    %c0_3 = arith.constant 0 : index
    %c0_4 = arith.constant 0 : index
    %1 = vector.load %arg2[%c0_2, %c0_3, %c0_4] : memref<8x16x32xf32, #tpu.memory_space<vmem>>, vector<8x16x32xf32>
    %2 = vector.shape_cast %0 : vector<8x16x32xf32> to vector<128x32xf32>
    %3 = arith.addf %0, %1 : vector<8x16x32xf32>
    %4 = vector.shape_cast %3 : vector<8x16x32xf32> to vector<128x32xf32>
    %c0_5 = arith.constant 0 : index
    %c0_6 = arith.constant 0 : index
    %5 = vector.load %arg3[%c0_5, %c0_6] : memref<32x64xf32, #tpu.memory_space<vmem>>, vector<32x64xf32>
    %cst = arith.constant dense<0.000000e+00> : vector<128x64xf32>
    %6 = tpu.matmul %4, %5, %cst {dimension_numbers = #tpu.dot_dimension_numbers<[1], [0], [0], [1], [0, 0, 1, 1], [], []>} : vector<128x32xf32>, vector<32x64xf32>, vector<128x64xf32> -> vector<128x64xf32>
    %c0_7 = arith.constant 0 : index
    %c0_8 = arith.constant 0 : index
    %7 = vector.load %arg4[%c0_7, %c0_8] : memref<1x64xf32, #tpu.memory_space<vmem>>, vector<1x64xf32>
    %8 = vector.broadcast %7 : vector<1x64xf32> to vector<128x64xf32>
    %9 = arith.addf %6, %8 : vector<128x64xf32>
    %c0_9 = arith.constant 0 : index
    %c0_10 = arith.constant 0 : index
    %10 = vector.load %arg5[%c0_9, %c0_10] : memref<32x32xf32, #tpu.memory_space<vmem>>, vector<32x32xf32>
    %cst_11 = arith.constant dense<0.000000e+00> : vector<128x32xf32>
    %11 = tpu.matmul %2, %10, %cst_11 {dimension_numbers = #tpu.dot_dimension_numbers<[1], [0], [0], [1], [0, 0, 1, 1], [], []>} : vector<128x32xf32>, vector<32x32xf32>, vector<128x32xf32> -> vector<128x32xf32>
    %c0_12 = arith.constant 0 : index
    %c0_13 = arith.constant 0 : index
    %12 = vector.load %arg6[%c0_12, %c0_13] : memref<1x32xf32, #tpu.memory_space<vmem>>, vector<1x32xf32>
    %13 = vector.broadcast %12 : vector<1x32xf32> to vector<128x32xf32>
    %14 = arith.addf %11, %13 : vector<128x32xf32>
    %15 = vector.extract_strided_slice %9 {offsets = [0, 0], sizes = [128, 16], strides = [1, 1]} : vector<128x64xf32> to vector<128x16xf32>
    %16 = vector.shape_cast %15 : vector<128x16xf32> to vector<8x16x16xf32>
    %17 = vector.extract_strided_slice %9 {offsets = [0, 32], sizes = [128, 16], strides = [1, 1]} : vector<128x64xf32> to vector<128x16xf32>
    %18 = vector.shape_cast %17 : vector<128x16xf32> to vector<8x16x16xf32>
    %19 = vector.extract_strided_slice %14 {offsets = [0, 0], sizes = [128, 16], strides = [1, 1]} : vector<128x32xf32> to vector<128x16xf32>
    %20 = vector.shape_cast %19 : vector<128x16xf32> to vector<8x16x16xf32>
    "tpu.trace_start"() <{level = 10 : i32, message = "gqd,gkd->gqk"}> : () -> ()
    %cst_14 = arith.constant dense<0.000000e+00> : vector<8x16x16xf32>
    %21 = tpu.matmul %16, %18, %cst_14 {dimension_numbers = #tpu.dot_dimension_numbers<[2], [2], [1], [1], [0, 0, 0, 1, 1, 1], [0], [0]>} : vector<8x16x16xf32>, vector<8x16x16xf32>, vector<8x16x16xf32> -> vector<8x16x16xf32>
    "tpu.trace_stop"() : () -> ()
    %cst_15 = arith.constant 2.500000e-01 : f32
    %22 = vector.broadcast %cst_15 : f32 to vector<8x16x16xf32>
    %23 = arith.mulf %21, %22 : vector<8x16x16xf32>
    %cst_16 = arith.constant dense<0xFF800000> : vector<8x16xf32>
    %24 = vector.multi_reduction <maximumf>, %23, %cst_16 [2] : vector<8x16x16xf32> to vector<8x16xf32>
    %25 = vector.shape_cast %24 : vector<8x16xf32> to vector<8x16x1xf32>
    %26 = vector.broadcast %25 : vector<8x16x1xf32> to vector<8x16x16xf32>
    %27 = arith.subf %23, %26 : vector<8x16x16xf32>
    %28 = math.exp %27 : vector<8x16x16xf32>
    %cst_17 = arith.constant dense<0.000000e+00> : vector<8x16xf32>
    %29 = vector.multi_reduction <add>, %28, %cst_17 [2] : vector<8x16x16xf32> to vector<8x16xf32>
    %30 = vector.shape_cast %29 : vector<8x16xf32> to vector<8x16x1xf32>
    %31 = vector.broadcast %30 : vector<8x16x1xf32> to vector<8x16x16xf32>
    %32 = arith.divf %28, %31 : vector<8x16x16xf32>
    "tpu.trace_start"() <{level = 10 : i32, message = "gqk,gkd->gqd"}> : () -> ()
    %cst_18 = arith.constant dense<0.000000e+00> : vector<8x16x16xf32>
    %33 = tpu.matmul %32, %20, %cst_18 {dimension_numbers = #tpu.dot_dimension_numbers<[2], [1], [1], [2], [0, 0, 0, 1, 1, 2], [0], [0]>} : vector<8x16x16xf32>, vector<8x16x16xf32>, vector<8x16x16xf32> -> vector<8x16x16xf32>
    "tpu.trace_stop"() : () -> ()
    %34 = vector.shape_cast %33 : vector<8x16x16xf32> to vector<128x16xf32>
    %35 = vector.extract_strided_slice %9 {offsets = [0, 16], sizes = [128, 16], strides = [1, 1]} : vector<128x64xf32> to vector<128x16xf32>
    %36 = vector.shape_cast %35 : vector<128x16xf32> to vector<8x16x16xf32>
    %37 = vector.extract_strided_slice %9 {offsets = [0, 48], sizes = [128, 16], strides = [1, 1]} : vector<128x64xf32> to vector<128x16xf32>
    %38 = vector.shape_cast %37 : vector<128x16xf32> to vector<8x16x16xf32>
    %39 = vector.extract_strided_slice %14 {offsets = [0, 16], sizes = [128, 16], strides = [1, 1]} : vector<128x32xf32> to vector<128x16xf32>
    %40 = vector.shape_cast %39 : vector<128x16xf32> to vector<8x16x16xf32>
    "tpu.trace_start"() <{level = 10 : i32, message = "gqd,gkd->gqk"}> : () -> ()
    %cst_19 = arith.constant dense<0.000000e+00> : vector<8x16x16xf32>
    %41 = tpu.matmul %36, %38, %cst_19 {dimension_numbers = #tpu.dot_dimension_numbers<[2], [2], [1], [1], [0, 0, 0, 1, 1, 1], [0], [0]>} : vector<8x16x16xf32>, vector<8x16x16xf32>, vector<8x16x16xf32> -> vector<8x16x16xf32>
    "tpu.trace_stop"() : () -> ()
    %cst_20 = arith.constant 2.500000e-01 : f32
    %42 = vector.broadcast %cst_20 : f32 to vector<8x16x16xf32>
    %43 = arith.mulf %41, %42 : vector<8x16x16xf32>
    %cst_21 = arith.constant dense<0xFF800000> : vector<8x16xf32>
    %44 = vector.multi_reduction <maximumf>, %43, %cst_21 [2] : vector<8x16x16xf32> to vector<8x16xf32>
    %45 = vector.shape_cast %44 : vector<8x16xf32> to vector<8x16x1xf32>
    %46 = vector.broadcast %45 : vector<8x16x1xf32> to vector<8x16x16xf32>
    %47 = arith.subf %43, %46 : vector<8x16x16xf32>
    %48 = math.exp %47 : vector<8x16x16xf32>
    %cst_22 = arith.constant dense<0.000000e+00> : vector<8x16xf32>
    %49 = vector.multi_reduction <add>, %48, %cst_22 [2] : vector<8x16x16xf32> to vector<8x16xf32>
    %50 = vector.shape_cast %49 : vector<8x16xf32> to vector<8x16x1xf32>
    %51 = vector.broadcast %50 : vector<8x16x1xf32> to vector<8x16x16xf32>
    %52 = arith.divf %48, %51 : vector<8x16x16xf32>
    "tpu.trace_start"() <{level = 10 : i32, message = "gqk,gkd->gqd"}> : () -> ()
    %cst_23 = arith.constant dense<0.000000e+00> : vector<8x16x16xf32>
    %53 = tpu.matmul %52, %40, %cst_23 {dimension_numbers = #tpu.dot_dimension_numbers<[2], [1], [1], [2], [0, 0, 0, 1, 1, 2], [0], [0]>} : vector<8x16x16xf32>, vector<8x16x16xf32>, vector<8x16x16xf32> -> vector<8x16x16xf32>
    "tpu.trace_stop"() : () -> ()
    %54 = vector.shape_cast %53 : vector<8x16x16xf32> to vector<128x16xf32>
    %55 = tpu.concatenate %34, %54 in 1 : vector<128x16xf32>, vector<128x16xf32> -> vector<128x32xf32>
    %c0_24 = arith.constant 0 : index
    %c0_25 = arith.constant 0 : index
    %56 = vector.load %arg7[%c0_24, %c0_25] : memref<32x32xf32, #tpu.memory_space<vmem>>, vector<32x32xf32>
    %cst_26 = arith.constant dense<0.000000e+00> : vector<128x32xf32>
    %57 = tpu.matmul %55, %56, %cst_26 {dimension_numbers = #tpu.dot_dimension_numbers<[1], [0], [0], [1], [0, 0, 1, 1], [], []>} : vector<128x32xf32>, vector<32x32xf32>, vector<128x32xf32> -> vector<128x32xf32>
    %c0_27 = arith.constant 0 : index
    %c0_28 = arith.constant 0 : index
    %58 = vector.load %arg8[%c0_27, %c0_28] : memref<1x32xf32, #tpu.memory_space<vmem>>, vector<1x32xf32>
    %59 = vector.broadcast %58 : vector<1x32xf32> to vector<128x32xf32>
    %60 = arith.addf %57, %59 : vector<128x32xf32>
    %61 = arith.addf %2, %60 : vector<128x32xf32>
    %c0_29 = arith.constant 0 : index
    %c0_30 = arith.constant 0 : index
    %62 = vector.load %arg9[%c0_29, %c0_30] : memref<1x32xf32, #tpu.memory_space<vmem>>, vector<1x32xf32>
    %c0_31 = arith.constant 0 : index
    %c0_32 = arith.constant 0 : index
    %63 = vector.load %arg10[%c0_31, %c0_32] : memref<1x32xf32, #tpu.memory_space<vmem>>, vector<1x32xf32>
    %cst_33 = arith.constant dense<0.000000e+00> : vector<128xf32>
    %64 = vector.multi_reduction <add>, %61, %cst_33 [1] : vector<128x32xf32> to vector<128xf32>
    %65 = vector.shape_cast %64 : vector<128xf32> to vector<128x1xf32>
    %cst_34 = arith.constant 3.200000e+01 : f32
    %66 = vector.broadcast %cst_34 : f32 to vector<128x1xf32>
    %67 = arith.divf %65, %66 : vector<128x1xf32>
    %68 = vector.broadcast %67 : vector<128x1xf32> to vector<128x32xf32>
    %69 = arith.subf %61, %68 : vector<128x32xf32>
    %70 = arith.mulf %69, %69 : vector<128x32xf32>
    %cst_35 = arith.constant dense<0.000000e+00> : vector<128xf32>
    %71 = vector.multi_reduction <add>, %70, %cst_35 [1] : vector<128x32xf32> to vector<128xf32>
    %72 = vector.shape_cast %71 : vector<128xf32> to vector<128x1xf32>
    %cst_36 = arith.constant 3.200000e+01 : f32
    %73 = vector.broadcast %cst_36 : f32 to vector<128x1xf32>
    %74 = arith.divf %72, %73 : vector<128x1xf32>
    %cst_37 = arith.constant 9.99999974E-6 : f32
    %75 = vector.broadcast %cst_37 : f32 to vector<128x1xf32>
    %76 = arith.addf %74, %75 : vector<128x1xf32>
    %77 = math.rsqrt %76 : vector<128x1xf32>
    %78 = vector.broadcast %77 : vector<128x1xf32> to vector<128x32xf32>
    %79 = arith.mulf %69, %78 : vector<128x32xf32>
    %80 = vector.broadcast %62 : vector<1x32xf32> to vector<128x32xf32>
    %81 = arith.mulf %79, %80 : vector<128x32xf32>
    %82 = vector.broadcast %63 : vector<1x32xf32> to vector<128x32xf32>
    %83 = arith.addf %81, %82 : vector<128x32xf32>
    %c0_38 = arith.constant 0 : index
    %c0_39 = arith.constant 0 : index
    %84 = vector.load %arg11[%c0_38, %c0_39] : memref<32x64xf32, #tpu.memory_space<vmem>>, vector<32x64xf32>
    %cst_40 = arith.constant dense<0.000000e+00> : vector<128x64xf32>
    %85 = tpu.matmul %83, %84, %cst_40 {dimension_numbers = #tpu.dot_dimension_numbers<[1], [0], [0], [1], [0, 0, 1, 1], [], []>} : vector<128x32xf32>, vector<32x64xf32>, vector<128x64xf32> -> vector<128x64xf32>
    %c0_41 = arith.constant 0 : index
    %c0_42 = arith.constant 0 : index
    %86 = vector.load %arg12[%c0_41, %c0_42] : memref<1x64xf32, #tpu.memory_space<vmem>>, vector<1x64xf32>
    %87 = vector.broadcast %86 : vector<1x64xf32> to vector<128x64xf32>
    %88 = arith.addf %85, %87 : vector<128x64xf32>
    %cst_43 = arith.constant 5.000000e-01 : f32
    %89 = vector.broadcast %cst_43 : f32 to vector<128x64xf32>
    %90 = arith.mulf %89, %88 : vector<128x64xf32>
    %cst_44 = arith.constant 4.471500e-02 : f32
    %91 = vector.broadcast %cst_44 : f32 to vector<128x64xf32>
    %92 = arith.mulf %91, %88 : vector<128x64xf32>
    %93 = arith.mulf %92, %88 : vector<128x64xf32>
    %94 = arith.mulf %93, %88 : vector<128x64xf32>
    %95 = arith.addf %88, %94 : vector<128x64xf32>
    %cst_45 = arith.constant 0.797884583 : f32
    %96 = vector.broadcast %cst_45 : f32 to vector<128x64xf32>
    %97 = arith.mulf %96, %95 : vector<128x64xf32>
    %98 = math.tanh %97 : vector<128x64xf32>
    %cst_46 = arith.constant 1.000000e+00 : f32
    %99 = vector.broadcast %cst_46 : f32 to vector<128x64xf32>
    %100 = arith.addf %99, %98 : vector<128x64xf32>
    %101 = arith.mulf %90, %100 : vector<128x64xf32>
    %c0_47 = arith.constant 0 : index
    %c0_48 = arith.constant 0 : index
    %102 = vector.load %arg13[%c0_47, %c0_48] : memref<64x32xf32, #tpu.memory_space<vmem>>, vector<64x32xf32>
    %cst_49 = arith.constant dense<0.000000e+00> : vector<128x32xf32>
    %103 = tpu.matmul %101, %102, %cst_49 {dimension_numbers = #tpu.dot_dimension_numbers<[1], [0], [0], [1], [0, 0, 1, 1], [], []>} : vector<128x64xf32>, vector<64x32xf32>, vector<128x32xf32> -> vector<128x32xf32>
    %c0_50 = arith.constant 0 : index
    %c0_51 = arith.constant 0 : index
    %104 = vector.load %arg14[%c0_50, %c0_51] : memref<1x32xf32, #tpu.memory_space<vmem>>, vector<1x32xf32>
    %105 = vector.broadcast %104 : vector<1x32xf32> to vector<128x32xf32>
    %106 = arith.addf %103, %105 : vector<128x32xf32>
    %107 = arith.addf %83, %106 : vector<128x32xf32>
    %c0_52 = arith.constant 0 : index
    %c0_53 = arith.constant 0 : index
    %108 = vector.load %arg15[%c0_52, %c0_53] : memref<1x32xf32, #tpu.memory_space<vmem>>, vector<1x32xf32>
    %c0_54 = arith.constant 0 : index
    %c0_55 = arith.constant 0 : index
    %109 = vector.load %arg16[%c0_54, %c0_55] : memref<1x32xf32, #tpu.memory_space<vmem>>, vector<1x32xf32>
    %cst_56 = arith.constant dense<0.000000e+00> : vector<128xf32>
    %110 = vector.multi_reduction <add>, %107, %cst_56 [1] : vector<128x32xf32> to vector<128xf32>
    %111 = vector.shape_cast %110 : vector<128xf32> to vector<128x1xf32>
    %cst_57 = arith.constant 3.200000e+01 : f32
    %112 = vector.broadcast %cst_57 : f32 to vector<128x1xf32>
    %113 = arith.divf %111, %112 : vector<128x1xf32>
    %114 = vector.broadcast %113 : vector<128x1xf32> to vector<128x32xf32>
    %115 = arith.subf %107, %114 : vector<128x32xf32>
    %116 = arith.mulf %115, %115 : vector<128x32xf32>
    %cst_58 = arith.constant dense<0.000000e+00> : vector<128xf32>
    %117 = vector.multi_reduction <add>, %116, %cst_58 [1] : vector<128x32xf32> to vector<128xf32>
    %118 = vector.shape_cast %117 : vector<128xf32> to vector<128x1xf32>
    %cst_59 = arith.constant 3.200000e+01 : f32
    %119 = vector.broadcast %cst_59 : f32 to vector<128x1xf32>
    %120 = arith.divf %118, %119 : vector<128x1xf32>
    %cst_60 = arith.constant 9.99999974E-6 : f32
    %121 = vector.broadcast %cst_60 : f32 to vector<128x1xf32>
    %122 = arith.addf %120, %121 : vector<128x1xf32>
    %123 = math.rsqrt %122 : vector<128x1xf32>
    %124 = vector.broadcast %123 : vector<128x1xf32> to vector<128x32xf32>
    %125 = arith.mulf %115, %124 : vector<128x32xf32>
    %126 = vector.broadcast %108 : vector<1x32xf32> to vector<128x32xf32>
    %127 = arith.mulf %125, %126 : vector<128x32xf32>
    %128 = vector.broadcast %109 : vector<1x32xf32> to vector<128x32xf32>
    %129 = arith.addf %127, %128 : vector<128x32xf32>
    %130 = vector.shape_cast %129 : vector<128x32xf32> to vector<8x16x32xf32>
    %c0_61 = arith.constant 0 : index
    %c0_62 = arith.constant 0 : index
    %c0_63 = arith.constant 0 : index
    %131 = vector.load %arg17[%c0_61, %c0_62, %c0_63] : memref<8x16x32xf32, #tpu.memory_space<vmem>>, vector<8x16x32xf32>
    tpu.vector_store %arg17[%c0_61, %c0_62, %c0_63], %130 {strides = array<i32>} : memref<8x16x32xf32, #tpu.memory_space<vmem>>, vector<8x16x32xf32>,
    return
  }
  func.func @transform_0(%arg0: i32) -> (i32, i32, i32) {
    %c0_i32 = arith.constant 0 : i32
    %c0_i32_0 = arith.constant 0 : i32
    %c0_i32_1 = arith.constant 0 : i32
    return %arg0, %c0_i32, %c0_i32_0 : i32, i32, i32
  }
  func.func @transform_1(%arg0: i32) -> (i32, i32, i32) {
    %c0_i32 = arith.constant 0 : i32
    %c0_i32_0 = arith.constant 0 : i32
    %c0_i32_1 = arith.constant 0 : i32
    return %arg0, %c0_i32, %c0_i32_0 : i32, i32, i32
  }
  func.func @transform_2(%arg0: i32) -> (i32, i32) {
    %c0_i32 = arith.constant 0 : i32
    %c0_i32_0 = arith.constant 0 : i32
    %c0_i32_1 = arith.constant 0 : i32
    return %c0_i32, %c0_i32_0 : i32, i32
  }
  func.func @transform_3(%arg0: i32) -> (i32, i32) {
    %c0_i32 = arith.constant 0 : i32
    %c0_i32_0 = arith.constant 0 : i32
    %c0_i32_1 = arith.constant 0 : i32
    return %c0_i32, %c0_i32_0 : i32, i32
  }
  func.func @transform_4(%arg0: i32) -> (i32, i32) {
    %c0_i32 = arith.constant 0 : i32
    %c0_i32_0 = arith.constant 0 : i32
    %c0_i32_1 = arith.constant 0 : i32
    return %c0_i32, %c0_i32_0 : i32, i32
  }
  func.func @transform_5(%arg0: i32) -> (i32, i32) {
    %c0_i32 = arith.constant 0 : i32
    %c0_i32_0 = arith.constant 0 : i32
    %c0_i32_1 = arith.constant 0 : i32
    return %c0_i32, %c0_i32_0 : i32, i32
  }
  func.func @transform_6(%arg0: i32) -> (i32, i32) {
    %c0_i32 = arith.constant 0 : i32
    %c0_i32_0 = arith.constant 0 : i32
    %c0_i32_1 = arith.constant 0 : i32
    return %c0_i32, %c0_i32_0 : i32, i32
  }
  func.func @transform_7(%arg0: i32) -> (i32, i32) {
    %c0_i32 = arith.constant 0 : i32
    %c0_i32_0 = arith.constant 0 : i32
    %c0_i32_1 = arith.constant 0 : i32
    return %c0_i32, %c0_i32_0 : i32, i32
  }
  func.func @transform_8(%arg0: i32) -> (i32, i32) {
    %c0_i32 = arith.constant 0 : i32
    %c0_i32_0 = arith.constant 0 : i32
    %c0_i32_1 = arith.constant 0 : i32
    return %c0_i32, %c0_i32_0 : i32, i32
  }
  func.func @transform_9(%arg0: i32) -> (i32, i32) {
    %c0_i32 = arith.constant 0 : i32
    %c0_i32_0 = arith.constant 0 : i32
    %c0_i32_1 = arith.constant 0 : i32
    return %c0_i32, %c0_i32_0 : i32, i32
  }
  func.func @transform_10(%arg0: i32) -> (i32, i32) {
    %c0_i32 = arith.constant 0 : i32
    %c0_i32_0 = arith.constant 0 : i32
    %c0_i32_1 = arith.constant 0 : i32
    return %c0_i32, %c0_i32_0 : i32, i32
  }
  func.func @transform_11(%arg0: i32) -> (i32, i32) {
    %c0_i32 = arith.constant 0 : i32
    %c0_i32_0 = arith.constant 0 : i32
    %c0_i32_1 = arith.constant 0 : i32
    return %c0_i32, %c0_i32_0 : i32, i32
  }
  func.func @transform_12(%arg0: i32) -> (i32, i32) {
    %c0_i32 = arith.constant 0 : i32
    %c0_i32_0 = arith.constant 0 : i32
    %c0_i32_1 = arith.constant 0 : i32
    return %c0_i32, %c0_i32_0 : i32, i32
  }
  func.func @transform_13(%arg0: i32) -> (i32, i32) {
    %c0_i32 = arith.constant 0 : i32
    %c0_i32_0 = arith.constant 0 : i32
    %c0_i32_1 = arith.constant 0 : i32
    return %c0_i32, %c0_i32_0 : i32, i32
  }
  func.func @transform_14(%arg0: i32) -> (i32, i32) {
    %c0_i32 = arith.constant 0 : i32
    %c0_i32_0 = arith.constant 0 : i32
    %c0_i32_1 = arith.constant 0 : i32
    return %c0_i32, %c0_i32_0 : i32, i32
  }
  func.func @transform_15(%arg0: i32) -> (i32, i32) {
    %c0_i32 = arith.constant 0 : i32
    %c0_i32_0 = arith.constant 0 : i32
    %c0_i32_1 = arith.constant 0 : i32
    return %c0_i32, %c0_i32_0 : i32, i32
  }
  func.func @transform_16(%arg0: i32) -> (i32, i32, i32) {
    %c0_i32 = arith.constant 0 : i32
    %c0_i32_0 = arith.constant 0 : i32
    %c0_i32_1 = arith.constant 0 : i32
    return %arg0, %c0_i32, %c0_i32_0 : i32, i32, i32
  }
}

</mosaic_0001>

<llo_original>
// kernel: basic_block_pallas.4
$region0: #{basic_block_pallas.4}
  #allocation0 [shape = 'u32[]', space=smem, size = 0x4, offset = 0x4, fixed_abs, tag = 'smem constant byte address 0x4 - core index']
  #allocation1 [shape = 'u32[144,128]{1,0:T(1,128)}', space=vmem, size = 0x12000, scoped, tag = 'internal scratch']
  %s0 = inlined_call_operand.vmem [shape: f32[32,16,32], index: 0, kind: input, shape index: {}]
  %s1 = inlined_call_operand.vmem [shape: f32[32,16,32], index: 1, kind: input, shape index: {}]
  %s2 = inlined_call_operand.vmem [shape: f32[32,64], index: 2, kind: input, shape index: {}]
  %s3 = inlined_call_operand.vmem [shape: f32[1,64], index: 3, kind: input, shape index: {}]
  %s4 = inlined_call_operand.vmem [shape: f32[32,32], index: 4, kind: input, shape index: {}]
  %s5 = inlined_call_operand.vmem [shape: f32[1,32], index: 5, kind: input, shape index: {}]
  %s6 = inlined_call_operand.vmem [shape: f32[32,32], index: 6, kind: input, shape index: {}]
  %s7 = inlined_call_operand.vmem [shape: f32[1,32], index: 7, kind: input, shape index: {}]
  %s8 = inlined_call_operand.vmem [shape: f32[1,32], index: 8, kind: input, shape index: {}]
  %s9 = inlined_call_operand.vmem [shape: f32[1,32], index: 9, kind: input, shape index: {}]
  %s10 = inlined_call_operand.vmem [shape: f32[32,64], index: 10, kind: input, shape index: {}]
  %s11 = inlined_call_operand.vmem [shape: f32[1,64], index: 11, kind: input, shape index: {}]
  %s12 = inlined_call_operand.vmem [shape: f32[64,32], index: 12, kind: input, shape index: {}]
  %s13 = inlined_call_operand.vmem [shape: f32[1,32], index: 13, kind: input, shape index: {}]
  %s14 = inlined_call_operand.vmem [shape: f32[1,32], index: 14, kind: input, shape index: {}]
  %s15 = inlined_call_operand.vmem [shape: f32[1,32], index: 15, kind: input, shape index: {}]
  %s16 = inlined_call_operand.vmem [shape: f32[32,16,32], index: 16, kind: output, shape index: {}]
  %s17 = sld [smem:[#allocation0]]
  $region97: #{basic_block_pallas.4} parent=0
    _
  %s19 = ssub.s32 1, %s17
  %s20 = scalar_select 0, %s19, %s17
  loop: start=0, step=1, limit=6
  $region2: #{basic_block_pallas.4} parent=0 // loop_pre_header
    _
  $region3: #{basic_block_pallas.4} parent=0 // loop_header
    %s22 = sphi 0, %s26
    %p23 = scmp.ge.s32.totalorder %s22, 6
    %s32 = sphi 0, %s34
    %s35 = sphi 0, %s32
    %s36 = sphi 0, %s35
    %s52 = sphi 0, %s36
    %s58 = sphi 0, %s60
    %s61 = sphi 0, %s58
    %s62 = sphi 0, %s61
    %s78 = sphi 0, %s62
    %s82 = sphi 0, %s82
    %s84 = sphi 0, %s82
    %s85 = sphi 0, %s84
    %s99 = sphi 0, %s85
    %s103 = sphi 0, %s103
    %s105 = sphi 0, %s103
    %s106 = sphi 0, %s105
    %s120 = sphi 0, %s106
    %s124 = sphi 0, %s124
    %s126 = sphi 0, %s124
    %s127 = sphi 0, %s126
    %s141 = sphi 0, %s127
    %s145 = sphi 0, %s145
    %s147 = sphi 0, %s145
    %s148 = sphi 0, %s147
    %s162 = sphi 0, %s148
    %s166 = sphi 0, %s166
    %s168 = sphi 0, %s166
    %s169 = sphi 0, %s168
    %s183 = sphi 0, %s169
    %s187 = sphi 0, %s187
    %s189 = sphi 0, %s187
    %s190 = sphi 0, %s189
    %s204 = sphi 0, %s190
    %s208 = sphi 0, %s208
    %s210 = sphi 0, %s208
    %s211 = sphi 0, %s210
    %s225 = sphi 0, %s211
    %s229 = sphi 0, %s229
    %s231 = sphi 0, %s229
    %s232 = sphi 0, %s231
    %s246 = sphi 0, %s232
    %s250 = sphi 0, %s250
    %s252 = sphi 0, %s250
    %s253 = sphi 0, %s252
    %s267 = sphi 0, %s253
    %s271 = sphi 0, %s271
    %s273 = sphi 0, %s271
    %s274 = sphi 0, %s273
    %s288 = sphi 0, %s274
    %s292 = sphi 0, %s292
    %s294 = sphi 0, %s292
    %s295 = sphi 0, %s294
    %s309 = sphi 0, %s295
    %s313 = sphi 0, %s313
    %s315 = sphi 0, %s313
    %s316 = sphi 0, %s315
    %s330 = sphi 0, %s316
    %s334 = sphi 0, %s334
    %s336 = sphi 0, %s334
    %s337 = sphi 0, %s336
    %s351 = sphi 0, %s337
    %s355 = sphi 0, %s355
    %s357 = sphi 0, %s355
    %s358 = sphi 0, %s357
    %s372 = sphi 0, %s358
    %s378 = sphi 0, %s380
    %s381 = sphi 0, %s378
    %s382 = sphi 0, %s381
    %s398 = sphi 0, %s382
  $region4: #{basic_block_pallas.4} parent=0 // loop_header_branch
    %25 = sbr.rel (%p23) target = $region8
  $region5: #{basic_block_pallas.4} parent=0 // loop_body
    %s27 = ssub.s32 %s22, 1
    %s28 = ssub.s32 %s22, 2
    %s29 = sadd.s32 %s22, 1
    %s30 = ssub.s32 %s22, %s29
    %p31 = scmp.eq.s32.totalorder %s30, 0
    %s33 = sadd.s32 %s32, 1
    %s34 = scalar_select %p31, %s32, %s33
    %p37 = pneg %p31
    %p38 = scmp.eq.s32.totalorder %s22, 3
    %p39 = por %p37, %p38
    %p40 = scmp.ne.s32.totalorder %s32, %s35
    %p41 = scmp.eq.s32.totalorder %s22, 0
    %p42 = por %p40, %p41
    %p43 = scmp.ne.s32.totalorder %s32, %s35
    %p44 = scmp.eq.s32.totalorder %s27, 3
    %p45 = por %p43, %p44
    %p46 = scmp.ne.s32.totalorder %s35, %s36
    %p47 = scmp.eq.s32.totalorder %s27, 0
    %p48 = por %p46, %p47
    %p49 = scmp.ne.s32.totalorder %s35, %s36
    %p50 = scmp.eq.s32.totalorder %s28, 3
    %p51 = por %p49, %p50
    %p53 = scmp.ne.s32.totalorder %s36, %s52
    %p54 = scmp.eq.s32.totalorder %s28, 0
    %p55 = por %p53, %p54
    %s56 = ssub.s32 %s22, %s29
    %p57 = scmp.eq.s32.totalorder %s56, 0
    %s59 = sadd.s32 %s58, 1
    %s60 = scalar_select %p57, %s58, %s59
    %p63 = pneg %p57
    %p64 = scmp.eq.s32.totalorder %s22, 3
    %p65 = por %p63, %p64
    %p66 = scmp.ne.s32.totalorder %s58, %s61
    %p67 = scmp.eq.s32.totalorder %s22, 0
    %p68 = por %p66, %p67
    %p69 = scmp.ne.s32.totalorder %s58, %s61
    %p70 = scmp.eq.s32.totalorder %s27, 3
    %p71 = por %p69, %p70
    %p72 = scmp.ne.s32.totalorder %s61, %s62
    %p73 = scmp.eq.s32.totalorder %s27, 0
    %p74 = por %p72, %p73
    %p75 = scmp.ne.s32.totalorder %s61, %s62
    %p76 = scmp.eq.s32.totalorder %s28, 3
    %p77 = por %p75, %p76
    %p79 = scmp.ne.s32.totalorder %s62, %s78
    %p80 = scmp.eq.s32.totalorder %s28, 0
    %p81 = por %p79, %p80
    %s83 = sadd.s32 %s82, 1
    %p86 = scmp.eq.s32.totalorder %s22, 3
    %p87 = scmp.ne.s32.totalorder %s82, %s84
    %p88 = scmp.eq.s32.totalorder %s22, 0
    %p89 = por %p87, %p88
    %p90 = scmp.ne.s32.totalorder %s82, %s84
    %p91 = scmp.eq.s32.totalorder %s27, 3
    %p92 = por %p90, %p91
    %p93 = scmp.ne.s32.totalorder %s84, %s85
    %p94 = scmp.eq.s32.totalorder %s27, 0
    %p95 = por %p93, %p94
    %p96 = scmp.ne.s32.totalorder %s84, %s85
    %p97 = scmp.eq.s32.totalorder %s28, 3
    %p98 = por %p96, %p97
    %p100 = scmp.ne.s32.totalorder %s85, %s99
    %p101 = scmp.eq.s32.totalorder %s28, 0
    %p102 = por %p100, %p101
    %s104 = sadd.s32 %s103, 1
    %p107 = scmp.eq.s32.totalorder %s22, 3
    %p108 = scmp.ne.s32.totalorder %s103, %s105
    %p109 = scmp.eq.s32.totalorder %s22, 0
    %p110 = por %p108, %p109
    %p111 = scmp.ne.s32.totalorder %s103, %s105
    %p112 = scmp.eq.s32.totalorder %s27, 3
    %p113 = por %p111, %p112
    %p114 = scmp.ne.s32.totalorder %s105, %s106
    %p115 = scmp.eq.s32.totalorder %s27, 0
    %p116 = por %p114, %p115
    %p117 = scmp.ne.s32.totalorder %s105, %s106
    %p118 = scmp.eq.s32.totalorder %s28, 3
    %p119 = por %p117, %p118
    %p121 = scmp.ne.s32.totalorder %s106, %s120
    %p122 = scmp.eq.s32.totalorder %s28, 0
    %p123 = por %p121, %p122
    %s125 = sadd.s32 %s124, 1
    %p128 = scmp.eq.s32.totalorder %s22, 3
    %p129 = scmp.ne.s32.totalorder %s124, %s126
    %p130 = scmp.eq.s32.totalorder %s22, 0
    %p131 = por %p129, %p130
    %p132 = scmp.ne.s32.totalorder %s124, %s126
    %p133 = scmp.eq.s32.totalorder %s27, 3
    %p134 = por %p132, %p133
    %p135 = scmp.ne.s32.totalorder %s126, %s127
    %p136 = scmp.eq.s32.totalorder %s27, 0
    %p137 = por %p135, %p136
    %p138 = scmp.ne.s32.totalorder %s126, %s127
    %p139 = scmp.eq.s32.totalorder %s28, 3
    %p140 = por %p138, %p139
    %p142 = scmp.ne.s32.totalorder %s127, %s141
    %p143 = scmp.eq.s32.totalorder %s28, 0
    %p144 = por %p142, %p143
    %s146 = sadd.s32 %s145, 1
    %p149 = scmp.eq.s32.totalorder %s22, 3
    %p150 = scmp.ne.s32.totalorder %s145, %s147
    %p151 = scmp.eq.s32.totalorder %s22, 0
    %p152 = por %p150, %p151
    %p153 = scmp.ne.s32.totalorder %s145, %s147
    %p154 = scmp.eq.s32.totalorder %s27, 3
    %p155 = por %p153, %p154
    %p156 = scmp.ne.s32.totalorder %s147, %s148
    %p157 = scmp.eq.s32.totalorder %s27, 0
    %p158 = por %p156, %p157
    %p159 = scmp.ne.s32.totalorder %s147, %s148
    %p160 = scmp.eq.s32.totalorder %s28, 3
    %p161 = por %p159, %p160
    %p163 = scmp.ne.s32.totalorder %s148, %s162
    %p164 = scmp.eq.s32.totalorder %s28, 0
    %p165 = por %p163, %p164
    %s167 = sadd.s32 %s166, 1
    %p170 = scmp.eq.s32.totalorder %s22, 3
    %p171 = scmp.ne.s32.totalorder %s166, %s168
    %p172 = scmp.eq.s32.totalorder %s22, 0
    %p173 = por %p171, %p172
    %p174 = scmp.ne.s32.totalorder %s166, %s168
    %p175 = scmp.eq.s32.totalorder %s27, 3
    %p176 = por %p174, %p175
    %p177 = scmp.ne.s32.totalorder %s168, %s169
    %p178 = scmp.eq.s32.totalorder %s27, 0
    %p179 = por %p177, %p178
    %p180 = scmp.ne.s32.totalorder %s168, %s169
    %p181 = scmp.eq.s32.totalorder %s28, 3
    %p182 = por %p180, %p181
    %p184 = scmp.ne.s32.totalorder %s169, %s183
    %p185 = scmp.eq.s32.totalorder %s28, 0
    %p186 = por %p184, %p185
    %s188 = sadd.s32 %s187, 1
    %p191 = scmp.eq.s32.totalorder %s22, 3
    %p192 = scmp.ne.s32.totalorder %s187, %s189
    %p193 = scmp.eq.s32.totalorder %s22, 0
    %p194 = por %p192, %p193
    %p195 = scmp.ne.s32.totalorder %s187, %s189
    %p196 = scmp.eq.s32.totalorder %s27, 3
    %p197 = por %p195, %p196
    %p198 = scmp.ne.s32.totalorder %s189, %s190
    %p199 = scmp.eq.s32.totalorder %s27, 0
    %p200 = por %p198, %p199
    %p201 = scmp.ne.s32.totalorder %s189, %s190
    %p202 = scmp.eq.s32.totalorder %s28, 3
    %p203 = por %p201, %p202
    %p205 = scmp.ne.s32.totalorder %s190, %s204
    %p206 = scmp.eq.s32.totalorder %s28, 0
    %p207 = por %p205, %p206
    %s209 = sadd.s32 %s208, 1
    %p212 = scmp.eq.s32.totalorder %s22, 3
    %p213 = scmp.ne.s32.totalorder %s208, %s210
    %p214 = scmp.eq.s32.totalorder %s22, 0
    %p215 = por %p213, %p214
    %p216 = scmp.ne.s32.totalorder %s208, %s210
    %p217 = scmp.eq.s32.totalorder %s27, 3
    %p218 = por %p216, %p217
    %p219 = scmp.ne.s32.totalorder %s210, %s211
    %p220 = scmp.eq.s32.totalorder %s27, 0
    %p221 = por %p219, %p220
    %p222 = scmp.ne.s32.totalorder %s210, %s211
    %p223 = scmp.eq.s32.totalorder %s28, 3
    %p224 = por %p222, %p223
    %p226 = scmp.ne.s32.totalorder %s211, %s225
    %p227 = scmp.eq.s32.totalorder %s28, 0
    %p228 = por %p226, %p227
    %s230 = sadd.s32 %s229, 1
    %p233 = scmp.eq.s32.totalorder %s22, 3
    %p234 = scmp.ne.s32.totalorder %s229, %s231
    %p235 = scmp.eq.s32.totalorder %s22, 0
    %p236 = por %p234, %p235
    %p237 = scmp.ne.s32.totalorder %s229, %s231
    %p238 = scmp.eq.s32.totalorder %s27, 3
    %p239 = por %p237, %p238
    %p240 = scmp.ne.s32.totalorder %s231, %s232
    %p241 = scmp.eq.s32.totalorder %s27, 0
    %p242 = por %p240, %p241
    %p243 = scmp.ne.s32.totalorder %s231, %s232
    %p244 = scmp.eq.s32.totalorder %s28, 3
    %p245 = por %p243, %p244
    %p247 = scmp.ne.s32.totalorder %s232, %s246
    %p248 = scmp.eq.s32.totalorder %s28, 0
    %p249 = por %p247, %p248
    %s251 = sadd.s32 %s250, 1
    %p254 = scmp.eq.s32.totalorder %s22, 3
    %p255 = scmp.ne.s32.totalorder %s250, %s252
    %p256 = scmp.eq.s32.totalorder %s22, 0
    %p257 = por %p255, %p256
    %p258 = scmp.ne.s32.totalorder %s250, %s252
    %p259 = scmp.eq.s32.totalorder %s27, 3
    %p260 = por %p258, %p259
    %p261 = scmp.ne.s32.totalorder %s252, %s253
    %p262 = scmp.eq.s32.totalorder %s27, 0
    %p263 = por %p261, %p262
    %p264 = scmp.ne.s32.totalorder %s252, %s253
    %p265 = scmp.eq.s32.totalorder %s28, 3
    %p266 = por %p264, %p265
    %p268 = scmp.ne.s32.totalorder %s253, %s267
    %p269 = scmp.eq.s32.totalorder %s28, 0
    %p270 = por %p268, %p269
    %s272 = sadd.s32 %s271, 1
    %p275 = scmp.eq.s32.totalorder %s22, 3
    %p276 = scmp.ne.s32.totalorder %s271, %s273
    %p277 = scmp.eq.s32.totalorder %s22, 0
    %p278 = por %p276, %p277
    %p279 = scmp.ne.s32.totalorder %s271, %s273
    %p280 = scmp.eq.s32.totalorder %s27, 3
    %p281 = por %p279, %p280
    %p282 = scmp.ne.s32.totalorder %s273, %s274
    %p283 = scmp.eq.s32.totalorder %s27, 0
    %p284 = por %p282, %p283
    %p285 = scmp.ne.s32.totalorder %s273, %s274
    %p286 = scmp.eq.s32.totalorder %s28, 3
    %p287 = por %p285, %p286
    %p289 = scmp.ne.s32.totalorder %s274, %s288
    %p290 = scmp.eq.s32.totalorder %s28, 0
    %p291 = por %p289, %p290
    %s293 = sadd.s32 %s292, 1
    %p296 = scmp.eq.s32.totalorder %s22, 3
    %p297 = scmp.ne.s32.totalorder %s292, %s294
    %p298 = scmp.eq.s32.totalorder %s22, 0
    %p299 = por %p297, %p298
    %p300 = scmp.ne.s32.totalorder %s292, %s294
    %p301 = scmp.eq.s32.totalorder %s27, 3
    %p302 = por %p300, %p301
    %p303 = scmp.ne.s32.totalorder %s294, %s295
    %p304 = scmp.eq.s32.totalorder %s27, 0
    %p305 = por %p303, %p304
    %p306 = scmp.ne.s32.totalorder %s294, %s295
    %p307 = scmp.eq.s32.totalorder %s28, 3
    %p308 = por %p306, %p307
    %p310 = scmp.ne.s32.totalorder %s295, %s309
    %p311 = scmp.eq.s32.totalorder %s28, 0
    %p312 = por %p310, %p311
    %s314 = sadd.s32 %s313, 1
    %p317 = scmp.eq.s32.totalorder %s22, 3
    %p318 = scmp.ne.s32.totalorder %s313, %s315
    %p319 = scmp.eq.s32.totalorder %s22, 0
    %p320 = por %p318, %p319
    %p321 = scmp.ne.s32.totalorder %s313, %s315
    %p322 = scmp.eq.s32.totalorder %s27, 3
    %p323 = por %p321, %p322
    %p324 = scmp.ne.s32.totalorder %s315, %s316
    %p325 = scmp.eq.s32.totalorder %s27, 0
    %p326 = por %p324, %p325
    %p327 = scmp.ne.s32.totalorder %s315, %s316
    %p328 = scmp.eq.s32.totalorder %s28, 3
    %p329 = por %p327, %p328
    %p331 = scmp.ne.s32.totalorder %s316, %s330
    %p332 = scmp.eq.s32.totalorder %s28, 0
    %p333 = por %p331, %p332
    %s335 = sadd.s32 %s334, 1
    %p338 = scmp.eq.s32.totalorder %s22, 3
    %p339 = scmp.ne.s32.totalorder %s334, %s336
    %p340 = scmp.eq.s32.totalorder %s22, 0
    %p341 = por %p339, %p340
    %p342 = scmp.ne.s32.totalorder %s334, %s336
    %p343 = scmp.eq.s32.totalorder %s27, 3
    %p344 = por %p342, %p343
    %p345 = scmp.ne.s32.totalorder %s336, %s337
    %p346 = scmp.eq.s32.totalorder %s27, 0
    %p347 = por %p345, %p346
    %p348 = scmp.ne.s32.totalorder %s336, %s337
    %p349 = scmp.eq.s32.totalorder %s28, 3
    %p350 = por %p348, %p349
    %p352 = scmp.ne.s32.totalorder %s337, %s351
    %p353 = scmp.eq.s32.totalorder %s28, 0
    %p354 = por %p352, %p353
    %s356 = sadd.s32 %s355, 1
    %p359 = scmp.eq.s32.totalorder %s22, 3
    %p360 = scmp.ne.s32.totalorder %s355, %s357
    %p361 = scmp.eq.s32.totalorder %s22, 0
    %p362 = por %p360, %p361
    %p363 = scmp.ne.s32.totalorder %s355, %s357
    %p364 = scmp.eq.s32.totalorder %s27, 3
    %p365 = por %p363, %p364
    %p366 = scmp.ne.s32.totalorder %s357, %s358
    %p367 = scmp.eq.s32.totalorder %s27, 0
    %p368 = por %p366, %p367
    %p369 = scmp.ne.s32.totalorder %s357, %s358
    %p370 = scmp.eq.s32.totalorder %s28, 3
    %p371 = por %p369, %p370
    %p373 = scmp.ne.s32.totalorder %s358, %s372
    %p374 = scmp.eq.s32.totalorder %s28, 0
    %p375 = por %p373, %p374
    %s376 = ssub.s32 %s22, %s29
    %p377 = scmp.eq.s32.totalorder %s376, 0
    %s379 = sadd.s32 %s378, 1
    %s380 = scalar_select %p377, %s378, %s379
    %p383 = pneg %p377
    %p384 = scmp.eq.s32.totalorder %s22, 3
    %p385 = por %p383, %p384
    %p386 = scmp.ne.s32.totalorder %s378, %s381
    %p387 = scmp.eq.s32.totalorder %s22, 0
    %p388 = por %p386, %p387
    %p389 = scmp.ne.s32.totalorder %s378, %s381
    %p390 = scmp.eq.s32.totalorder %s27, 3
    %p391 = por %p389, %p390
    %p392 = scmp.ne.s32.totalorder %s381, %s382
    %p393 = scmp.eq.s32.totalorder %s27, 0
    %p394 = por %p392, %p393
    %p395 = scmp.ne.s32.totalorder %s381, %s382
    %p396 = scmp.eq.s32.totalorder %s28, 3
    %p397 = por %p395, %p396
    %p399 = scmp.ne.s32.totalorder %s382, %s398
    %p400 = scmp.eq.s32.totalorder %s28, 0
    %p401 = por %p399, %p400
    %p402 = scmp.le.s32.totalorder 1, %s22
    %p403 = scmp.lt.s32.totalorder %s22, 5
    %p404 = pnand %p402, %p403
    %p405 = pneg %p404
    // Predicated region
    $region9: #{basic_block_pallas.4} parent=5 // pred_check
      _
    $region10: #{basic_block_pallas.4} parent=5 // pred_check_branch
      %407 = sbr.rel (%p404) target = $region12
    $region11: #{basic_block_pallas.4} parent=5 // pred_region
      %s408 = ssub.s32 %s22, 1
      // Predicated region
      $region13: #{basic_block_pallas.4} parent=11 // pred_check
        %p409 = pneg %p95
      $region14: #{basic_block_pallas.4} parent=11 // pred_check_branch
        %411 = sbr.rel (%p409) target = $region16
      $region15: #{basic_block_pallas.4} parent=11 // pred_region
        _
      $region16: #{basic_block_pallas.4} parent=11 // pred_fallthru
        _
      // Predicated region
      $region17: #{basic_block_pallas.4} parent=11 // pred_check
        %p412 = pneg %p116
      $region18: #{basic_block_pallas.4} parent=11 // pred_check_branch
        %414 = sbr.rel (%p412) target = $region20
      $region19: #{basic_block_pallas.4} parent=11 // pred_region
        _
      $region20: #{basic_block_pallas.4} parent=11 // pred_fallthru
        _
      // Predicated region
      $region21: #{basic_block_pallas.4} parent=11 // pred_check
        %p415 = pneg %p137
      $region22: #{basic_block_pallas.4} parent=11 // pred_check_branch
        %417 = sbr.rel (%p415) target = $region24
      $region23: #{basic_block_pallas.4} parent=11 // pred_region
        _
      $region24: #{basic_block_pallas.4} parent=11 // pred_fallthru
        _
      // Predicated region
      $region25: #{basic_block_pallas.4} parent=11 // pred_check
        %p418 = pneg %p158
      $region26: #{basic_block_pallas.4} parent=11 // pred_check_branch
        %420 = sbr.rel (%p418) target = $region28
      $region27: #{basic_block_pallas.4} parent=11 // pred_region
        _
      $region28: #{basic_block_pallas.4} parent=11 // pred_fallthru
        _
      // Predicated region
      $region29: #{basic_block_pallas.4} parent=11 // pred_check
        %p421 = pneg %p179
      $region30: #{basic_block_pallas.4} parent=11 // pred_check_branch
        %423 = sbr.rel (%p421) target = $region32
      $region31: #{basic_block_pallas.4} parent=11 // pred_region
        _
      $region32: #{basic_block_pallas.4} parent=11 // pred_fallthru
        _
      // Predicated region
      $region33: #{basic_block_pallas.4} parent=11 // pred_check
        %p424 = pneg %p200
      $region34: #{basic_block_pallas.4} parent=11 // pred_check_branch
        %426 = sbr.rel (%p424) target = $region36
      $region35: #{basic_block_pallas.4} parent=11 // pred_region
        _
      $region36: #{basic_block_pallas.4} parent=11 // pred_fallthru
        _
      // Predicated region
      $region37: #{basic_block_pallas.4} parent=11 // pred_check
        %p427 = pneg %p221
      $region38: #{basic_block_pallas.4} parent=11 // pred_check_branch
        %429 = sbr.rel (%p427) target = $region40
      $region39: #{basic_block_pallas.4} parent=11 // pred_region
        _
      $region40: #{basic_block_pallas.4} parent=11 // pred_fallthru
        _
      // Predicated region
      $region41: #{basic_block_pallas.4} parent=11 // pred_check
        %p430 = pneg %p242
      $region42: #{basic_block_pallas.4} parent=11 // pred_check_branch
        %432 = sbr.rel (%p430) target = $region44
      $region43: #{basic_block_pallas.4} parent=11 // pred_region
        _
      $region44: #{basic_block_pallas.4} parent=11 // pred_fallthru
        _
      // Predicated region
      $region45: #{basic_block_pallas.4} parent=11 // pred_check
        %p433 = pneg %p263
      $region46: #{basic_block_pallas.4} parent=11 // pred_check_branch
        %435 = sbr.rel (%p433) target = $region48
      $region47: #{basic_block_pallas.4} parent=11 // pred_region
        _
      $region48: #{basic_block_pallas.4} parent=11 // pred_fallthru
        _
      // Predicated region
      $region49: #{basic_block_pallas.4} parent=11 // pred_check
        %p436 = pneg %p284
      $region50: #{basic_block_pallas.4} parent=11 // pred_check_branch
        %438 = sbr.rel (%p436) target = $region52
      $region51: #{basic_block_pallas.4} parent=11 // pred_region
        _
      $region52: #{basic_block_pallas.4} parent=11 // pred_fallthru
        _
      // Predicated region
      $region53: #{basic_block_pallas.4} parent=11 // pred_check
        %p439 = pneg %p305
      $region54: #{basic_block_pallas.4} parent=11 // pred_check_branch
        %441 = sbr.rel (%p439) target = $region56
      $region55: #{basic_block_pallas.4} parent=11 // pred_region
        _
      $region56: #{basic_block_pallas.4} parent=11 // pred_fallthru
        _
      // Predicated region
      $region57: #{basic_block_pallas.4} parent=11 // pred_check
        %p442 = pneg %p326
      $region58: #{basic_block_pallas.4} parent=11 // pred_check_branch
        %444 = sbr.rel (%p442) target = $region60
      $region59: #{basic_block_pallas.4} parent=11 // pred_region
        _
      $region60: #{basic_block_pallas.4} parent=11 // pred_fallthru
        _
      // Predicated region
      $region61: #{basic_block_pallas.4} parent=11 // pred_check
        %p445 = pneg %p347
      $region62: #{basic_block_pallas.4} parent=11 // pred_check_branch
        %447 = sbr.rel (%p445) target = $region64
      $region63: #{basic_block_pallas.4} parent=11 // pred_region
        _
      $region64: #{basic_block_pallas.4} parent=11 // pred_fallthru
        _
      // Predicated region
      $region65: #{basic_block_pallas.4} parent=11 // pred_check
        %p448 = pneg %p368
      $region66: #{basic_block_pallas.4} parent=11 // pred_check_branch
        %450 = sbr.rel (%p448) target = $region68
      $region67: #{basic_block_pallas.4} parent=11 // pred_region
        _
      $region68: #{basic_block_pallas.4} parent=11 // pred_fallthru
        _
    $region12: #{basic_block_pallas.4} parent=5 // pred_fallthru
      _
    %p451 = scmp.lt.s32.totalorder %s22, 4
    // Predicated region
    $region69: #{basic_block_pallas.4} parent=5 // pred_check
      %p452 = pneg %p451
    $region70: #{basic_block_pallas.4} parent=5 // pred_check_branch
      %454 = sbr.rel (%p452) target = $region72
    $region71: #{basic_block_pallas.4} parent=5 // pred_region
      // Predicated region
      $region73: #{basic_block_pallas.4} parent=71 // pred_check
        %p455 = pneg %p42
      $region74: #{basic_block_pallas.4} parent=71 // pred_check_branch
        %457 = sbr.rel (%p455) target = $region76
      $region75: #{basic_block_pallas.4} parent=71 // pred_region
        %s458 = smul.u32 8, %s22
        %p459 = scmp.lt.s32.totalorder %s458, 31
        %s460 = scalar_select %p459, %s458, 31
        %s461 = smul.addr %s460, 2
        %s462 = smul.addr %s461, 8
        %s463 = scalar_lea.vmem %s0, %s462
        %s464 = smul.u32 8, %s22
      $region76: #{basic_block_pallas.4} parent=71 // pred_fallthru
        _
      // Predicated region
      $region77: #{basic_block_pallas.4} parent=71 // pred_check
        %p465 = pneg %p68
      $region78: #{basic_block_pallas.4} parent=71 // pred_check_branch
        %467 = sbr.rel (%p465) target = $region80
      $region79: #{basic_block_pallas.4} parent=71 // pred_region
        %s468 = smul.u32 8, %s22
        %p469 = scmp.lt.s32.totalorder %s468, 31
        %s470 = scalar_select %p469, %s468, 31
        %s471 = smul.addr %s470, 2
        %s472 = smul.addr %s471, 8
        %s473 = scalar_lea.vmem %s1, %s472
        %s474 = smul.u32 8, %s22
      $region80: #{basic_block_pallas.4} parent=71 // pred_fallthru
        _
    $region72: #{basic_block_pallas.4} parent=5 // pred_fallthru
      _
    %p475 = scmp.le.s32.totalorder 1, %s22
    %p476 = scmp.lt.s32.totalorder %s22, 5
    %p477 = pnand %p475, %p476
    %p478 = pneg %p477
    // Predicated region
    $region81: #{basic_block_pallas.4} parent=5 // pred_check
      _
    $region82: #{basic_block_pallas.4} parent=5 // pred_check_branch
      %480 = sbr.rel (%p477) target = $region84
    $region83: #{basic_block_pallas.4} parent=5 // pred_region
      %s481 = ssub.s32 %s22, 1
      %s482 = smul.u32 8, %s27
      %p483 = scmp.lt.s32.totalorder %s482, 31
      %s484 = scalar_select %p483, %s482, 31
      %s485 = smul.addr %s484, 2
      %s486 = smul.addr %s485, 8
      %s487 = scalar_lea.vmem %s0, %s486
      %p488 = pneg %p48
      %p489 = pneg %p45
      %s490 = smul.u32 8, %s27
      %p491 = scmp.lt.s32.totalorder %s490, 31
      %s492 = scalar_select %p491, %s490, 31
      %s493 = smul.addr %s492, 2
      %s494 = smul.addr %s493, 8
      %s495 = scalar_lea.vmem %s1, %s494
      %p496 = pneg %p74
      %p497 = pneg %p71
      %p498 = pneg %p95
      %p499 = pneg %p92
      %p500 = pneg %p116
      %p501 = pneg %p113
      %p502 = pneg %p137
      %p503 = pneg %p134
      %p504 = pneg %p158
      %p505 = pneg %p155
      %p506 = pneg %p179
      %p507 = pneg %p176
      %p508 = pneg %p200
      %p509 = pneg %p197
      %p510 = pneg %p221
      %p511 = pneg %p218
      %p512 = pneg %p242
      %p513 = pneg %p239
      %p514 = pneg %p263
      %p515 = pneg %p260
      %p516 = pneg %p284
      %p517 = pneg %p281
      %p518 = pneg %p305
      %p519 = pneg %p302
      %p520 = pneg %p326
      %p521 = pneg %p323
      %p522 = pneg %p347
      %p523 = pneg %p344
      %p524 = pneg %p368
      %p525 = pneg %p365
      %p526 = pneg %p394
      %p527 = pneg %p391
      %s528 = smul.u32 8, %s27
      %p529 = scmp.lt.s32.totalorder %s528, 31
      %s530 = scalar_select %p529, %s528, 31
      %s531 = smul.addr %s530, 2
      %s532 = smul.addr %s531, 8
      %s533 = scalar_lea.vmem %s16, %s532
      %s534 = smul.u32 8, %s27
      %p535 = scmp.lt.s32.totalorder %s534, 31
      %s536 = scalar_select %p535, %s534, 31
      %s537 = smul.addr %s536, 2
      %s538 = smul.addr %s537, 8
      %s539 = scalar_lea.vmem %s0, %s538
      %s540 = smul.u32 8, %s27
      %s541 = smul.u32 8, %s27
      %p542 = scmp.lt.s32.totalorder %s541, 31
      %s543 = scalar_select %p542, %s541, 31
      %s544 = smul.addr %s543, 2
      %s545 = smul.addr %s544, 8
      %s546 = scalar_lea.vmem %s1, %s545
      %s547 = smul.u32 8, %s27
      %s548 = smul.u32 8, %s27
      %p549 = scmp.lt.s32.totalorder %s548, 31
      %s550 = scalar_select %p549, %s548, 31
      %s551 = smul.addr %s550, 2
      %s552 = smul.addr %s551, 8
      %s553 = scalar_lea.vmem %s16, %s552
      %s554 = smul.u32 8, %s27
      %v555 = vld [vmem:[%s539] sm:$0xff]
      %v556 = vld [vmem:[%s539 + $0x8] sm:$0xff]
      %v557 = vld [vmem:[%s539 + $0x10] sm:$0xff]
      %v558 = vld [vmem:[%s539 + $0x18] sm:$0xff]
      %v559 = vld [vmem:[%s539 + $0x20] sm:$0xff]
      %v560 = vld [vmem:[%s539 + $0x28] sm:$0xff]
      %v561 = vld [vmem:[%s539 + $0x30] sm:$0xff]
      %v562 = vld [vmem:[%s539 + $0x38] sm:$0xff]
      %v563 = vld [vmem:[%s539 + $0x40] sm:$0xff]
      %v564 = vld [vmem:[%s539 + $0x48] sm:$0xff]
      %v565 = vld [vmem:[%s539 + $0x50] sm:$0xff]
      %v566 = vld [vmem:[%s539 + $0x58] sm:$0xff]
      %v567 = vld [vmem:[%s539 + $0x60] sm:$0xff]
      %v568 = vld [vmem:[%s539 + $0x68] sm:$0xff]
      %v569 = vld [vmem:[%s539 + $0x70] sm:$0xff]
      %v570 = vld [vmem:[%s539 + $0x78] sm:$0xff]
      %v571 = vld [vmem:[%s546] sm:$0xff]
      %v572 = vld [vmem:[%s546 + $0x8] sm:$0xff]
      %v573 = vld [vmem:[%s546 + $0x10] sm:$0xff]
      %v574 = vld [vmem:[%s546 + $0x18] sm:$0xff]
      %v575 = vld [vmem:[%s546 + $0x20] sm:$0xff]
      %v576 = vld [vmem:[%s546 + $0x28] sm:$0xff]
      %v577 = vld [vmem:[%s546 + $0x30] sm:$0xff]
      %v578 = vld [vmem:[%s546 + $0x38] sm:$0xff]
      %v579 = vld [vmem:[%s546 + $0x40] sm:$0xff]
      %v580 = vld [vmem:[%s546 + $0x48] sm:$0xff]
      %v581 = vld [vmem:[%s546 + $0x50] sm:$0xff]
      %v582 = vld [vmem:[%s546 + $0x58] sm:$0xff]
      %v583 = vld [vmem:[%s546 + $0x60] sm:$0xff]
      %v584 = vld [vmem:[%s546 + $0x68] sm:$0xff]
      %v585 = vld [vmem:[%s546 + $0x70] sm:$0xff]
      %v586 = vld [vmem:[%s546 + $0x78] sm:$0xff]
      %v587 = vadd.f32 %v555, %v571
      %v588 = vadd.f32 %v556, %v572
      %v589 = vadd.f32 %v557, %v573
      %v590 = vadd.f32 %v558, %v574
      %v591 = vadd.f32 %v559, %v575
      %v592 = vadd.f32 %v560, %v576
      %v593 = vadd.f32 %v561, %v577
      %v594 = vadd.f32 %v562, %v578
      %v595 = vadd.f32 %v563, %v579
      %v596 = vadd.f32 %v564, %v580
      %v597 = vadd.f32 %v565, %v581
      %v598 = vadd.f32 %v566, %v582
      %v599 = vadd.f32 %v567, %v583
      %v600 = vadd.f32 %v568, %v584
      %v601 = vadd.f32 %v569, %v585
      %v602 = vadd.f32 %v570, %v586
      %v603 = vld [vmem:[%s2] sm:$0xff]
      %v604 = vld [vmem:[%s2 + $0x8] sm:$0xff]
      %v605 = vld [vmem:[%s2 + $0x10] sm:$0xff]
      %v606 = vld [vmem:[%s2 + $0x18] sm:$0xff]
      %v607 = vld [vmem:[%s3] sm:$0x1]
      %v609 = vlaneseq
      %v610 = vshrl.u32 %v609, 7
      %v611 = vsub.s32 0, %v610
      %v612 = vrot.slane %v607, %v611
      %vm614 = vcmask 261120
      %v616 = vsel %vm614, %v587, 0
      %v619 = vsel %vm614, %v588, 0
      %v622 = vsel %vm614, %v589, 0
      %v625 = vsel %vm614, %v590, 0
      %v628 = vsel %vm614, %v591, 0
      %v631 = vsel %vm614, %v592, 0
      %v634 = vsel %vm614, %v593, 0
      %v637 = vsel %vm614, %v594, 0
      %v640 = vsel %vm614, %v595, 0
      %v643 = vsel %vm614, %v596, 0
      %v646 = vsel %vm614, %v597, 0
      %v649 = vsel %vm614, %v598, 0
      %v652 = vsel %vm614, %v599, 0
      %v655 = vsel %vm614, %v600, 0
      %v658 = vsel %vm614, %v601, 0
      %v661 = vsel %vm614, %v602, 0
      %663 = vmatprep.subr.mxu0 0.0
      %664 = vmatpush1.msra.mxu0 %v603
      %665 = vmatprep.subr.mxu0 0.0
      %666 = vmatpush1.msra.mxu0 %v604
      %667 = vmatprep.subr.mxu0 0.0
      %668 = vmatpush1.msra.mxu0 %v605
      %669 = vmatprep.subr.mxu0 0.0
      %670 = vmatpush1.msra.mxu0 %v606
      %671 = vmatprep.subr.mxu0 0.0
      %672 = vmatpush1.msra.mxu0 0.0
      %673 = vmatprep.subr.mxu0 0.0
      %674 = vmatpush1.msra.mxu0 0.0
      %675 = vmatprep.subr.mxu0 0.0
      %676 = vmatpush1.msra.mxu0 0.0
      %677 = vmatprep.subr.mxu0 0.0
      %678 = vmatpush1.msra.mxu0 0.0
      %679 = vmatprep.subr.mxu0 0.0
      %680 = vmatpush1.msra.mxu0 0.0
      %681 = vmatprep.subr.mxu0 0.0
      %682 = vmatpush1.msra.mxu0 0.0
      %683 = vmatprep.subr.mxu0 0.0
      %684 = vmatpush1.msra.mxu0 0.0
      %685 = vmatprep.subr.mxu0 0.0
      %686 = vmatpush1.msra.mxu0 0.0
      %687 = vmatprep.subr.mxu0 0.0
      %688 = vmatpush1.msra.mxu0 0.0
      %689 = vmatprep.subr.mxu0 0.0
      %690 = vmatpush1.msra.mxu0 0.0
      %691 = vmatprep.subr.mxu0 0.0
      %692 = vmatpush1.msra.mxu0 0.0
      %693 = vmatprep.subr.mxu0 0.0
      %694 = vmatpush1.msra.mxu0 0.0
      %695 = vmatprep.subr.mxu0 0.0
      %696 = vmatpush1.msra.mxu0 0.0
      %697 = vmatprep.subr.mxu0 0.0
      %698 = vmatpush1.msra.mxu0 0.0
      %699 = vmatprep.subr.mxu0 0.0
      %700 = vmatpush1.msra.mxu0 0.0
      %701 = vmatprep.subr.mxu0 0.0
      %702 = vmatpush1.msra.mxu0 0.0
      %703 = vmatprep.subr.mxu0 0.0
      %704 = vmatpush1.msra.mxu0 0.0
      %705 = vmatprep.subr.mxu0 0.0
      %706 = vmatpush1.msra.mxu0 0.0
      %707 = vmatprep.subr.mxu0 0.0
      %708 = vmatpush1.msra.mxu0 0.0
      %709 = vmatprep.subr.mxu0 0.0
      %710 = vmatpush1.msra.mxu0 0.0
      %711 = vmatprep.subr.mxu0 0.0
      %712 = vmatpush1.msra.mxu0 0.0
      %713 = vmatprep.subr.mxu0 0.0
      %714 = vmatpush1.msra.mxu0 0.0
      %715 = vmatprep.subr.mxu0 0.0
      %716 = vmatpush1.msra.mxu0 0.0
      %717 = vmatprep.subr.mxu0 0.0
      %718 = vmatpush1.msra.mxu0 0.0
      %719 = vmatprep.subr.mxu0 0.0
      %720 = vmatpush1.msra.mxu0 0.0
      %721 = vmatprep.subr.mxu0 0.0
      %722 = vmatpush1.msra.mxu0 0.0
      %723 = vmatprep.subr.mxu0 0.0
      %724 = vmatpush1.msra.mxu0 0.0
      %725 = vmatprep.subr.mxu0 0.0
      %726 = vmatpush1.msra.mxu0 0.0
      %727 = vmatprep.mubr.f32.mxu0 0.0
      %728 = vmatmul.mubr.f32.gmra.mrb[0].mxu0 %v616
      %v729 = vpop.f32.mrb[0].mxu0
      %v730 = vadd.f32 %v612, %v729
      %v731 = vpop.f32.mrb[0].mxu0
      %732 = vmatprep.mubr.f32.mxu0 0.0
      %733 = vmatmul.mubr.f32.gmra.mrb[0].mxu0 %v619
      %v734 = vpop.f32.mrb[0].mxu0
      %v735 = vadd.f32 %v612, %v734
      %v736 = vpop.f32.mrb[0].mxu0
      %737 = vmatprep.mubr.f32.mxu0 0.0
      %738 = vmatmul.mubr.f32.gmra.mrb[0].mxu0 %v622
      %v739 = vpop.f32.mrb[0].mxu0
      %v740 = vadd.f32 %v612, %v739
      %v741 = vpop.f32.mrb[0].mxu0
      %742 = vmatprep.mubr.f32.mxu0 0.0
      %743 = vmatmul.mubr.f32.gmra.mrb[0].mxu0 %v625
      %v744 = vpop.f32.mrb[0].mxu0
      %v745 = vadd.f32 %v612, %v744
      %v746 = vpop.f32.mrb[0].mxu0
      %747 = vmatprep.mubr.f32.mxu0 0.0
      %748 = vmatmul.mubr.f32.gmra.mrb[0].mxu0 %v628
      %v749 = vpop.f32.mrb[0].mxu0
      %v750 = vadd.f32 %v612, %v749
      %v751 = vpop.f32.mrb[0].mxu0
      %752 = vmatprep.mubr.f32.mxu0 0.0
      %753 = vmatmul.mubr.f32.gmra.mrb[0].mxu0 %v631
      %v754 = vpop.f32.mrb[0].mxu0
      %v755 = vadd.f32 %v612, %v754
      %v756 = vpop.f32.mrb[0].mxu0
      %757 = vmatprep.mubr.f32.mxu0 0.0
      %758 = vmatmul.mubr.f32.gmra.mrb[0].mxu0 %v634
      %v759 = vpop.f32.mrb[0].mxu0
      %v760 = vadd.f32 %v612, %v759
      %v761 = vpop.f32.mrb[0].mxu0
      %762 = vmatprep.mubr.f32.mxu0 0.0
      %763 = vmatmul.mubr.f32.gmra.mrb[0].mxu0 %v637
      %v764 = vpop.f32.mrb[0].mxu0
      %v765 = vadd.f32 %v612, %v764
      %v766 = vpop.f32.mrb[0].mxu0
      %767 = vmatprep.mubr.f32.mxu0 0.0
      %768 = vmatmul.mubr.f32.gmra.mrb[0].mxu0 %v640
      %v769 = vpop.f32.mrb[0].mxu0
      %v770 = vadd.f32 %v612, %v769
      %v771 = vpop.f32.mrb[0].mxu0
      %772 = vmatprep.mubr.f32.mxu0 0.0
      %773 = vmatmul.mubr.f32.gmra.mrb[0].mxu0 %v643
      %v774 = vpop.f32.mrb[0].mxu0
      %v775 = vadd.f32 %v612, %v774
      %v776 = vpop.f32.mrb[0].mxu0
      %777 = vmatprep.mubr.f32.mxu0 0.0
      %778 = vmatmul.mubr.f32.gmra.mrb[0].mxu0 %v646
      %v779 = vpop.f32.mrb[0].mxu0
      %v780 = vadd.f32 %v612, %v779
      %v781 = vpop.f32.mrb[0].mxu0
      %782 = vmatprep.mubr.f32.mxu0 0.0
      %783 = vmatmul.mubr.f32.gmra.mrb[0].mxu0 %v649
      %v784 = vpop.f32.mrb[0].mxu0
      %v785 = vadd.f32 %v612, %v784
      %v786 = vpop.f32.mrb[0].mxu0
      %787 = vmatprep.mubr.f32.mxu0 0.0
      %788 = vmatmul.mubr.f32.gmra.mrb[0].mxu0 %v652
      %v789 = vpop.f32.mrb[0].mxu0
      %v790 = vadd.f32 %v612, %v789
      %v791 = vpop.f32.mrb[0].mxu0
      %792 = vmatprep.mubr.f32.mxu0 0.0
      %793 = vmatmul.mubr.f32.gmra.mrb[0].mxu0 %v655
      %v794 = vpop.f32.mrb[0].mxu0
      %v795 = vadd.f32 %v612, %v794
      %v796 = vpop.f32.mrb[0].mxu0
      %797 = vmatprep.mubr.f32.mxu0 0.0
      %798 = vmatmul.mubr.f32.gmra.mrb[0].mxu0 %v658
      %v799 = vpop.f32.mrb[0].mxu0
      %v800 = vadd.f32 %v612, %v799
      %v801 = vpop.f32.mrb[0].mxu0
      %802 = vmatprep.mubr.f32.mxu0 0.0
      %803 = vmatmul.mubr.f32.gmra.mrb[0].mxu0 %v661
      %v804 = vpop.f32.mrb[0].mxu0
      %v805 = vadd.f32 %v612, %v804
      %v806 = vpop.f32.mrb[0].mxu0
      %807 = vdwg.mxu0
      %v808 = vld [vmem:[%s4] sm:$0xff]
      %v809 = vld [vmem:[%s4 + $0x8] sm:$0xff]
      %v810 = vld [vmem:[%s4 + $0x10] sm:$0xff]
      %v811 = vld [vmem:[%s4 + $0x18] sm:$0xff]
      %v812 = vld [vmem:[%s5] sm:$0x1]
      %v814 = vlaneseq
      %v815 = vshrl.u32 %v814, 7
      %v816 = vsub.s32 0, %v815
      %v817 = vrot.slane %v812, %v816
      %v820 = vsel %vm614, %v555, 0
      %v823 = vsel %vm614, %v556, 0
      %v826 = vsel %vm614, %v557, 0
      %v829 = vsel %vm614, %v558, 0
      %v832 = vsel %vm614, %v559, 0
      %v835 = vsel %vm614, %v560, 0
      %v838 = vsel %vm614, %v561, 0
      %v841 = vsel %vm614, %v562, 0
      %v844 = vsel %vm614, %v563, 0
      %v847 = vsel %vm614, %v564, 0
      %v850 = vsel %vm614, %v565, 0
      %v853 = vsel %vm614, %v566, 0
      %v856 = vsel %vm614, %v567, 0
      %v859 = vsel %vm614, %v568, 0
      %v862 = vsel %vm614, %v569, 0
      %v865 = vsel %vm614, %v570, 0
      %867 = vmatprep.subr.mxu0 0.0
      %868 = vmatpush1.msra.mxu0 %v808
      %869 = vmatprep.subr.mxu0 0.0
      %870 = vmatpush1.msra.mxu0 %v809
      %871 = vmatprep.subr.mxu0 0.0
      %872 = vmatpush1.msra.mxu0 %v810
      %873 = vmatprep.subr.mxu0 0.0
      %874 = vmatpush1.msra.mxu0 %v811
      %875 = vmatprep.subr.mxu0 0.0
      %876 = vmatpush1.msra.mxu0 0.0
      %877 = vmatprep.subr.mxu0 0.0
      %878 = vmatpush1.msra.mxu0 0.0
      %879 = vmatprep.subr.mxu0 0.0
      %880 = vmatpush1.msra.mxu0 0.0
      %881 = vmatprep.subr.mxu0 0.0
      %882 = vmatpush1.msra.mxu0 0.0
      %883 = vmatprep.subr.mxu0 0.0
      %884 = vmatpush1.msra.mxu0 0.0
      %885 = vmatprep.subr.mxu0 0.0
      %886 = vmatpush1.msra.mxu0 0.0
      %887 = vmatprep.subr.mxu0 0.0
      %888 = vmatpush1.msra.mxu0 0.0
      %889 = vmatprep.subr.mxu0 0.0
      %890 = vmatpush1.msra.mxu0 0.0
      %891 = vmatprep.subr.mxu0 0.0
      %892 = vmatpush1.msra.mxu0 0.0
      %893 = vmatprep.subr.mxu0 0.0
      %894 = vmatpush1.msra.mxu0 0.0
      %895 = vmatprep.subr.mxu0 0.0
      %896 = vmatpush1.msra.mxu0 0.0
      %897 = vmatprep.subr.mxu0 0.0
      %898 = vmatpush1.msra.mxu0 0.0
      %899 = vmatprep.subr.mxu0 0.0
      %900 = vmatpush1.msra.mxu0 0.0
      %901 = vmatprep.subr.mxu0 0.0
      %902 = vmatpush1.msra.mxu0 0.0
      %903 = vmatprep.subr.mxu0 0.0
      %904 = vmatpush1.msra.mxu0 0.0
      %905 = vmatprep.subr.mxu0 0.0
      %906 = vmatpush1.msra.mxu0 0.0
      %907 = vmatprep.subr.mxu0 0.0
      %908 = vmatpush1.msra.mxu0 0.0
      %909 = vmatprep.subr.mxu0 0.0
      %910 = vmatpush1.msra.mxu0 0.0
      %911 = vmatprep.subr.mxu0 0.0
      %912 = vmatpush1.msra.mxu0 0.0
      %913 = vmatprep.subr.mxu0 0.0
      %914 = vmatpush1.msra.mxu0 0.0
      %915 = vmatprep.subr.mxu0 0.0
      %916 = vmatpush1.msra.mxu0 0.0
      %917 = vmatprep.subr.mxu0 0.0
      %918 = vmatpush1.msra.mxu0 0.0
      %919 = vmatprep.subr.mxu0 0.0
      %920 = vmatpush1.msra.mxu0 0.0
      %921 = vmatprep.subr.mxu0 0.0
      %922 = vmatpush1.msra.mxu0 0.0
      %923 = vmatprep.subr.mxu0 0.0
      %924 = vmatpush1.msra.mxu0 0.0
      %925 = vmatprep.subr.mxu0 0.0
      %926 = vmatpush1.msra.mxu0 0.0
      %927 = vmatprep.subr.mxu0 0.0
      %928 = vmatpush1.msra.mxu0 0.0
      %929 = vmatprep.subr.mxu0 0.0
      %930 = vmatpush1.msra.mxu0 0.0
      %931 = vmatprep.mubr.f32.mxu0 0.0
      %932 = vmatmul.mubr.f32.gmra.mrb[0].mxu0 %v820
      %v933 = vpop.f32.mrb[0].mxu0
      %v934 = vadd.f32 %v817, %v933
      %v935 = vpop.f32.mrb[0].mxu0
      %936 = vmatprep.mubr.f32.mxu0 0.0
      %937 = vmatmul.mubr.f32.gmra.mrb[0].mxu0 %v823
      %v938 = vpop.f32.mrb[0].mxu0
      %v939 = vadd.f32 %v817, %v938
      %v940 = vpop.f32.mrb[0].mxu0
      %941 = vmatprep.mubr.f32.mxu0 0.0
      %942 = vmatmul.mubr.f32.gmra.mrb[0].mxu0 %v826
      %v943 = vpop.f32.mrb[0].mxu0
      %v944 = vadd.f32 %v817, %v943
      %v945 = vpop.f32.mrb[0].mxu0
      %946 = vmatprep.mubr.f32.mxu0 0.0
      %947 = vmatmul.mubr.f32.gmra.mrb[0].mxu0 %v829
      %v948 = vpop.f32.mrb[0].mxu0
      %v949 = vadd.f32 %v817, %v948
      %v950 = vpop.f32.mrb[0].mxu0
      %951 = vmatprep.mubr.f32.mxu0 0.0
      %952 = vmatmul.mubr.f32.gmra.mrb[0].mxu0 %v832
      %v953 = vpop.f32.mrb[0].mxu0
      %v954 = vadd.f32 %v817, %v953
      %v955 = vpop.f32.mrb[0].mxu0
      %956 = vmatprep.mubr.f32.mxu0 0.0
      %957 = vmatmul.mubr.f32.gmra.mrb[0].mxu0 %v835
      %v958 = vpop.f32.mrb[0].mxu0
      %v959 = vadd.f32 %v817, %v958
      %v960 = vpop.f32.mrb[0].mxu0
      %961 = vmatprep.mubr.f32.mxu0 0.0
      %962 = vmatmul.mubr.f32.gmra.mrb[0].mxu0 %v838
      %v963 = vpop.f32.mrb[0].mxu0
      %v964 = vadd.f32 %v817, %v963
      %v965 = vpop.f32.mrb[0].mxu0
      %966 = vmatprep.mubr.f32.mxu0 0.0
      %967 = vmatmul.mubr.f32.gmra.mrb[0].mxu0 %v841
      %v968 = vpop.f32.mrb[0].mxu0
      %v969 = vadd.f32 %v817, %v968
      %v970 = vpop.f32.mrb[0].mxu0
      %971 = vmatprep.mubr.f32.mxu0 0.0
      %972 = vmatmul.mubr.f32.gmra.mrb[0].mxu0 %v844
      %v973 = vpop.f32.mrb[0].mxu0
      %v974 = vadd.f32 %v817, %v973
      %v975 = vpop.f32.mrb[0].mxu0
      %976 = vmatprep.mubr.f32.mxu0 0.0
      %977 = vmatmul.mubr.f32.gmra.mrb[0].mxu0 %v847
      %v978 = vpop.f32.mrb[0].mxu0
      %v979 = vadd.f32 %v817, %v978
      %v980 = vpop.f32.mrb[0].mxu0
      %981 = vmatprep.mubr.f32.mxu0 0.0
      %982 = vmatmul.mubr.f32.gmra.mrb[0].mxu0 %v850
      %v983 = vpop.f32.mrb[0].mxu0
      %v984 = vadd.f32 %v817, %v983
      %v985 = vpop.f32.mrb[0].mxu0
      %986 = vmatprep.mubr.f32.mxu0 0.0
      %987 = vmatmul.mubr.f32.gmra.mrb[0].mxu0 %v853
      %v988 = vpop.f32.mrb[0].mxu0
      %v989 = vadd.f32 %v817, %v988
      %v990 = vpop.f32.mrb[0].mxu0
      %991 = vmatprep.mubr.f32.mxu0 0.0
      %992 = vmatmul.mubr.f32.gmra.mrb[0].mxu0 %v856
      %v993 = vpop.f32.mrb[0].mxu0
      %v994 = vadd.f32 %v817, %v993
      %v995 = vpop.f32.mrb[0].mxu0
      %996 = vmatprep.mubr.f32.mxu0 0.0
      %997 = vmatmul.mubr.f32.gmra.mrb[0].mxu0 %v859
      %v998 = vpop.f32.mrb[0].mxu0
      %v999 = vadd.f32 %v817, %v998
      %v1000 = vpop.f32.mrb[0].mxu0
      %1001 = vmatprep.mubr.f32.mxu0 0.0
      %1002 = vmatmul.mubr.f32.gmra.mrb[0].mxu0 %v862
      %v1003 = vpop.f32.mrb[0].mxu0
      %v1004 = vadd.f32 %v817, %v1003
      %v1005 = vpop.f32.mrb[0].mxu0
      %1006 = vmatprep.mubr.f32.mxu0 0.0
      %1007 = vmatmul.mubr.f32.gmra.mrb[0].mxu0 %v865
      %v1008 = vpop.f32.mrb[0].mxu0
      %v1009 = vadd.f32 %v817, %v1008
      %v1010 = vpop.f32.mrb[0].mxu0
      %1011 = vdwg.mxu0
      %1014 = vrot.lane.b32.xlu0 %v730, 96
      %v1015 = vpop.permute.xlu0 %1014
      %1016 = vrot.lane.b32.xlu0 %v735, 96
      %v1017 = vpop.permute.xlu0 %1016
      %vm1018 = vcmask 130048
      %v1019 = vsel %vm1018, %v730, 0
      %v1021 = vsel %vm1018, %v735, 0
      %v1023 = vsel %vm1018, %v1015, 0
      %v1025 = vsel %vm1018, %v1017, 0
      %1027 = vmatprep.subr.mxu0 0.0
      %1028 = vmatpush1.xpose.msra.mxu0 %v1023
      %1029 = vmatprep.subr.mxu0 0.0
      %1030 = vmatpush1.xpose.msra.mxu0 %v1025
      %1031 = vmatprep.subr.mxu0 0.0
      %1032 = vmatpush1.xpose.msra.mxu0 0.0
      %1033 = vmatprep.subr.mxu0 0.0
      %1034 = vmatpush1.xpose.msra.mxu0 0.0
      %1035 = vmatprep.subr.mxu0 0.0
      %1036 = vmatpush1.xpose.msra.mxu0 0.0
      %1037 = vmatprep.subr.mxu0 0.0
      %1038 = vmatpush1.xpose.msra.mxu0 0.0
      %1039 = vmatprep.subr.mxu0 0.0
      %1040 = vmatpush1.xpose.msra.mxu0 0.0
      %1041 = vmatprep.subr.mxu0 0.0
      %1042 = vmatpush1.xpose.msra.mxu0 0.0
      %1043 = vmatprep.subr.mxu0 0.0
      %1044 = vmatpush1.xpose.msra.mxu0 0.0
      %1045 = vmatprep.subr.mxu0 0.0
      %1046 = vmatpush1.xpose.msra.mxu0 0.0
      %1047 = vmatprep.subr.mxu0 0.0
      %1048 = vmatpush1.xpose.msra.mxu0 0.0
      %1049 = vmatprep.subr.mxu0 0.0
      %1050 = vmatpush1.xpose.msra.mxu0 0.0
      %1051 = vmatprep.subr.mxu0 0.0
      %1052 = vmatpush1.xpose.msra.mxu0 0.0
      %1053 = vmatprep.subr.mxu0 0.0
      %1054 = vmatpush1.xpose.msra.mxu0 0.0
      %1055 = vmatprep.subr.mxu0 0.0
      %1056 = vmatpush1.xpose.msra.mxu0 0.0
      %1057 = vmatprep.subr.mxu0 0.0
      %1058 = vmatpush1.xpose.msra.mxu0 0.0
      %1059 = vmatprep.subr.mxu0 0.0
      %1060 = vmatpush1.xpose.msra.mxu0 0.0
      %1061 = vmatprep.subr.mxu0 0.0
      %1062 = vmatpush1.xpose.msra.mxu0 0.0
      %1063 = vmatprep.subr.mxu0 0.0
      %1064 = vmatpush1.xpose.msra.mxu0 0.0
      %1065 = vmatprep.subr.mxu0 0.0
      %1066 = vmatpush1.xpose.msra.mxu0 0.0
      %1067 = vmatprep.subr.mxu0 0.0
      %1068 = vmatpush1.xpose.msra.mxu0 0.0
      %1069 = vmatprep.subr.mxu0 0.0
      %1070 = vmatpush1.xpose.msra.mxu0 0.0
      %1071 = vmatprep.subr.mxu0 0.0
      %1072 = vmatpush1.xpose.msra.mxu0 0.0
      %1073 = vmatprep.subr.mxu0 0.0
      %1074 = vmatpush1.xpose.msra.mxu0 0.0
      %1075 = vmatprep.subr.mxu0 0.0
      %1076 = vmatpush1.xpose.msra.mxu0 0.0
      %1077 = vmatprep.subr.mxu0 0.0
      %1078 = vmatpush1.xpose.msra.mxu0 0.0
      %1079 = vmatprep.subr.mxu0 0.0
      %1080 = vmatpush1.xpose.msra.mxu0 0.0
      %1081 = vmatprep.subr.mxu0 0.0
      %1082 = vmatpush1.xpose.msra.mxu0 0.0
      %1083 = vmatprep.subr.mxu0 0.0
      %1084 = vmatpush1.xpose.msra.mxu0 0.0
      %1085 = vmatprep.subr.mxu0 0.0
      %1086 = vmatpush1.xpose.msra.mxu0 0.0
      %1087 = vmatprep.subr.mxu0 0.0
      %1088 = vmatpush1.xpose.msra.mxu0 0.0
      %1089 = vmatprep.subr.mxu0 0.0
      %1090 = vmatpush1.xpose.msra.mxu0 0.0
      %1091 = vmatprep.mubr.f32.mxu0 0.0
      %1092 = vmatmul.mubr.f32.gmra.mrb[0].mxu0 %v1019
      %v1093 = vpop.f32.mrb[0].mxu0
      %v1094 = vadd.f32 0.0, %v1093
      %v1095 = vpop.f32.mrb[0].mxu0
      %1096 = vmatprep.mubr.f32.mxu0 0.0
      %1097 = vmatmul.mubr.f32.gmra.mrb[0].mxu0 %v1021
      %v1098 = vpop.f32.mrb[0].mxu0
      %v1099 = vadd.f32 0.0, %v1098
      %v1100 = vpop.f32.mrb[0].mxu0
      %1101 = vdwg.mxu0
      %1104 = vrot.lane.b32.xlu0 %v740, 96
      %v1105 = vpop.permute.xlu0 %1104
      %1106 = vrot.lane.b32.xlu0 %v745, 96
      %v1107 = vpop.permute.xlu0 %1106
      %v1108 = vsel %vm1018, %v740, 0
      %v1110 = vsel %vm1018, %v745, 0
      %v1112 = vsel %vm1018, %v1105, 0
      %v1114 = vsel %vm1018, %v1107, 0
      %1116 = vmatprep.subr.mxu0 0.0
      %1117 = vmatpush1.xpose.msra.mxu0 %v1112
      %1118 = vmatprep.subr.mxu0 0.0
      %1119 = vmatpush1.xpose.msra.mxu0 %v1114
      %1120 = vmatprep.subr.mxu0 0.0
      %1121 = vmatpush1.xpose.msra.mxu0 0.0
      %1122 = vmatprep.subr.mxu0 0.0
      %1123 = vmatpush1.xpose.msra.mxu0 0.0
      %1124 = vmatprep.subr.mxu0 0.0
      %1125 = vmatpush1.xpose.msra.mxu0 0.0
      %1126 = vmatprep.subr.mxu0 0.0
      %1127 = vmatpush1.xpose.msra.mxu0 0.0
      %1128 = vmatprep.subr.mxu0 0.0
      %1129 = vmatpush1.xpose.msra.mxu0 0.0
      %1130 = vmatprep.subr.mxu0 0.0
      %1131 = vmatpush1.xpose.msra.mxu0 0.0
      %1132 = vmatprep.subr.mxu0 0.0
      %1133 = vmatpush1.xpose.msra.mxu0 0.0
      %1134 = vmatprep.subr.mxu0 0.0
      %1135 = vmatpush1.xpose.msra.mxu0 0.0
      %1136 = vmatprep.subr.mxu0 0.0
      %1137 = vmatpush1.xpose.msra.mxu0 0.0
      %1138 = vmatprep.subr.mxu0 0.0
      %1139 = vmatpush1.xpose.msra.mxu0 0.0
      %1140 = vmatprep.subr.mxu0 0.0
      %1141 = vmatpush1.xpose.msra.mxu0 0.0
      %1142 = vmatprep.subr.mxu0 0.0
      %1143 = vmatpush1.xpose.msra.mxu0 0.0
      %1144 = vmatprep.subr.mxu0 0.0
      %1145 = vmatpush1.xpose.msra.mxu0 0.0
      %1146 = vmatprep.subr.mxu0 0.0
      %1147 = vmatpush1.xpose.msra.mxu0 0.0
      %1148 = vmatprep.subr.mxu0 0.0
      %1149 = vmatpush1.xpose.msra.mxu0 0.0
      %1150 = vmatprep.subr.mxu0 0.0
      %1151 = vmatpush1.xpose.msra.mxu0 0.0
      %1152 = vmatprep.subr.mxu0 0.0
      %1153 = vmatpush1.xpose.msra.mxu0 0.0
      %1154 = vmatprep.subr.mxu0 0.0
      %1155 = vmatpush1.xpose.msra.mxu0 0.0
      %1156 = vmatprep.subr.mxu0 0.0
      %1157 = vmatpush1.xpose.msra.mxu0 0.0
      %1158 = vmatprep.subr.mxu0 0.0
      %1159 = vmatpush1.xpose.msra.mxu0 0.0
      %1160 = vmatprep.subr.mxu0 0.0
      %1161 = vmatpush1.xpose.msra.mxu0 0.0
      %1162 = vmatprep.subr.mxu0 0.0
      %1163 = vmatpush1.xpose.msra.mxu0 0.0
      %1164 = vmatprep.subr.mxu0 0.0
      %1165 = vmatpush1.xpose.msra.mxu0 0.0
      %1166 = vmatprep.subr.mxu0 0.0
      %1167 = vmatpush1.xpose.msra.mxu0 0.0
      %1168 = vmatprep.subr.mxu0 0.0
      %1169 = vmatpush1.xpose.msra.mxu0 0.0
      %1170 = vmatprep.subr.mxu0 0.0
      %1171 = vmatpush1.xpose.msra.mxu0 0.0
      %1172 = vmatprep.subr.mxu0 0.0
      %1173 = vmatpush1.xpose.msra.mxu0 0.0
      %1174 = vmatprep.subr.mxu0 0.0
      %1175 = vmatpush1.xpose.msra.mxu0 0.0
      %1176 = vmatprep.subr.mxu0 0.0
      %1177 = vmatpush1.xpose.msra.mxu0 0.0
      %1178 = vmatprep.subr.mxu0 0.0
      %1179 = vmatpush1.xpose.msra.mxu0 0.0
      %1180 = vmatprep.mubr.f32.mxu0 0.0
      %1181 = vmatmul.mubr.f32.gmra.mrb[0].mxu0 %v1108
      %v1182 = vpop.f32.mrb[0].mxu0
      %v1183 = vadd.f32 0.0, %v1182
      %v1184 = vpop.f32.mrb[0].mxu0
      %1185 = vmatprep.mubr.f32.mxu0 0.0
      %1186 = vmatmul.mubr.f32.gmra.mrb[0].mxu0 %v1110
      %v1187 = vpop.f32.mrb[0].mxu0
      %v1188 = vadd.f32 0.0, %v1187
      %v1189 = vpop.f32.mrb[0].mxu0
      %1190 = vdwg.mxu0
      %1193 = vrot.lane.b32.xlu0 %v750, 96
      %v1194 = vpop.permute.xlu0 %1193
      %1195 = vrot.lane.b32.xlu0 %v755, 96
      %v1196 = vpop.permute.xlu0 %1195
      %v1197 = vsel %vm1018, %v750, 0
      %v1199 = vsel %vm1018, %v755, 0
      %v1201 = vsel %vm1018, %v1194, 0
      %v1203 = vsel %vm1018, %v1196, 0
      %1205 = vmatprep.subr.mxu0 0.0
      %1206 = vmatpush1.xpose.msra.mxu0 %v1201
      %1207 = vmatprep.subr.mxu0 0.0
      %1208 = vmatpush1.xpose.msra.mxu0 %v1203
      %1209 = vmatprep.subr.mxu0 0.0
      %1210 = vmatpush1.xpose.msra.mxu0 0.0
      %1211 = vmatprep.subr.mxu0 0.0
      %1212 = vmatpush1.xpose.msra.mxu0 0.0
      %1213 = vmatprep.subr.mxu0 0.0
      %1214 = vmatpush1.xpose.msra.mxu0 0.0
      %1215 = vmatprep.subr.mxu0 0.0
      %1216 = vmatpush1.xpose.msra.mxu0 0.0
      %1217 = vmatprep.subr.mxu0 0.0
      %1218 = vmatpush1.xpose.msra.mxu0 0.0
      %1219 = vmatprep.subr.mxu0 0.0
      %1220 = vmatpush1.xpose.msra.mxu0 0.0
      %1221 = vmatprep.subr.mxu0 0.0
      %1222 = vmatpush1.xpose.msra.mxu0 0.0
      %1223 = vmatprep.subr.mxu0 0.0
      %1224 = vmatpush1.xpose.msra.mxu0 0.0
      %1225 = vmatprep.subr.mxu0 0.0
      %1226 = vmatpush1.xpose.msra.mxu0 0.0
      %1227 = vmatprep.subr.mxu0 0.0
      %1228 = vmatpush1.xpose.msra.mxu0 0.0
      %1229 = vmatprep.subr.mxu0 0.0
      %1230 = vmatpush1.xpose.msra.mxu0 0.0
      %1231 = vmatprep.subr.mxu0 0.0
      %1232 = vmatpush1.xpose.msra.mxu0 0.0
      %1233 = vmatprep.subr.mxu0 0.0
      %1234 = vmatpush1.xpose.msra.mxu0 0.0
      %1235 = vmatprep.subr.mxu0 0.0
      %1236 = vmatpush1.xpose.msra.mxu0 0.0
      %1237 = vmatprep.subr.mxu0 0.0
      %1238 = vmatpush1.xpose.msra.mxu0 0.0
      %1239 = vmatprep.subr.mxu0 0.0
      %1240 = vmatpush1.xpose.msra.mxu0 0.0
      %1241 = vmatprep.subr.mxu0 0.0
      %1242 = vmatpush1.xpose.msra.mxu0 0.0
      %1243 = vmatprep.subr.mxu0 0.0
      %1244 = vmatpush1.xpose.msra.mxu0 0.0
      %1245 = vmatprep.subr.mxu0 0.0
      %1246 = vmatpush1.xpose.msra.mxu0 0.0
      %1247 = vmatprep.subr.mxu0 0.0
      %1248 = vmatpush1.xpose.msra.mxu0 0.0
      %1249 = vmatprep.subr.mxu0 0.0
      %1250 = vmatpush1.xpose.msra.mxu0 0.0
      %1251 = vmatprep.subr.mxu0 0.0
      %1252 = vmatpush1.xpose.msra.mxu0 0.0
      %1253 = vmatprep.subr.mxu0 0.0
      %1254 = vmatpush1.xpose.msra.mxu0 0.0
      %1255 = vmatprep.subr.mxu0 0.0
      %1256 = vmatpush1.xpose.msra.mxu0 0.0
      %1257 = vmatprep.subr.mxu0 0.0
      %1258 = vmatpush1.xpose.msra.mxu0 0.0
      %1259 = vmatprep.subr.mxu0 0.0
      %1260 = vmatpush1.xpose.msra.mxu0 0.0
      %1261 = vmatprep.subr.mxu0 0.0
      %1262 = vmatpush1.xpose.msra.mxu0 0.0
      %1263 = vmatprep.subr.mxu0 0.0
      %1264 = vmatpush1.xpose.msra.mxu0 0.0
      %1265 = vmatprep.subr.mxu0 0.0
      %1266 = vmatpush1.xpose.msra.mxu0 0.0
      %1267 = vmatprep.subr.mxu0 0.0
      %1268 = vmatpush1.xpose.msra.mxu0 0.0
      %1269 = vmatprep.mubr.f32.mxu0 0.0
      %1270 = vmatmul.mubr.f32.gmra.mrb[0].mxu0 %v1197
      %v1271 = vpop.f32.mrb[0].mxu0
      %v1272 = vadd.f32 0.0, %v1271
      %v1273 = vpop.f32.mrb[0].mxu0
      %1274 = vmatprep.mubr.f32.mxu0 0.0
      %1275 = vmatmul.mubr.f32.gmra.mrb[0].mxu0 %v1199
      %v1276 = vpop.f32.mrb[0].mxu0
      %v1277 = vadd.f32 0.0, %v1276
      %v1278 = vpop.f32.mrb[0].mxu0
      %1279 = vdwg.mxu0
      %1282 = vrot.lane.b32.xlu0 %v760, 96
      %v1283 = vpop.permute.xlu0 %1282
      %1284 = vrot.lane.b32.xlu0 %v765, 96
      %v1285 = vpop.permute.xlu0 %1284
      %v1286 = vsel %vm1018, %v760, 0
      %v1288 = vsel %vm1018, %v765, 0
      %v1290 = vsel %vm1018, %v1283, 0
      %v1292 = vsel %vm1018, %v1285, 0
      %1294 = vmatprep.subr.mxu0 0.0
      %1295 = vmatpush1.xpose.msra.mxu0 %v1290
      %1296 = vmatprep.subr.mxu0 0.0
      %1297 = vmatpush1.xpose.msra.mxu0 %v1292
      %1298 = vmatprep.subr.mxu0 0.0
      %1299 = vmatpush1.xpose.msra.mxu0 0.0
      %1300 = vmatprep.subr.mxu0 0.0
      %1301 = vmatpush1.xpose.msra.mxu0 0.0
      %1302 = vmatprep.subr.mxu0 0.0
      %1303 = vmatpush1.xpose.msra.mxu0 0.0
      %1304 = vmatprep.subr.mxu0 0.0
      %1305 = vmatpush1.xpose.msra.mxu0 0.0
      %1306 = vmatprep.subr.mxu0 0.0
      %1307 = vmatpush1.xpose.msra.mxu0 0.0
      %1308 = vmatprep.subr.mxu0 0.0
      %1309 = vmatpush1.xpose.msra.mxu0 0.0
      %1310 = vmatprep.subr.mxu0 0.0
      %1311 = vmatpush1.xpose.msra.mxu0 0.0
      %1312 = vmatprep.subr.mxu0 0.0
      %1313 = vmatpush1.xpose.msra.mxu0 0.0
      %1314 = vmatprep.subr.mxu0 0.0
      %1315 = vmatpush1.xpose.msra.mxu0 0.0
      %1316 = vmatprep.subr.mxu0 0.0
      %1317 = vmatpush1.xpose.msra.mxu0 0.0
      %1318 = vmatprep.subr.mxu0 0.0
      %1319 = vmatpush1.xpose.msra.mxu0 0.0
      %1320 = vmatprep.subr.mxu0 0.0
      %1321 = vmatpush1.xpose.msra.mxu0 0.0
      %1322 = vmatprep.subr.mxu0 0.0
      %1323 = vmatpush1.xpose.msra.mxu0 0.0
      %1324 = vmatprep.subr.mxu0 0.0
      %1325 = vmatpush1.xpose.msra.mxu0 0.0
      %1326 = vmatprep.subr.mxu0 0.0
      %1327 = vmatpush1.xpose.msra.mxu0 0.0
      %1328 = vmatprep.subr.mxu0 0.0
      %1329 = vmatpush1.xpose.msra.mxu0 0.0
      %1330 = vmatprep.subr.mxu0 0.0
      %1331 = vmatpush1.xpose.msra.mxu0 0.0
      %1332 = vmatprep.subr.mxu0 0.0
      %1333 = vmatpush1.xpose.msra.mxu0 0.0
      %1334 = vmatprep.subr.mxu0 0.0
      %1335 = vmatpush1.xpose.msra.mxu0 0.0
      %1336 = vmatprep.subr.mxu0 0.0
      %1337 = vmatpush1.xpose.msra.mxu0 0.0
      %1338 = vmatprep.subr.mxu0 0.0
      %1339 = vmatpush1.xpose.msra.mxu0 0.0
      %1340 = vmatprep.subr.mxu0 0.0
      %1341 = vmatpush1.xpose.msra.mxu0 0.0
      %1342 = vmatprep.subr.mxu0 0.0
      %1343 = vmatpush1.xpose.msra.mxu0 0.0
      %1344 = vmatprep.subr.mxu0 0.0
      %1345 = vmatpush1.xpose.msra.mxu0 0.0
      %1346 = vmatprep.subr.mxu0 0.0
      %1347 = vmatpush1.xpose.msra.mxu0 0.0
      %1348 = vmatprep.subr.mxu0 0.0
      %1349 = vmatpush1.xpose.msra.mxu0 0.0
      %1350 = vmatprep.subr.mxu0 0.0
      %1351 = vmatpush1.xpose.msra.mxu0 0.0
      %1352 = vmatprep.subr.mxu0 0.0
      %1353 = vmatpush1.xpose.msra.mxu0 0.0
      %1354 = vmatprep.subr.mxu0 0.0
      %1355 = vmatpush1.xpose.msra.mxu0 0.0
      %1356 = vmatprep.subr.mxu0 0.0
      %1357 = vmatpush1.xpose.msra.mxu0 0.0
      %1358 = vmatprep.mubr.f32.mxu0 0.0
      %1359 = vmatmul.mubr.f32.gmra.mrb[0].mxu0 %v1286
      %v1360 = vpop.f32.mrb[0].mxu0
      %v1361 = vadd.f32 0.0, %v1360
      %v1362 = vpop.f32.mrb[0].mxu0
      %1363 = vmatprep.mubr.f32.mxu0 0.0
      %1364 = vmatmul.mubr.f32.gmra.mrb[0].mxu0 %v1288
      %v1365 = vpop.f32.mrb[0].mxu0
      %v1366 = vadd.f32 0.0, %v1365
      %v1367 = vpop.f32.mrb[0].mxu0
      %1368 = vdwg.mxu0
      %1371 = vrot.lane.b32.xlu0 %v770, 96
      %v1372 = vpop.permute.xlu0 %1371
      %1373 = vrot.lane.b32.xlu0 %v775, 96
      %v1374 = vpop.permute.xlu0 %1373
      %v1375 = vsel %vm1018, %v770, 0
      %v1377 = vsel %vm1018, %v775, 0
      %v1379 = vsel %vm1018, %v1372, 0
      %v1381 = vsel %vm1018, %v1374, 0
      %1383 = vmatprep.subr.mxu0 0.0
      %1384 = vmatpush1.xpose.msra.mxu0 %v1379
      %1385 = vmatprep.subr.mxu0 0.0
      %1386 = vmatpush1.xpose.msra.mxu0 %v1381
      %1387 = vmatprep.subr.mxu0 0.0
      %1388 = vmatpush1.xpose.msra.mxu0 0.0
      %1389 = vmatprep.subr.mxu0 0.0
      %1390 = vmatpush1.xpose.msra.mxu0 0.0
      %1391 = vmatprep.subr.mxu0 0.0
      %1392 = vmatpush1.xpose.msra.mxu0 0.0
      %1393 = vmatprep.subr.mxu0 0.0
      %1394 = vmatpush1.xpose.msra.mxu0 0.0
      %1395 = vmatprep.subr.mxu0 0.0
      %1396 = vmatpush1.xpose.msra.mxu0 0.0
      %1397 = vmatprep.subr.mxu0 0.0
      %1398 = vmatpush1.xpose.msra.mxu0 0.0
      %1399 = vmatprep.subr.mxu0 0.0
      %1400 = vmatpush1.xpose.msra.mxu0 0.0
      %1401 = vmatprep.subr.mxu0 0.0
      %1402 = vmatpush1.xpose.msra.mxu0 0.0
      %1403 = vmatprep.subr.mxu0 0.0
      %1404 = vmatpush1.xpose.msra.mxu0 0.0
      %1405 = vmatprep.subr.mxu0 0.0
      %1406 = vmatpush1.xpose.msra.mxu0 0.0
      %1407 = vmatprep.subr.mxu0 0.0
      %1408 = vmatpush1.xpose.msra.mxu0 0.0
      %1409 = vmatprep.subr.mxu0 0.0
      %1410 = vmatpush1.xpose.msra.mxu0 0.0
      %1411 = vmatprep.subr.mxu0 0.0
      %1412 = vmatpush1.xpose.msra.mxu0 0.0
      %1413 = vmatprep.subr.mxu0 0.0
      %1414 = vmatpush1.xpose.msra.mxu0 0.0
      %1415 = vmatprep.subr.mxu0 0.0
      %1416 = vmatpush1.xpose.msra.mxu0 0.0
      %1417 = vmatprep.subr.mxu0 0.0
      %1418 = vmatpush1.xpose.msra.mxu0 0.0
      %1419 = vmatprep.subr.mxu0 0.0
      %1420 = vmatpush1.xpose.msra.mxu0 0.0
      %1421 = vmatprep.subr.mxu0 0.0
      %1422 = vmatpush1.xpose.msra.mxu0 0.0
      %1423 = vmatprep.subr.mxu0 0.0
      %1424 = vmatpush1.xpose.msra.mxu0 0.0
      %1425 = vmatprep.subr.mxu0 0.0
      %1426 = vmatpush1.xpose.msra.mxu0 0.0
      %1427 = vmatprep.subr.mxu0 0.0
      %1428 = vmatpush1.xpose.msra.mxu0 0.0
      %1429 = vmatprep.subr.mxu0 0.0
      %1430 = vmatpush1.xpose.msra.mxu0 0.0
      %1431 = vmatprep.subr.mxu0 0.0
      %1432 = vmatpush1.xpose.msra.mxu0 0.0
      %1433 = vmatprep.subr.mxu0 0.0
      %1434 = vmatpush1.xpose.msra.mxu0 0.0
      %1435 = vmatprep.subr.mxu0 0.0
      %1436 = vmatpush1.xpose.msra.mxu0 0.0
      %1437 = vmatprep.subr.mxu0 0.0
      %1438 = vmatpush1.xpose.msra.mxu0 0.0
      %1439 = vmatprep.subr.mxu0 0.0
      %1440 = vmatpush1.xpose.msra.mxu0 0.0
      %1441 = vmatprep.subr.mxu0 0.0
      %1442 = vmatpush1.xpose.msra.mxu0 0.0
      %1443 = vmatprep.subr.mxu0 0.0
      %1444 = vmatpush1.xpose.msra.mxu0 0.0
      %1445 = vmatprep.subr.mxu0 0.0
      %1446 = vmatpush1.xpose.msra.mxu0 0.0
      %1447 = vmatprep.mubr.f32.mxu0 0.0
      %1448 = vmatmul.mubr.f32.gmra.mrb[0].mxu0 %v1375
      %v1449 = vpop.f32.mrb[0].mxu0
      %v1450 = vadd.f32 0.0, %v1449
      %v1451 = vpop.f32.mrb[0].mxu0
      %1452 = vmatprep.mubr.f32.mxu0 0.0
      %1453 = vmatmul.mubr.f32.gmra.mrb[0].mxu0 %v1377
      %v1454 = vpop.f32.mrb[0].mxu0
      %v1455 = vadd.f32 0.0, %v1454
      %v1456 = vpop.f32.mrb[0].mxu0
      %1457 = vdwg.mxu0
      %1460 = vrot.lane.b32.xlu0 %v780, 96
      %v1461 = vpop.permute.xlu0 %1460
      %1462 = vrot.lane.b32.xlu0 %v785, 96
      %v1463 = vpop.permute.xlu0 %1462
      %v1464 = vsel %vm1018, %v780, 0
      %v1466 = vsel %vm1018, %v785, 0
      %v1468 = vsel %vm1018, %v1461, 0
      %v1470 = vsel %vm1018, %v1463, 0
      %1472 = vmatprep.subr.mxu0 0.0
      %1473 = vmatpush1.xpose.msra.mxu0 %v1468
      %1474 = vmatprep.subr.mxu0 0.0
      %1475 = vmatpush1.xpose.msra.mxu0 %v1470
      %1476 = vmatprep.subr.mxu0 0.0
      %1477 = vmatpush1.xpose.msra.mxu0 0.0
      %1478 = vmatprep.subr.mxu0 0.0
      %1479 = vmatpush1.xpose.msra.mxu0 0.0
      %1480 = vmatprep.subr.mxu0 0.0
      %1481 = vmatpush1.xpose.msra.mxu0 0.0
      %1482 = vmatprep.subr.mxu0 0.0
      %1483 = vmatpush1.xpose.msra.mxu0 0.0
      %1484 = vmatprep.subr.mxu0 0.0
      %1485 = vmatpush1.xpose.msra.mxu0 0.0
      %1486 = vmatprep.subr.mxu0 0.0
      %1487 = vmatpush1.xpose.msra.mxu0 0.0
      %1488 = vmatprep.subr.mxu0 0.0
      %1489 = vmatpush1.xpose.msra.mxu0 0.0
      %1490 = vmatprep.subr.mxu0 0.0
      %1491 = vmatpush1.xpose.msra.mxu0 0.0
      %1492 = vmatprep.subr.mxu0 0.0
      %1493 = vmatpush1.xpose.msra.mxu0 0.0
      %1494 = vmatprep.subr.mxu0 0.0
      %1495 = vmatpush1.xpose.msra.mxu0 0.0
      %1496 = vmatprep.subr.mxu0 0.0
      %1497 = vmatpush1.xpose.msra.mxu0 0.0
      %1498 = vmatprep.subr.mxu0 0.0
      %1499 = vmatpush1.xpose.msra.mxu0 0.0
      %1500 = vmatprep.subr.mxu0 0.0
      %1501 = vmatpush1.xpose.msra.mxu0 0.0
      %1502 = vmatprep.subr.mxu0 0.0
      %1503 = vmatpush1.xpose.msra.mxu0 0.0
      %1504 = vmatprep.subr.mxu0 0.0
      %1505 = vmatpush1.xpose.msra.mxu0 0.0
      %1506 = vmatprep.subr.mxu0 0.0
      %1507 = vmatpush1.xpose.msra.mxu0 0.0
      %1508 = vmatprep.subr.mxu0 0.0
      %1509 = vmatpush1.xpose.msra.mxu0 0.0
      %1510 = vmatprep.subr.mxu0 0.0
      %1511 = vmatpush1.xpose.msra.mxu0 0.0
      %1512 = vmatprep.subr.mxu0 0.0
      %1513 = vmatpush1.xpose.msra.mxu0 0.0
      %1514 = vmatprep.subr.mxu0 0.0
      %1515 = vmatpush1.xpose.msra.mxu0 0.0
      %1516 = vmatprep.subr.mxu0 0.0
      %1517 = vmatpush1.xpose.msra.mxu0 0.0
      %1518 = vmatprep.subr.mxu0 0.0
      %1519 = vmatpush1.xpose.msra.mxu0 0.0
      %1520 = vmatprep.subr.mxu0 0.0
      %1521 = vmatpush1.xpose.msra.mxu0 0.0
      %1522 = vmatprep.subr.mxu0 0.0
      %1523 = vmatpush1.xpose.msra.mxu0 0.0
      %1524 = vmatprep.subr.mxu0 0.0
      %1525 = vmatpush1.xpose.msra.mxu0 0.0
      %1526 = vmatprep.subr.mxu0 0.0
      %1527 = vmatpush1.xpose.msra.mxu0 0.0
      %1528 = vmatprep.subr.mxu0 0.0
      %1529 = vmatpush1.xpose.msra.mxu0 0.0
      %1530 = vmatprep.subr.mxu0 0.0
      %1531 = vmatpush1.xpose.msra.mxu0 0.0
      %1532 = vmatprep.subr.mxu0 0.0
      %1533 = vmatpush1.xpose.msra.mxu0 0.0
      %1534 = vmatprep.subr.mxu0 0.0
      %1535 = vmatpush1.xpose.msra.mxu0 0.0
      %1536 = vmatprep.mubr.f32.mxu0 0.0
      %1537 = vmatmul.mubr.f32.gmra.mrb[0].mxu0 %v1464
      %v1538 = vpop.f32.mrb[0].mxu0
      %v1539 = vadd.f32 0.0, %v1538
      %v1540 = vpop.f32.mrb[0].mxu0
      %1541 = vmatprep.mubr.f32.mxu0 0.0
      %1542 = vmatmul.mubr.f32.gmra.mrb[0].mxu0 %v1466
      %v1543 = vpop.f32.mrb[0].mxu0
      %v1544 = vadd.f32 0.0, %v1543
      %v1545 = vpop.f32.mrb[0].mxu0
      %1546 = vdwg.mxu0
      %1549 = vrot.lane.b32.xlu0 %v790, 96
      %v1550 = vpop.permute.xlu0 %1549
      %1551 = vrot.lane.b32.xlu0 %v795, 96
      %v1552 = vpop.permute.xlu0 %1551
      %v1553 = vsel %vm1018, %v790, 0
      %v1555 = vsel %vm1018, %v795, 0
      %v1557 = vsel %vm1018, %v1550, 0
      %v1559 = vsel %vm1018, %v1552, 0
      %1561 = vmatprep.subr.mxu0 0.0
      %1562 = vmatpush1.xpose.msra.mxu0 %v1557
      %1563 = vmatprep.subr.mxu0 0.0
      %1564 = vmatpush1.xpose.msra.mxu0 %v1559
      %1565 = vmatprep.subr.mxu0 0.0
      %1566 = vmatpush1.xpose.msra.mxu0 0.0
      %1567 = vmatprep.subr.mxu0 0.0
      %1568 = vmatpush1.xpose.msra.mxu0 0.0
      %1569 = vmatprep.subr.mxu0 0.0
      %1570 = vmatpush1.xpose.msra.mxu0 0.0
      %1571 = vmatprep.subr.mxu0 0.0
      %1572 = vmatpush1.xpose.msra.mxu0 0.0
      %1573 = vmatprep.subr.mxu0 0.0
      %1574 = vmatpush1.xpose.msra.mxu0 0.0
      %1575 = vmatprep.subr.mxu0 0.0
      %1576 = vmatpush1.xpose.msra.mxu0 0.0
      %1577 = vmatprep.subr.mxu0 0.0
      %1578 = vmatpush1.xpose.msra.mxu0 0.0
      %1579 = vmatprep.subr.mxu0 0.0
      %1580 = vmatpush1.xpose.msra.mxu0 0.0
      %1581 = vmatprep.subr.mxu0 0.0
      %1582 = vmatpush1.xpose.msra.mxu0 0.0
      %1583 = vmatprep.subr.mxu0 0.0
      %1584 = vmatpush1.xpose.msra.mxu0 0.0
      %1585 = vmatprep.subr.mxu0 0.0
      %1586 = vmatpush1.xpose.msra.mxu0 0.0
      %1587 = vmatprep.subr.mxu0 0.0
      %1588 = vmatpush1.xpose.msra.mxu0 0.0
      %1589 = vmatprep.subr.mxu0 0.0
      %1590 = vmatpush1.xpose.msra.mxu0 0.0
      %1591 = vmatprep.subr.mxu0 0.0
      %1592 = vmatpush1.xpose.msra.mxu0 0.0
      %1593 = vmatprep.subr.mxu0 0.0
      %1594 = vmatpush1.xpose.msra.mxu0 0.0
      %1595 = vmatprep.subr.mxu0 0.0
      %1596 = vmatpush1.xpose.msra.mxu0 0.0
      %1597 = vmatprep.subr.mxu0 0.0
      %1598 = vmatpush1.xpose.msra.mxu0 0.0
      %1599 = vmatprep.subr.mxu0 0.0
      %1600 = vmatpush1.xpose.msra.mxu0 0.0
      %1601 = vmatprep.subr.mxu0 0.0
      %1602 = vmatpush1.xpose.msra.mxu0 0.0
      %1603 = vmatprep.subr.mxu0 0.0
      %1604 = vmatpush1.xpose.msra.mxu0 0.0
      %1605 = vmatprep.subr.mxu0 0.0
      %1606 = vmatpush1.xpose.msra.mxu0 0.0
      %1607 = vmatprep.subr.mxu0 0.0
      %1608 = vmatpush1.xpose.msra.mxu0 0.0
      %1609 = vmatprep.subr.mxu0 0.0
      %1610 = vmatpush1.xpose.msra.mxu0 0.0
      %1611 = vmatprep.subr.mxu0 0.0
      %1612 = vmatpush1.xpose.msra.mxu0 0.0
      %1613 = vmatprep.subr.mxu0 0.0
      %1614 = vmatpush1.xpose.msra.mxu0 0.0
      %1615 = vmatprep.subr.mxu0 0.0
      %1616 = vmatpush1.xpose.msra.mxu0 0.0
      %1617 = vmatprep.subr.mxu0 0.0
      %1618 = vmatpush1.xpose.msra.mxu0 0.0
      %1619 = vmatprep.subr.mxu0 0.0
      %1620 = vmatpush1.xpose.msra.mxu0 0.0
      %1621 = vmatprep.subr.mxu0 0.0
      %1622 = vmatpush1.xpose.msra.mxu0 0.0
      %1623 = vmatprep.subr.mxu0 0.0
      %1624 = vmatpush1.xpose.msra.mxu0 0.0
      %1625 = vmatprep.mubr.f32.mxu0 0.0
      %1626 = vmatmul.mubr.f32.gmra.mrb[0].mxu0 %v1553
      %v1627 = vpop.f32.mrb[0].mxu0
      %v1628 = vadd.f32 0.0, %v1627
      %v1629 = vpop.f32.mrb[0].mxu0
      %1630 = vmatprep.mubr.f32.mxu0 0.0
      %1631 = vmatmul.mubr.f32.gmra.mrb[0].mxu0 %v1555
      %v1632 = vpop.f32.mrb[0].mxu0
      %v1633 = vadd.f32 0.0, %v1632
      %v1634 = vpop.f32.mrb[0].mxu0
      %1635 = vdwg.mxu0
      %1638 = vrot.lane.b32.xlu0 %v800, 96
      %v1639 = vpop.permute.xlu0 %1638
      %1640 = vrot.lane.b32.xlu0 %v805, 96
      %v1641 = vpop.permute.xlu0 %1640
      %v1642 = vsel %vm1018, %v800, 0
      %v1644 = vsel %vm1018, %v805, 0
      %v1646 = vsel %vm1018, %v1639, 0
      %v1648 = vsel %vm1018, %v1641, 0
      %1650 = vmatprep.subr.mxu0 0.0
      %1651 = vmatpush1.xpose.msra.mxu0 %v1646
      %1652 = vmatprep.subr.mxu0 0.0
      %1653 = vmatpush1.xpose.msra.mxu0 %v1648
      %1654 = vmatprep.subr.mxu0 0.0
      %1655 = vmatpush1.xpose.msra.mxu0 0.0
      %1656 = vmatprep.subr.mxu0 0.0
      %1657 = vmatpush1.xpose.msra.mxu0 0.0
      %1658 = vmatprep.subr.mxu0 0.0
      %1659 = vmatpush1.xpose.msra.mxu0 0.0
      %1660 = vmatprep.subr.mxu0 0.0
      %1661 = vmatpush1.xpose.msra.mxu0 0.0
      %1662 = vmatprep.subr.mxu0 0.0
      %1663 = vmatpush1.xpose.msra.mxu0 0.0
      %1664 = vmatprep.subr.mxu0 0.0
      %1665 = vmatpush1.xpose.msra.mxu0 0.0
      %1666 = vmatprep.subr.mxu0 0.0
      %1667 = vmatpush1.xpose.msra.mxu0 0.0
      %1668 = vmatprep.subr.mxu0 0.0
      %1669 = vmatpush1.xpose.msra.mxu0 0.0
      %1670 = vmatprep.subr.mxu0 0.0
      %1671 = vmatpush1.xpose.msra.mxu0 0.0
      %1672 = vmatprep.subr.mxu0 0.0
      %1673 = vmatpush1.xpose.msra.mxu0 0.0
      %1674 = vmatprep.subr.mxu0 0.0
      %1675 = vmatpush1.xpose.msra.mxu0 0.0
      %1676 = vmatprep.subr.mxu0 0.0
      %1677 = vmatpush1.xpose.msra.mxu0 0.0
      %1678 = vmatprep.subr.mxu0 0.0
      %1679 = vmatpush1.xpose.msra.mxu0 0.0
      %1680 = vmatprep.subr.mxu0 0.0
      %1681 = vmatpush1.xpose.msra.mxu0 0.0
      %1682 = vmatprep.subr.mxu0 0.0
      %1683 = vmatpush1.xpose.msra.mxu0 0.0
      %1684 = vmatprep.subr.mxu0 0.0
      %1685 = vmatpush1.xpose.msra.mxu0 0.0
      %1686 = vmatprep.subr.mxu0 0.0
      %1687 = vmatpush1.xpose.msra.mxu0 0.0
      %1688 = vmatprep.subr.mxu0 0.0
      %1689 = vmatpush1.xpose.msra.mxu0 0.0
      %1690 = vmatprep.subr.mxu0 0.0
      %1691 = vmatpush1.xpose.msra.mxu0 0.0
      %1692 = vmatprep.subr.mxu0 0.0
      %1693 = vmatpush1.xpose.msra.mxu0 0.0
      %1694 = vmatprep.subr.mxu0 0.0
      %1695 = vmatpush1.xpose.msra.mxu0 0.0
      %1696 = vmatprep.subr.mxu0 0.0
      %1697 = vmatpush1.xpose.msra.mxu0 0.0
      %1698 = vmatprep.subr.mxu0 0.0
      %1699 = vmatpush1.xpose.msra.mxu0 0.0
      %1700 = vmatprep.subr.mxu0 0.0
      %1701 = vmatpush1.xpose.msra.mxu0 0.0
      %1702 = vmatprep.subr.mxu0 0.0
      %1703 = vmatpush1.xpose.msra.mxu0 0.0
      %1704 = vmatprep.subr.mxu0 0.0
      %1705 = vmatpush1.xpose.msra.mxu0 0.0
      %1706 = vmatprep.subr.mxu0 0.0
      %1707 = vmatpush1.xpose.msra.mxu0 0.0
      %1708 = vmatprep.subr.mxu0 0.0
      %1709 = vmatpush1.xpose.msra.mxu0 0.0
      %1710 = vmatprep.subr.mxu0 0.0
      %1711 = vmatpush1.xpose.msra.mxu0 0.0
      %1712 = vmatprep.subr.mxu0 0.0
      %1713 = vmatpush1.xpose.msra.mxu0 0.0
      %1714 = vmatprep.mubr.f32.mxu0 0.0
      %1715 = vmatmul.mubr.f32.gmra.mrb[0].mxu0 %v1642
      %v1716 = vpop.f32.mrb[0].mxu0
      %v1717 = vadd.f32 0.0, %v1716
      %v1718 = vpop.f32.mrb[0].mxu0
      %1719 = vmatprep.mubr.f32.mxu0 0.0
      %1720 = vmatmul.mubr.f32.gmra.mrb[0].mxu0 %v1644
      %v1721 = vpop.f32.mrb[0].mxu0
      %v1722 = vadd.f32 0.0, %v1721
      %v1723 = vpop.f32.mrb[0].mxu0
      %1724 = vdwg.mxu0
      %v1725 = vmul.f32 %v1094, 0.25
      %v1726 = vmul.f32 %v1099, 0.25
      %v1727 = vmul.f32 %v1183, 0.25
      %v1728 = vmul.f32 %v1188, 0.25
      %v1729 = vmul.f32 %v1272, 0.25
      %v1730 = vmul.f32 %v1277, 0.25
      %v1731 = vmul.f32 %v1361, 0.25
      %v1732 = vmul.f32 %v1366, 0.25
      %v1733 = vmul.f32 %v1450, 0.25
      %v1734 = vmul.f32 %v1455, 0.25
      %v1735 = vmul.f32 %v1539, 0.25
      %v1736 = vmul.f32 %v1544, 0.25
      %v1737 = vmul.f32 %v1628, 0.25
      %v1738 = vmul.f32 %v1633, 0.25
      %v1739 = vmul.f32 %v1717, 0.25
      %v1740 = vmul.f32 %v1722, 0.25
      %v1741 = vsel %vm1018, %v1725, -inf
      %1742 = vmax.xlane.f32.xlu0 %v1741
      %v1743 = vpop.xlane.xlu0 %1742
      %v1744 = vsel %vm1018, %v1726, -inf
      %1745 = vmax.xlane.f32.xlu0 %v1744
      %v1746 = vpop.xlane.xlu0 %1745
      %v1747 = vsel %vm1018, %v1727, -inf
      %1748 = vmax.xlane.f32.xlu0 %v1747
      %v1749 = vpop.xlane.xlu0 %1748
      %v1750 = vsel %vm1018, %v1728, -inf
      %1751 = vmax.xlane.f32.xlu0 %v1750
      %v1752 = vpop.xlane.xlu0 %1751
      %v1753 = vsel %vm1018, %v1729, -inf
      %1754 = vmax.xlane.f32.xlu0 %v1753
      %v1755 = vpop.xlane.xlu0 %1754
      %v1756 = vsel %vm1018, %v1730, -inf
      %1757 = vmax.xlane.f32.xlu0 %v1756
      %v1758 = vpop.xlane.xlu0 %1757
      %v1759 = vsel %vm1018, %v1731, -inf
      %1760 = vmax.xlane.f32.xlu0 %v1759
      %v1761 = vpop.xlane.xlu0 %1760
      %v1762 = vsel %vm1018, %v1732, -inf
      %1763 = vmax.xlane.f32.xlu0 %v1762
      %v1764 = vpop.xlane.xlu0 %1763
      %v1765 = vsel %vm1018, %v1733, -inf
      %1766 = vmax.xlane.f32.xlu0 %v1765
      %v1767 = vpop.xlane.xlu0 %1766
      %v1768 = vsel %vm1018, %v1734, -inf
      %1769 = vmax.xlane.f32.xlu0 %v1768
      %v1770 = vpop.xlane.xlu0 %1769
      %v1771 = vsel %vm1018, %v1735, -inf
      %1772 = vmax.xlane.f32.xlu0 %v1771
      %v1773 = vpop.xlane.xlu0 %1772
      %v1774 = vsel %vm1018, %v1736, -inf
      %1775 = vmax.xlane.f32.xlu0 %v1774
      %v1776 = vpop.xlane.xlu0 %1775
      %v1777 = vsel %vm1018, %v1737, -inf
      %1778 = vmax.xlane.f32.xlu0 %v1777
      %v1779 = vpop.xlane.xlu0 %1778
      %v1780 = vsel %vm1018, %v1738, -inf
      %1781 = vmax.xlane.f32.xlu0 %v1780
      %v1782 = vpop.xlane.xlu0 %1781
      %v1783 = vsel %vm1018, %v1739, -inf
      %1784 = vmax.xlane.f32.xlu0 %v1783
      %v1785 = vpop.xlane.xlu0 %1784
      %v1786 = vsel %vm1018, %v1740, -inf
      %1787 = vmax.xlane.f32.xlu0 %v1786
      %v1788 = vpop.xlane.xlu0 %1787
      %v1789 = vsub.f32 %v1725, %v1743
      %v1790 = vsub.f32 %v1726, %v1746
      %v1791 = vsub.f32 %v1727, %v1749
      %v1792 = vsub.f32 %v1728, %v1752
      %v1793 = vsub.f32 %v1729, %v1755
      %v1794 = vsub.f32 %v1730, %v1758
      %v1795 = vsub.f32 %v1731, %v1761
      %v1796 = vsub.f32 %v1732, %v1764
      %v1797 = vsub.f32 %v1733, %v1767
      %v1798 = vsub.f32 %v1734, %v1770
      %v1799 = vsub.f32 %v1735, %v1773
      %v1800 = vsub.f32 %v1736, %v1776
      %v1801 = vsub.f32 %v1737, %v1779
      %v1802 = vsub.f32 %v1738, %v1782
      %v1803 = vsub.f32 %v1739, %v1785
      %v1804 = vsub.f32 %v1740, %v1788
      %v1805 = vmul.f32 %v1789, 1.442695
      %v1806 = vpow.pop %v1805
      %v1807 = vmul.f32 %v1790, 1.442695
      %v1808 = vpow.pop %v1807
      %v1809 = vmul.f32 %v1791, 1.442695
      %v1810 = vpow.pop %v1809
      %v1811 = vmul.f32 %v1792, 1.442695
      %v1812 = vpow.pop %v1811
      %v1813 = vmul.f32 %v1793, 1.442695
      %v1814 = vpow.pop %v1813
      %v1815 = vmul.f32 %v1794, 1.442695
      %v1816 = vpow.pop %v1815
      %v1817 = vmul.f32 %v1795, 1.442695
      %v1818 = vpow.pop %v1817
      %v1819 = vmul.f32 %v1796, 1.442695
      %v1820 = vpow.pop %v1819
      %v1821 = vmul.f32 %v1797, 1.442695
      %v1822 = vpow.pop %v1821
      %v1823 = vmul.f32 %v1798, 1.442695
      %v1824 = vpow.pop %v1823
      %v1825 = vmul.f32 %v1799, 1.442695
      %v1826 = vpow.pop %v1825
      %v1827 = vmul.f32 %v1800, 1.442695
      %v1828 = vpow.pop %v1827
      %v1829 = vmul.f32 %v1801, 1.442695
      %v1830 = vpow.pop %v1829
      %v1831 = vmul.f32 %v1802, 1.442695
      %v1832 = vpow.pop %v1831
      %v1833 = vmul.f32 %v1803, 1.442695
      %v1834 = vpow.pop %v1833
      %v1835 = vmul.f32 %v1804, 1.442695
      %v1836 = vpow.pop %v1835
      %v1837 = vsel %vm1018, %v1806, 0.0
      %1838 = vadd.xlane.f32.xlu0 %v1837
      %v1839 = vpop.xlane.xlu0 %1838
      %v1840 = vsel %vm1018, %v1808, 0.0
      %1841 = vadd.xlane.f32.xlu0 %v1840
      %v1842 = vpop.xlane.xlu0 %1841
      %v1843 = vsel %vm1018, %v1810, 0.0
      %1844 = vadd.xlane.f32.xlu0 %v1843
      %v1845 = vpop.xlane.xlu0 %1844
      %v1846 = vsel %vm1018, %v1812, 0.0
      %1847 = vadd.xlane.f32.xlu0 %v1846
      %v1848 = vpop.xlane.xlu0 %1847
      %v1849 = vsel %vm1018, %v1814, 0.0
      %1850 = vadd.xlane.f32.xlu0 %v1849
      %v1851 = vpop.xlane.xlu0 %1850
      %v1852 = vsel %vm1018, %v1816, 0.0
      %1853 = vadd.xlane.f32.xlu0 %v1852
      %v1854 = vpop.xlane.xlu0 %1853
      %v1855 = vsel %vm1018, %v1818, 0.0
      %1856 = vadd.xlane.f32.xlu0 %v1855
      %v1857 = vpop.xlane.xlu0 %1856
      %v1858 = vsel %vm1018, %v1820, 0.0
      %1859 = vadd.xlane.f32.xlu0 %v1858
      %v1860 = vpop.xlane.xlu0 %1859
      %v1861 = vsel %vm1018, %v1822, 0.0
      %1862 = vadd.xlane.f32.xlu0 %v1861
      %v1863 = vpop.xlane.xlu0 %1862
      %v1864 = vsel %vm1018, %v1824, 0.0
      %1865 = vadd.xlane.f32.xlu0 %v1864
      %v1866 = vpop.xlane.xlu0 %1865
      %v1867 = vsel %vm1018, %v1826, 0.0
      %1868 = vadd.xlane.f32.xlu0 %v1867
      %v1869 = vpop.xlane.xlu0 %1868
      %v1870 = vsel %vm1018, %v1828, 0.0
      %1871 = vadd.xlane.f32.xlu0 %v1870
      %v1872 = vpop.xlane.xlu0 %1871
      %v1873 = vsel %vm1018, %v1830, 0.0
      %1874 = vadd.xlane.f32.xlu0 %v1873
      %v1875 = vpop.xlane.xlu0 %1874
      %v1876 = vsel %vm1018, %v1832, 0.0
      %1877 = vadd.xlane.f32.xlu0 %v1876
      %v1878 = vpop.xlane.xlu0 %1877
      %v1879 = vsel %vm1018, %v1834, 0.0
      %1880 = vadd.xlane.f32.xlu0 %v1879
      %v1881 = vpop.xlane.xlu0 %1880
      %v1882 = vsel %vm1018, %v1836, 0.0
      %1883 = vadd.xlane.f32.xlu0 %v1882
      %v1884 = vpop.xlane.xlu0 %1883
      %v1885 = vrcp.pop %v1839
      %v1886 = vmul.f32 %v1806, %v1885
      %v1887 = vrcp.pop %v1842
      %v1888 = vmul.f32 %v1808, %v1887
      %v1889 = vrcp.pop %v1845
      %v1890 = vmul.f32 %v1810, %v1889
      %v1891 = vrcp.pop %v1848
      %v1892 = vmul.f32 %v1812, %v1891
      %v1893 = vrcp.pop %v1851
      %v1894 = vmul.f32 %v1814, %v1893
      %v1895 = vrcp.pop %v1854
      %v1896 = vmul.f32 %v1816, %v1895
      %v1897 = vrcp.pop %v1857
      %v1898 = vmul.f32 %v1818, %v1897
      %v1899 = vrcp.pop %v1860
      %v1900 = vmul.f32 %v1820, %v1899
      %v1901 = vrcp.pop %v1863
      %v1902 = vmul.f32 %v1822, %v1901
      %v1903 = vrcp.pop %v1866
      %v1904 = vmul.f32 %v1824, %v1903
      %v1905 = vrcp.pop %v1869
      %v1906 = vmul.f32 %v1826, %v1905
      %v1907 = vrcp.pop %v1872
      %v1908 = vmul.f32 %v1828, %v1907
      %v1909 = vrcp.pop %v1875
      %v1910 = vmul.f32 %v1830, %v1909
      %v1911 = vrcp.pop %v1878
      %v1912 = vmul.f32 %v1832, %v1911
      %v1913 = vrcp.pop %v1881
      %v1914 = vmul.f32 %v1834, %v1913
      %v1915 = vrcp.pop %v1884
      %v1916 = vmul.f32 %v1836, %v1915
      %v1918 = vsel %vm1018, %v1886, 0
      %v1921 = vsel %vm1018, %v1888, 0
      %1923 = vmatprep.subr.mxu0 0.0
      %1924 = vmatpush1.msra.mxu0 %v934
      %1925 = vmatprep.subr.mxu0 0.0
      %1926 = vmatpush1.msra.mxu0 %v939
      %1927 = vmatprep.subr.mxu0 0.0
      %1928 = vmatpush1.msra.mxu0 0.0
      %1929 = vmatprep.subr.mxu0 0.0
      %1930 = vmatpush1.msra.mxu0 0.0
      %1931 = vmatprep.subr.mxu0 0.0
      %1932 = vmatpush1.msra.mxu0 0.0
      %1933 = vmatprep.subr.mxu0 0.0
      %1934 = vmatpush1.msra.mxu0 0.0
      %1935 = vmatprep.subr.mxu0 0.0
      %1936 = vmatpush1.msra.mxu0 0.0
      %1937 = vmatprep.subr.mxu0 0.0
      %1938 = vmatpush1.msra.mxu0 0.0
      %1939 = vmatprep.subr.mxu0 0.0
      %1940 = vmatpush1.msra.mxu0 0.0
      %1941 = vmatprep.subr.mxu0 0.0
      %1942 = vmatpush1.msra.mxu0 0.0
      %1943 = vmatprep.subr.mxu0 0.0
      %1944 = vmatpush1.msra.mxu0 0.0
      %1945 = vmatprep.subr.mxu0 0.0
      %1946 = vmatpush1.msra.mxu0 0.0
      %1947 = vmatprep.subr.mxu0 0.0
      %1948 = vmatpush1.msra.mxu0 0.0
      %1949 = vmatprep.subr.mxu0 0.0
      %1950 = vmatpush1.msra.mxu0 0.0
      %1951 = vmatprep.subr.mxu0 0.0
      %1952 = vmatpush1.msra.mxu0 0.0
      %1953 = vmatprep.subr.mxu0 0.0
      %1954 = vmatpush1.msra.mxu0 0.0
      %1955 = vmatprep.subr.mxu0 0.0
      %1956 = vmatpush1.msra.mxu0 0.0
      %1957 = vmatprep.subr.mxu0 0.0
      %1958 = vmatpush1.msra.mxu0 0.0
      %1959 = vmatprep.subr.mxu0 0.0
      %1960 = vmatpush1.msra.mxu0 0.0
      %1961 = vmatprep.subr.mxu0 0.0
      %1962 = vmatpush1.msra.mxu0 0.0
      %1963 = vmatprep.subr.mxu0 0.0
      %1964 = vmatpush1.msra.mxu0 0.0
      %1965 = vmatprep.subr.mxu0 0.0
      %1966 = vmatpush1.msra.mxu0 0.0
      %1967 = vmatprep.subr.mxu0 0.0
      %1968 = vmatpush1.msra.mxu0 0.0
      %1969 = vmatprep.subr.mxu0 0.0
      %1970 = vmatpush1.msra.mxu0 0.0
      %1971 = vmatprep.subr.mxu0 0.0
      %1972 = vmatpush1.msra.mxu0 0.0
      %1973 = vmatprep.subr.mxu0 0.0
      %1974 = vmatpush1.msra.mxu0 0.0
      %1975 = vmatprep.subr.mxu0 0.0
      %1976 = vmatpush1.msra.mxu0 0.0
      %1977 = vmatprep.subr.mxu0 0.0
      %1978 = vmatpush1.msra.mxu0 0.0
      %1979 = vmatprep.subr.mxu0 0.0
      %1980 = vmatpush1.msra.mxu0 0.0
      %1981 = vmatprep.subr.mxu0 0.0
      %1982 = vmatpush1.msra.mxu0 0.0
      %1983 = vmatprep.subr.mxu0 0.0
      %1984 = vmatpush1.msra.mxu0 0.0
      %1985 = vmatprep.subr.mxu0 0.0
      %1986 = vmatpush1.msra.mxu0 0.0
      %1987 = vmatprep.mubr.f32.mxu0 0.0
      %1988 = vmatmul.mubr.f32.gmra.mrb[0].mxu0 %v1918
      %v1989 = vpop.f32.mrb[0].mxu0
      %v1990 = vadd.f32 0.0, %v1989
      %v1991 = vpop.f32.mrb[0].mxu0
      %1992 = vmatprep.mubr.f32.mxu0 0.0
      %1993 = vmatmul.mubr.f32.gmra.mrb[0].mxu0 %v1921
      %v1994 = vpop.f32.mrb[0].mxu0
      %v1995 = vadd.f32 0.0, %v1994
      %v1996 = vpop.f32.mrb[0].mxu0
      %1997 = vdwg.mxu0
      %v1999 = vsel %vm1018, %v1890, 0
      %v2002 = vsel %vm1018, %v1892, 0
      %2004 = vmatprep.subr.mxu0 0.0
      %2005 = vmatpush1.msra.mxu0 %v944
      %2006 = vmatprep.subr.mxu0 0.0
      %2007 = vmatpush1.msra.mxu0 %v949
      %2008 = vmatprep.subr.mxu0 0.0
      %2009 = vmatpush1.msra.mxu0 0.0
      %2010 = vmatprep.subr.mxu0 0.0
      %2011 = vmatpush1.msra.mxu0 0.0
      %2012 = vmatprep.subr.mxu0 0.0
      %2013 = vmatpush1.msra.mxu0 0.0
      %2014 = vmatprep.subr.mxu0 0.0
      %2015 = vmatpush1.msra.mxu0 0.0
      %2016 = vmatprep.subr.mxu0 0.0
      %2017 = vmatpush1.msra.mxu0 0.0
      %2018 = vmatprep.subr.mxu0 0.0
      %2019 = vmatpush1.msra.mxu0 0.0
      %2020 = vmatprep.subr.mxu0 0.0
      %2021 = vmatpush1.msra.mxu0 0.0
      %2022 = vmatprep.subr.mxu0 0.0
      %2023 = vmatpush1.msra.mxu0 0.0
      %2024 = vmatprep.subr.mxu0 0.0
      %2025 = vmatpush1.msra.mxu0 0.0
      %2026 = vmatprep.subr.mxu0 0.0
      %2027 = vmatpush1.msra.mxu0 0.0
      %2028 = vmatprep.subr.mxu0 0.0
      %2029 = vmatpush1.msra.mxu0 0.0
      %2030 = vmatprep.subr.mxu0 0.0
      %2031 = vmatpush1.msra.mxu0 0.0
      %2032 = vmatprep.subr.mxu0 0.0
      %2033 = vmatpush1.msra.mxu0 0.0
      %2034 = vmatprep.subr.mxu0 0.0
      %2035 = vmatpush1.msra.mxu0 0.0
      %2036 = vmatprep.subr.mxu0 0.0
      %2037 = vmatpush1.msra.mxu0 0.0
      %2038 = vmatprep.subr.mxu0 0.0
      %2039 = vmatpush1.msra.mxu0 0.0
      %2040 = vmatprep.subr.mxu0 0.0
      %2041 = vmatpush1.msra.mxu0 0.0
      %2042 = vmatprep.subr.mxu0 0.0
      %2043 = vmatpush1.msra.mxu0 0.0
      %2044 = vmatprep.subr.mxu0 0.0
      %2045 = vmatpush1.msra.mxu0 0.0
      %2046 = vmatprep.subr.mxu0 0.0
      %2047 = vmatpush1.msra.mxu0 0.0
      %2048 = vmatprep.subr.mxu0 0.0
      %2049 = vmatpush1.msra.mxu0 0.0
      %2050 = vmatprep.subr.mxu0 0.0
      %2051 = vmatpush1.msra.mxu0 0.0
      %2052 = vmatprep.subr.mxu0 0.0
      %2053 = vmatpush1.msra.mxu0 0.0
      %2054 = vmatprep.subr.mxu0 0.0
      %2055 = vmatpush1.msra.mxu0 0.0
      %2056 = vmatprep.subr.mxu0 0.0
      %2057 = vmatpush1.msra.mxu0 0.0
      %2058 = vmatprep.subr.mxu0 0.0
      %2059 = vmatpush1.msra.mxu0 0.0
      %2060 = vmatprep.subr.mxu0 0.0
      %2061 = vmatpush1.msra.mxu0 0.0
      %2062 = vmatprep.subr.mxu0 0.0
      %2063 = vmatpush1.msra.mxu0 0.0
      %2064 = vmatprep.subr.mxu0 0.0
      %2065 = vmatpush1.msra.mxu0 0.0
      %2066 = vmatprep.subr.mxu0 0.0
      %2067 = vmatpush1.msra.mxu0 0.0
      %2068 = vmatprep.mubr.f32.mxu0 0.0
      %2069 = vmatmul.mubr.f32.gmra.mrb[0].mxu0 %v1999
      %v2070 = vpop.f32.mrb[0].mxu0
      %v2071 = vadd.f32 0.0, %v2070
      %v2072 = vpop.f32.mrb[0].mxu0
      %2073 = vmatprep.mubr.f32.mxu0 0.0
      %2074 = vmatmul.mubr.f32.gmra.mrb[0].mxu0 %v2002
      %v2075 = vpop.f32.mrb[0].mxu0
      %v2076 = vadd.f32 0.0, %v2075
      %v2077 = vpop.f32.mrb[0].mxu0
      %2078 = vdwg.mxu0
      %v2080 = vsel %vm1018, %v1894, 0
      %v2083 = vsel %vm1018, %v1896, 0
      %2085 = vmatprep.subr.mxu0 0.0
      %2086 = vmatpush1.msra.mxu0 %v954
      %2087 = vmatprep.subr.mxu0 0.0
      %2088 = vmatpush1.msra.mxu0 %v959
      %2089 = vmatprep.subr.mxu0 0.0
      %2090 = vmatpush1.msra.mxu0 0.0
      %2091 = vmatprep.subr.mxu0 0.0
      %2092 = vmatpush1.msra.mxu0 0.0
      %2093 = vmatprep.subr.mxu0 0.0
      %2094 = vmatpush1.msra.mxu0 0.0
      %2095 = vmatprep.subr.mxu0 0.0
      %2096 = vmatpush1.msra.mxu0 0.0
      %2097 = vmatprep.subr.mxu0 0.0
      %2098 = vmatpush1.msra.mxu0 0.0
      %2099 = vmatprep.subr.mxu0 0.0
      %2100 = vmatpush1.msra.mxu0 0.0
      %2101 = vmatprep.subr.mxu0 0.0
      %2102 = vmatpush1.msra.mxu0 0.0
      %2103 = vmatprep.subr.mxu0 0.0
      %2104 = vmatpush1.msra.mxu0 0.0
      %2105 = vmatprep.subr.mxu0 0.0
      %2106 = vmatpush1.msra.mxu0 0.0
      %2107 = vmatprep.subr.mxu0 0.0
      %2108 = vmatpush1.msra.mxu0 0.0
      %2109 = vmatprep.subr.mxu0 0.0
      %2110 = vmatpush1.msra.mxu0 0.0
      %2111 = vmatprep.subr.mxu0 0.0
      %2112 = vmatpush1.msra.mxu0 0.0
      %2113 = vmatprep.subr.mxu0 0.0
      %2114 = vmatpush1.msra.mxu0 0.0
      %2115 = vmatprep.subr.mxu0 0.0
      %2116 = vmatpush1.msra.mxu0 0.0
      %2117 = vmatprep.subr.mxu0 0.0
      %2118 = vmatpush1.msra.mxu0 0.0
      %2119 = vmatprep.subr.mxu0 0.0
      %2120 = vmatpush1.msra.mxu0 0.0
      %2121 = vmatprep.subr.mxu0 0.0
      %2122 = vmatpush1.msra.mxu0 0.0
      %2123 = vmatprep.subr.mxu0 0.0
      %2124 = vmatpush1.msra.mxu0 0.0
      %2125 = vmatprep.subr.mxu0 0.0
      %2126 = vmatpush1.msra.mxu0 0.0
      %2127 = vmatprep.subr.mxu0 0.0
      %2128 = vmatpush1.msra.mxu0 0.0
      %2129 = vmatprep.subr.mxu0 0.0
      %2130 = vmatpush1.msra.mxu0 0.0
      %2131 = vmatprep.subr.mxu0 0.0
      %2132 = vmatpush1.msra.mxu0 0.0
      %2133 = vmatprep.subr.mxu0 0.0
      %2134 = vmatpush1.msra.mxu0 0.0
      %2135 = vmatprep.subr.mxu0 0.0
      %2136 = vmatpush1.msra.mxu0 0.0
      %2137 = vmatprep.subr.mxu0 0.0
      %2138 = vmatpush1.msra.mxu0 0.0
      %2139 = vmatprep.subr.mxu0 0.0
      %2140 = vmatpush1.msra.mxu0 0.0
      %2141 = vmatprep.subr.mxu0 0.0
      %2142 = vmatpush1.msra.mxu0 0.0
      %2143 = vmatprep.subr.mxu0 0.0
      %2144 = vmatpush1.msra.mxu0 0.0
      %2145 = vmatprep.subr.mxu0 0.0
      %2146 = vmatpush1.msra.mxu0 0.0
      %2147 = vmatprep.subr.mxu0 0.0
      %2148 = vmatpush1.msra.mxu0 0.0
      %2149 = vmatprep.mubr.f32.mxu0 0.0
      %2150 = vmatmul.mubr.f32.gmra.mrb[0].mxu0 %v2080
      %v2151 = vpop.f32.mrb[0].mxu0
      %v2152 = vadd.f32 0.0, %v2151
      %v2153 = vpop.f32.mrb[0].mxu0
      %2154 = vmatprep.mubr.f32.mxu0 0.0
      %2155 = vmatmul.mubr.f32.gmra.mrb[0].mxu0 %v2083
      %v2156 = vpop.f32.mrb[0].mxu0
      %v2157 = vadd.f32 0.0, %v2156
      %v2158 = vpop.f32.mrb[0].mxu0
      %2159 = vdwg.mxu0
      %v2161 = vsel %vm1018, %v1898, 0
      %v2164 = vsel %vm1018, %v1900, 0
      %2166 = vmatprep.subr.mxu0 0.0
      %2167 = vmatpush1.msra.mxu0 %v964
      %2168 = vmatprep.subr.mxu0 0.0
      %2169 = vmatpush1.msra.mxu0 %v969
      %2170 = vmatprep.subr.mxu0 0.0
      %2171 = vmatpush1.msra.mxu0 0.0
      %2172 = vmatprep.subr.mxu0 0.0
      %2173 = vmatpush1.msra.mxu0 0.0
      %2174 = vmatprep.subr.mxu0 0.0
      %2175 = vmatpush1.msra.mxu0 0.0
      %2176 = vmatprep.subr.mxu0 0.0
      %2177 = vmatpush1.msra.mxu0 0.0
      %2178 = vmatprep.subr.mxu0 0.0
      %2179 = vmatpush1.msra.mxu0 0.0
      %2180 = vmatprep.subr.mxu0 0.0
      %2181 = vmatpush1.msra.mxu0 0.0
      %2182 = vmatprep.subr.mxu0 0.0
      %2183 = vmatpush1.msra.mxu0 0.0
      %2184 = vmatprep.subr.mxu0 0.0
      %2185 = vmatpush1.msra.mxu0 0.0
      %2186 = vmatprep.subr.mxu0 0.0
      %2187 = vmatpush1.msra.mxu0 0.0
      %2188 = vmatprep.subr.mxu0 0.0
      %2189 = vmatpush1.msra.mxu0 0.0
      %2190 = vmatprep.subr.mxu0 0.0
      %2191 = vmatpush1.msra.mxu0 0.0
      %2192 = vmatprep.subr.mxu0 0.0
      %2193 = vmatpush1.msra.mxu0 0.0
      %2194 = vmatprep.subr.mxu0 0.0
      %2195 = vmatpush1.msra.mxu0 0.0
      %2196 = vmatprep.subr.mxu0 0.0
      %2197 = vmatpush1.msra.mxu0 0.0
      %2198 = vmatprep.subr.mxu0 0.0
      %2199 = vmatpush1.msra.mxu0 0.0
      %2200 = vmatprep.subr.mxu0 0.0
      %2201 = vmatpush1.msra.mxu0 0.0
      %2202 = vmatprep.subr.mxu0 0.0
      %2203 = vmatpush1.msra.mxu0 0.0
      %2204 = vmatprep.subr.mxu0 0.0
      %2205 = vmatpush1.msra.mxu0 0.0
      %2206 = vmatprep.subr.mxu0 0.0
      %2207 = vmatpush1.msra.mxu0 0.0
      %2208 = vmatprep.subr.mxu0 0.0
      %2209 = vmatpush1.msra.mxu0 0.0
      %2210 = vmatprep.subr.mxu0 0.0
      %2211 = vmatpush1.msra.mxu0 0.0
      %2212 = vmatprep.subr.mxu0 0.0
      %2213 = vmatpush1.msra.mxu0 0.0
      %2214 = vmatprep.subr.mxu0 0.0
      %2215 = vmatpush1.msra.mxu0 0.0
      %2216 = vmatprep.subr.mxu0 0.0
      %2217 = vmatpush1.msra.mxu0 0.0
      %2218 = vmatprep.subr.mxu0 0.0
      %2219 = vmatpush1.msra.mxu0 0.0
      %2220 = vmatprep.subr.mxu0 0.0
      %2221 = vmatpush1.msra.mxu0 0.0
      %2222 = vmatprep.subr.mxu0 0.0
      %2223 = vmatpush1.msra.mxu0 0.0
      %2224 = vmatprep.subr.mxu0 0.0
      %2225 = vmatpush1.msra.mxu0 0.0
      %2226 = vmatprep.subr.mxu0 0.0
      %2227 = vmatpush1.msra.mxu0 0.0
      %2228 = vmatprep.subr.mxu0 0.0
      %2229 = vmatpush1.msra.mxu0 0.0
      %2230 = vmatprep.mubr.f32.mxu0 0.0
      %2231 = vmatmul.mubr.f32.gmra.mrb[0].mxu0 %v2161
      %v2232 = vpop.f32.mrb[0].mxu0
      %v2233 = vadd.f32 0.0, %v2232
      %v2234 = vpop.f32.mrb[0].mxu0
      %2235 = vmatprep.mubr.f32.mxu0 0.0
      %2236 = vmatmul.mubr.f32.gmra.mrb[0].mxu0 %v2164
      %v2237 = vpop.f32.mrb[0].mxu0
      %v2238 = vadd.f32 0.0, %v2237
      %v2239 = vpop.f32.mrb[0].mxu0
      %2240 = vdwg.mxu0
      %v2242 = vsel %vm1018, %v1902, 0
      %v2245 = vsel %vm1018, %v1904, 0
      %2247 = vmatprep.subr.mxu0 0.0
      %2248 = vmatpush1.msra.mxu0 %v974
      %2249 = vmatprep.subr.mxu0 0.0
      %2250 = vmatpush1.msra.mxu0 %v979
      %2251 = vmatprep.subr.mxu0 0.0
      %2252 = vmatpush1.msra.mxu0 0.0
      %2253 = vmatprep.subr.mxu0 0.0
      %2254 = vmatpush1.msra.mxu0 0.0
      %2255 = vmatprep.subr.mxu0 0.0
      %2256 = vmatpush1.msra.mxu0 0.0
      %2257 = vmatprep.subr.mxu0 0.0
      %2258 = vmatpush1.msra.mxu0 0.0
      %2259 = vmatprep.subr.mxu0 0.0
      %2260 = vmatpush1.msra.mxu0 0.0
      %2261 = vmatprep.subr.mxu0 0.0
      %2262 = vmatpush1.msra.mxu0 0.0
      %2263 = vmatprep.subr.mxu0 0.0
      %2264 = vmatpush1.msra.mxu0 0.0
      %2265 = vmatprep.subr.mxu0 0.0
      %2266 = vmatpush1.msra.mxu0 0.0
      %2267 = vmatprep.subr.mxu0 0.0
      %2268 = vmatpush1.msra.mxu0 0.0
      %2269 = vmatprep.subr.mxu0 0.0
      %2270 = vmatpush1.msra.mxu0 0.0
      %2271 = vmatprep.subr.mxu0 0.0
      %2272 = vmatpush1.msra.mxu0 0.0
      %2273 = vmatprep.subr.mxu0 0.0
      %2274 = vmatpush1.msra.mxu0 0.0
      %2275 = vmatprep.subr.mxu0 0.0
      %2276 = vmatpush1.msra.mxu0 0.0
      %2277 = vmatprep.subr.mxu0 0.0
      %2278 = vmatpush1.msra.mxu0 0.0
      %2279 = vmatprep.subr.mxu0 0.0
      %2280 = vmatpush1.msra.mxu0 0.0
      %2281 = vmatprep.subr.mxu0 0.0
      %2282 = vmatpush1.msra.mxu0 0.0
      %2283 = vmatprep.subr.mxu0 0.0
      %2284 = vmatpush1.msra.mxu0 0.0
      %2285 = vmatprep.subr.mxu0 0.0
      %2286 = vmatpush1.msra.mxu0 0.0
      %2287 = vmatprep.subr.mxu0 0.0
      %2288 = vmatpush1.msra.mxu0 0.0
      %2289 = vmatprep.subr.mxu0 0.0
      %2290 = vmatpush1.msra.mxu0 0.0
      %2291 = vmatprep.subr.mxu0 0.0
      %2292 = vmatpush1.msra.mxu0 0.0
      %2293 = vmatprep.subr.mxu0 0.0
      %2294 = vmatpush1.msra.mxu0 0.0
      %2295 = vmatprep.subr.mxu0 0.0
      %2296 = vmatpush1.msra.mxu0 0.0
      %2297 = vmatprep.subr.mxu0 0.0
      %2298 = vmatpush1.msra.mxu0 0.0
      %2299 = vmatprep.subr.mxu0 0.0
      %2300 = vmatpush1.msra.mxu0 0.0
      %2301 = vmatprep.subr.mxu0 0.0
      %2302 = vmatpush1.msra.mxu0 0.0
      %2303 = vmatprep.subr.mxu0 0.0
      %2304 = vmatpush1.msra.mxu0 0.0
      %2305 = vmatprep.subr.mxu0 0.0
      %2306 = vmatpush1.msra.mxu0 0.0
      %2307 = vmatprep.subr.mxu0 0.0
      %2308 = vmatpush1.msra.mxu0 0.0
      %2309 = vmatprep.subr.mxu0 0.0
      %2310 = vmatpush1.msra.mxu0 0.0
      %2311 = vmatprep.mubr.f32.mxu0 0.0
      %2312 = vmatmul.mubr.f32.gmra.mrb[0].mxu0 %v2242
      %v2313 = vpop.f32.mrb[0].mxu0
      %v2314 = vadd.f32 0.0, %v2313
      %v2315 = vpop.f32.mrb[0].mxu0
      %2316 = vmatprep.mubr.f32.mxu0 0.0
      %2317 = vmatmul.mubr.f32.gmra.mrb[0].mxu0 %v2245
      %v2318 = vpop.f32.mrb[0].mxu0
      %v2319 = vadd.f32 0.0, %v2318
      %v2320 = vpop.f32.mrb[0].mxu0
      %2321 = vdwg.mxu0
      %v2323 = vsel %vm1018, %v1906, 0
      %v2326 = vsel %vm1018, %v1908, 0
      %2328 = vmatprep.subr.mxu0 0.0
      %2329 = vmatpush1.msra.mxu0 %v984
      %2330 = vmatprep.subr.mxu0 0.0
      %2331 = vmatpush1.msra.mxu0 %v989
      %2332 = vmatprep.subr.mxu0 0.0
      %2333 = vmatpush1.msra.mxu0 0.0
      %2334 = vmatprep.subr.mxu0 0.0
      %2335 = vmatpush1.msra.mxu0 0.0
      %2336 = vmatprep.subr.mxu0 0.0
      %2337 = vmatpush1.msra.mxu0 0.0
      %2338 = vmatprep.subr.mxu0 0.0
      %2339 = vmatpush1.msra.mxu0 0.0
      %2340 = vmatprep.subr.mxu0 0.0
      %2341 = vmatpush1.msra.mxu0 0.0
      %2342 = vmatprep.subr.mxu0 0.0
      %2343 = vmatpush1.msra.mxu0 0.0
      %2344 = vmatprep.subr.mxu0 0.0
      %2345 = vmatpush1.msra.mxu0 0.0
      %2346 = vmatprep.subr.mxu0 0.0
      %2347 = vmatpush1.msra.mxu0 0.0
      %2348 = vmatprep.subr.mxu0 0.0
      %2349 = vmatpush1.msra.mxu0 0.0
      %2350 = vmatprep.subr.mxu0 0.0
      %2351 = vmatpush1.msra.mxu0 0.0
      %2352 = vmatprep.subr.mxu0 0.0
      %2353 = vmatpush1.msra.mxu0 0.0
      %2354 = vmatprep.subr.mxu0 0.0
      %2355 = vmatpush1.msra.mxu0 0.0
      %2356 = vmatprep.subr.mxu0 0.0
      %2357 = vmatpush1.msra.mxu0 0.0
      %2358 = vmatprep.subr.mxu0 0.0
      %2359 = vmatpush1.msra.mxu0 0.0
      %2360 = vmatprep.subr.mxu0 0.0
      %2361 = vmatpush1.msra.mxu0 0.0
      %2362 = vmatprep.subr.mxu0 0.0
      %2363 = vmatpush1.msra.mxu0 0.0
      %2364 = vmatprep.subr.mxu0 0.0
      %2365 = vmatpush1.msra.mxu0 0.0
      %2366 = vmatprep.subr.mxu0 0.0
      %2367 = vmatpush1.msra.mxu0 0.0
      %2368 = vmatprep.subr.mxu0 0.0
      %2369 = vmatpush1.msra.mxu0 0.0
      %2370 = vmatprep.subr.mxu0 0.0
      %2371 = vmatpush1.msra.mxu0 0.0
      %2372 = vmatprep.subr.mxu0 0.0
      %2373 = vmatpush1.msra.mxu0 0.0
      %2374 = vmatprep.subr.mxu0 0.0
      %2375 = vmatpush1.msra.mxu0 0.0
      %2376 = vmatprep.subr.mxu0 0.0
      %2377 = vmatpush1.msra.mxu0 0.0
      %2378 = vmatprep.subr.mxu0 0.0
      %2379 = vmatpush1.msra.mxu0 0.0
      %2380 = vmatprep.subr.mxu0 0.0
      %2381 = vmatpush1.msra.mxu0 0.0
      %2382 = vmatprep.subr.mxu0 0.0
      %2383 = vmatpush1.msra.mxu0 0.0
      %2384 = vmatprep.subr.mxu0 0.0
      %2385 = vmatpush1.msra.mxu0 0.0
      %2386 = vmatprep.subr.mxu0 0.0
      %2387 = vmatpush1.msra.mxu0 0.0
      %2388 = vmatprep.subr.mxu0 0.0
      %2389 = vmatpush1.msra.mxu0 0.0
      %2390 = vmatprep.subr.mxu0 0.0
      %2391 = vmatpush1.msra.mxu0 0.0
      %2392 = vmatprep.mubr.f32.mxu0 0.0
      %2393 = vmatmul.mubr.f32.gmra.mrb[0].mxu0 %v2323
      %v2394 = vpop.f32.mrb[0].mxu0
      %v2395 = vadd.f32 0.0, %v2394
      %v2396 = vpop.f32.mrb[0].mxu0
      %2397 = vmatprep.mubr.f32.mxu0 0.0
      %2398 = vmatmul.mubr.f32.gmra.mrb[0].mxu0 %v2326
      %v2399 = vpop.f32.mrb[0].mxu0
      %v2400 = vadd.f32 0.0, %v2399
      %v2401 = vpop.f32.mrb[0].mxu0
      %2402 = vdwg.mxu0
      %v2404 = vsel %vm1018, %v1910, 0
      %v2407 = vsel %vm1018, %v1912, 0
      %2409 = vmatprep.subr.mxu0 0.0
      %2410 = vmatpush1.msra.mxu0 %v994
      %2411 = vmatprep.subr.mxu0 0.0
      %2412 = vmatpush1.msra.mxu0 %v999
      %2413 = vmatprep.subr.mxu0 0.0
      %2414 = vmatpush1.msra.mxu0 0.0
      %2415 = vmatprep.subr.mxu0 0.0
      %2416 = vmatpush1.msra.mxu0 0.0
      %2417 = vmatprep.subr.mxu0 0.0
      %2418 = vmatpush1.msra.mxu0 0.0
      %2419 = vmatprep.subr.mxu0 0.0
      %2420 = vmatpush1.msra.mxu0 0.0
      %2421 = vmatprep.subr.mxu0 0.0
      %2422 = vmatpush1.msra.mxu0 0.0
      %2423 = vmatprep.subr.mxu0 0.0
      %2424 = vmatpush1.msra.mxu0 0.0
      %2425 = vmatprep.subr.mxu0 0.0
      %2426 = vmatpush1.msra.mxu0 0.0
      %2427 = vmatprep.subr.mxu0 0.0
      %2428 = vmatpush1.msra.mxu0 0.0
      %2429 = vmatprep.subr.mxu0 0.0
      %2430 = vmatpush1.msra.mxu0 0.0
      %2431 = vmatprep.subr.mxu0 0.0
      %2432 = vmatpush1.msra.mxu0 0.0
      %2433 = vmatprep.subr.mxu0 0.0
      %2434 = vmatpush1.msra.mxu0 0.0
      %2435 = vmatprep.subr.mxu0 0.0
      %2436 = vmatpush1.msra.mxu0 0.0
      %2437 = vmatprep.subr.mxu0 0.0
      %2438 = vmatpush1.msra.mxu0 0.0
      %2439 = vmatprep.subr.mxu0 0.0
      %2440 = vmatpush1.msra.mxu0 0.0
      %2441 = vmatprep.subr.mxu0 0.0
      %2442 = vmatpush1.msra.mxu0 0.0
      %2443 = vmatprep.subr.mxu0 0.0
      %2444 = vmatpush1.msra.mxu0 0.0
      %2445 = vmatprep.subr.mxu0 0.0
      %2446 = vmatpush1.msra.mxu0 0.0
      %2447 = vmatprep.subr.mxu0 0.0
      %2448 = vmatpush1.msra.mxu0 0.0
      %2449 = vmatprep.subr.mxu0 0.0
      %2450 = vmatpush1.msra.mxu0 0.0
      %2451 = vmatprep.subr.mxu0 0.0
      %2452 = vmatpush1.msra.mxu0 0.0
      %2453 = vmatprep.subr.mxu0 0.0
      %2454 = vmatpush1.msra.mxu0 0.0
      %2455 = vmatprep.subr.mxu0 0.0
      %2456 = vmatpush1.msra.mxu0 0.0
      %2457 = vmatprep.subr.mxu0 0.0
      %2458 = vmatpush1.msra.mxu0 0.0
      %2459 = vmatprep.subr.mxu0 0.0
      %2460 = vmatpush1.msra.mxu0 0.0
      %2461 = vmatprep.subr.mxu0 0.0
      %2462 = vmatpush1.msra.mxu0 0.0
      %2463 = vmatprep.subr.mxu0 0.0
      %2464 = vmatpush1.msra.mxu0 0.0
      %2465 = vmatprep.subr.mxu0 0.0
      %2466 = vmatpush1.msra.mxu0 0.0
      %2467 = vmatprep.subr.mxu0 0.0
      %2468 = vmatpush1.msra.mxu0 0.0
      %2469 = vmatprep.subr.mxu0 0.0
      %2470 = vmatpush1.msra.mxu0 0.0
      %2471 = vmatprep.subr.mxu0 0.0
      %2472 = vmatpush1.msra.mxu0 0.0
      %2473 = vmatprep.mubr.f32.mxu0 0.0
      %2474 = vmatmul.mubr.f32.gmra.mrb[0].mxu0 %v2404
      %v2475 = vpop.f32.mrb[0].mxu0
      %v2476 = vadd.f32 0.0, %v2475
      %v2477 = vpop.f32.mrb[0].mxu0
      %2478 = vmatprep.mubr.f32.mxu0 0.0
      %2479 = vmatmul.mubr.f32.gmra.mrb[0].mxu0 %v2407
      %v2480 = vpop.f32.mrb[0].mxu0
      %v2481 = vadd.f32 0.0, %v2480
      %v2482 = vpop.f32.mrb[0].mxu0
      %2483 = vdwg.mxu0
      %v2485 = vsel %vm1018, %v1914, 0
      %v2488 = vsel %vm1018, %v1916, 0
      %2490 = vmatprep.subr.mxu0 0.0
      %2491 = vmatpush1.msra.mxu0 %v1004
      %2492 = vmatprep.subr.mxu0 0.0
      %2493 = vmatpush1.msra.mxu0 %v1009
      %2494 = vmatprep.subr.mxu0 0.0
      %2495 = vmatpush1.msra.mxu0 0.0
      %2496 = vmatprep.subr.mxu0 0.0
      %2497 = vmatpush1.msra.mxu0 0.0
      %2498 = vmatprep.subr.mxu0 0.0
      %2499 = vmatpush1.msra.mxu0 0.0
      %2500 = vmatprep.subr.mxu0 0.0
      %2501 = vmatpush1.msra.mxu0 0.0
      %2502 = vmatprep.subr.mxu0 0.0
      %2503 = vmatpush1.msra.mxu0 0.0
      %2504 = vmatprep.subr.mxu0 0.0
      %2505 = vmatpush1.msra.mxu0 0.0
      %2506 = vmatprep.subr.mxu0 0.0
      %2507 = vmatpush1.msra.mxu0 0.0
      %2508 = vmatprep.subr.mxu0 0.0
      %2509 = vmatpush1.msra.mxu0 0.0
      %2510 = vmatprep.subr.mxu0 0.0
      %2511 = vmatpush1.msra.mxu0 0.0
      %2512 = vmatprep.subr.mxu0 0.0
      %2513 = vmatpush1.msra.mxu0 0.0
      %2514 = vmatprep.subr.mxu0 0.0
      %2515 = vmatpush1.msra.mxu0 0.0
      %2516 = vmatprep.subr.mxu0 0.0
      %2517 = vmatpush1.msra.mxu0 0.0
      %2518 = vmatprep.subr.mxu0 0.0
      %2519 = vmatpush1.msra.mxu0 0.0
      %2520 = vmatprep.subr.mxu0 0.0
      %2521 = vmatpush1.msra.mxu0 0.0
      %2522 = vmatprep.subr.mxu0 0.0
      %2523 = vmatpush1.msra.mxu0 0.0
      %2524 = vmatprep.subr.mxu0 0.0
      %2525 = vmatpush1.msra.mxu0 0.0
      %2526 = vmatprep.subr.mxu0 0.0
      %2527 = vmatpush1.msra.mxu0 0.0
      %2528 = vmatprep.subr.mxu0 0.0
      %2529 = vmatpush1.msra.mxu0 0.0
      %2530 = vmatprep.subr.mxu0 0.0
      %2531 = vmatpush1.msra.mxu0 0.0
      %2532 = vmatprep.subr.mxu0 0.0
      %2533 = vmatpush1.msra.mxu0 0.0
      %2534 = vmatprep.subr.mxu0 0.0
      %2535 = vmatpush1.msra.mxu0 0.0
      %2536 = vmatprep.subr.mxu0 0.0
      %2537 = vmatpush1.msra.mxu0 0.0
      %2538 = vmatprep.subr.mxu0 0.0
      %2539 = vmatpush1.msra.mxu0 0.0
      %2540 = vmatprep.subr.mxu0 0.0
      %2541 = vmatpush1.msra.mxu0 0.0
      %2542 = vmatprep.subr.mxu0 0.0
      %2543 = vmatpush1.msra.mxu0 0.0
      %2544 = vmatprep.subr.mxu0 0.0
      %2545 = vmatpush1.msra.mxu0 0.0
      %2546 = vmatprep.subr.mxu0 0.0
      %2547 = vmatpush1.msra.mxu0 0.0
      %2548 = vmatprep.subr.mxu0 0.0
      %2549 = vmatpush1.msra.mxu0 0.0
      %2550 = vmatprep.subr.mxu0 0.0
      %2551 = vmatpush1.msra.mxu0 0.0
      %2552 = vmatprep.subr.mxu0 0.0
      %2553 = vmatpush1.msra.mxu0 0.0
      %2554 = vmatprep.mubr.f32.mxu0 0.0
      %2555 = vmatmul.mubr.f32.gmra.mrb[0].mxu0 %v2485
      %v2556 = vpop.f32.mrb[0].mxu0
      %v2557 = vadd.f32 0.0, %v2556
      %v2558 = vpop.f32.mrb[0].mxu0
      %2559 = vmatprep.mubr.f32.mxu0 0.0
      %2560 = vmatmul.mubr.f32.gmra.mrb[0].mxu0 %v2488
      %v2561 = vpop.f32.mrb[0].mxu0
      %v2562 = vadd.f32 0.0, %v2561
      %v2563 = vpop.f32.mrb[0].mxu0
      %2564 = vdwg.mxu0
      %2565 = vrot.lane.b32.xlu0 %v730, 112
      %v2566 = vpop.permute.xlu0 %2565
      %2567 = vrot.lane.b32.xlu0 %v735, 112
      %v2568 = vpop.permute.xlu0 %2567
      %2569 = vrot.lane.b32.xlu0 %v730, 80
      %v2570 = vpop.permute.xlu0 %2569
      %2571 = vrot.lane.b32.xlu0 %v735, 80
      %v2572 = vpop.permute.xlu0 %2571
      %v2573 = vsel %vm1018, %v2566, 0
      %v2575 = vsel %vm1018, %v2568, 0
      %v2577 = vsel %vm1018, %v2570, 0
      %v2579 = vsel %vm1018, %v2572, 0
      %2581 = vmatprep.subr.mxu0 0.0
      %2582 = vmatpush1.xpose.msra.mxu0 %v2577
      %2583 = vmatprep.subr.mxu0 0.0
      %2584 = vmatpush1.xpose.msra.mxu0 %v2579
      %2585 = vmatprep.subr.mxu0 0.0
      %2586 = vmatpush1.xpose.msra.mxu0 0.0
      %2587 = vmatprep.subr.mxu0 0.0
      %2588 = vmatpush1.xpose.msra.mxu0 0.0
      %2589 = vmatprep.subr.mxu0 0.0
      %2590 = vmatpush1.xpose.msra.mxu0 0.0
      %2591 = vmatprep.subr.mxu0 0.0
      %2592 = vmatpush1.xpose.msra.mxu0 0.0
      %2593 = vmatprep.subr.mxu0 0.0
      %2594 = vmatpush1.xpose.msra.mxu0 0.0
      %2595 = vmatprep.subr.mxu0 0.0
      %2596 = vmatpush1.xpose.msra.mxu0 0.0
      %2597 = vmatprep.subr.mxu0 0.0
      %2598 = vmatpush1.xpose.msra.mxu0 0.0
      %2599 = vmatprep.subr.mxu0 0.0
      %2600 = vmatpush1.xpose.msra.mxu0 0.0
      %2601 = vmatprep.subr.mxu0 0.0
      %2602 = vmatpush1.xpose.msra.mxu0 0.0
      %2603 = vmatprep.subr.mxu0 0.0
      %2604 = vmatpush1.xpose.msra.mxu0 0.0
      %2605 = vmatprep.subr.mxu0 0.0
      %2606 = vmatpush1.xpose.msra.mxu0 0.0
      %2607 = vmatprep.subr.mxu0 0.0
      %2608 = vmatpush1.xpose.msra.mxu0 0.0
      %2609 = vmatprep.subr.mxu0 0.0
      %2610 = vmatpush1.xpose.msra.mxu0 0.0
      %2611 = vmatprep.subr.mxu0 0.0
      %2612 = vmatpush1.xpose.msra.mxu0 0.0
      %2613 = vmatprep.subr.mxu0 0.0
      %2614 = vmatpush1.xpose.msra.mxu0 0.0
      %2615 = vmatprep.subr.mxu0 0.0
      %2616 = vmatpush1.xpose.msra.mxu0 0.0
      %2617 = vmatprep.subr.mxu0 0.0
      %2618 = vmatpush1.xpose.msra.mxu0 0.0
      %2619 = vmatprep.subr.mxu0 0.0
      %2620 = vmatpush1.xpose.msra.mxu0 0.0
      %2621 = vmatprep.subr.mxu0 0.0
      %2622 = vmatpush1.xpose.msra.mxu0 0.0
      %2623 = vmatprep.subr.mxu0 0.0
      %2624 = vmatpush1.xpose.msra.mxu0 0.0
      %2625 = vmatprep.subr.mxu0 0.0
      %2626 = vmatpush1.xpose.msra.mxu0 0.0
      %2627 = vmatprep.subr.mxu0 0.0
      %2628 = vmatpush1.xpose.msra.mxu0 0.0
      %2629 = vmatprep.subr.mxu0 0.0
      %2630 = vmatpush1.xpose.msra.mxu0 0.0
      %2631 = vmatprep.subr.mxu0 0.0
      %2632 = vmatpush1.xpose.msra.mxu0 0.0
      %2633 = vmatprep.subr.mxu0 0.0
      %2634 = vmatpush1.xpose.msra.mxu0 0.0
      %2635 = vmatprep.subr.mxu0 0.0
      %2636 = vmatpush1.xpose.msra.mxu0 0.0
      %2637 = vmatprep.subr.mxu0 0.0
      %2638 = vmatpush1.xpose.msra.mxu0 0.0
      %2639 = vmatprep.subr.mxu0 0.0
      %2640 = vmatpush1.xpose.msra.mxu0 0.0
      %2641 = vmatprep.subr.mxu0 0.0
      %2642 = vmatpush1.xpose.msra.mxu0 0.0
      %2643 = vmatprep.subr.mxu0 0.0
      %2644 = vmatpush1.xpose.msra.mxu0 0.0
      %2645 = vmatprep.mubr.f32.mxu0 0.0
      %2646 = vmatmul.mubr.f32.gmra.mrb[0].mxu0 %v2573
      %v2647 = vpop.f32.mrb[0].mxu0
      %v2648 = vadd.f32 0.0, %v2647
      %v2649 = vpop.f32.mrb[0].mxu0
      %2650 = vmatprep.mubr.f32.mxu0 0.0
      %2651 = vmatmul.mubr.f32.gmra.mrb[0].mxu0 %v2575
      %v2652 = vpop.f32.mrb[0].mxu0
      %v2653 = vadd.f32 0.0, %v2652
      %v2654 = vpop.f32.mrb[0].mxu0
      %2655 = vdwg.mxu0
      %2656 = vrot.lane.b32.xlu0 %v740, 112
      %v2657 = vpop.permute.xlu0 %2656
      %2658 = vrot.lane.b32.xlu0 %v745, 112
      %v2659 = vpop.permute.xlu0 %2658
      %2660 = vrot.lane.b32.xlu0 %v740, 80
      %v2661 = vpop.permute.xlu0 %2660
      %2662 = vrot.lane.b32.xlu0 %v745, 80
      %v2663 = vpop.permute.xlu0 %2662
      %v2664 = vsel %vm1018, %v2657, 0
      %v2666 = vsel %vm1018, %v2659, 0
      %v2668 = vsel %vm1018, %v2661, 0
      %v2670 = vsel %vm1018, %v2663, 0
      %2672 = vmatprep.subr.mxu0 0.0
      %2673 = vmatpush1.xpose.msra.mxu0 %v2668
      %2674 = vmatprep.subr.mxu0 0.0
      %2675 = vmatpush1.xpose.msra.mxu0 %v2670
      %2676 = vmatprep.subr.mxu0 0.0
      %2677 = vmatpush1.xpose.msra.mxu0 0.0
      %2678 = vmatprep.subr.mxu0 0.0
      %2679 = vmatpush1.xpose.msra.mxu0 0.0
      %2680 = vmatprep.subr.mxu0 0.0
      %2681 = vmatpush1.xpose.msra.mxu0 0.0
      %2682 = vmatprep.subr.mxu0 0.0
      %2683 = vmatpush1.xpose.msra.mxu0 0.0
      %2684 = vmatprep.subr.mxu0 0.0
      %2685 = vmatpush1.xpose.msra.mxu0 0.0
      %2686 = vmatprep.subr.mxu0 0.0
      %2687 = vmatpush1.xpose.msra.mxu0 0.0
      %2688 = vmatprep.subr.mxu0 0.0
      %2689 = vmatpush1.xpose.msra.mxu0 0.0
      %2690 = vmatprep.subr.mxu0 0.0
      %2691 = vmatpush1.xpose.msra.mxu0 0.0
      %2692 = vmatprep.subr.mxu0 0.0
      %2693 = vmatpush1.xpose.msra.mxu0 0.0
      %2694 = vmatprep.subr.mxu0 0.0
      %2695 = vmatpush1.xpose.msra.mxu0 0.0
      %2696 = vmatprep.subr.mxu0 0.0
      %2697 = vmatpush1.xpose.msra.mxu0 0.0
      %2698 = vmatprep.subr.mxu0 0.0
      %2699 = vmatpush1.xpose.msra.mxu0 0.0
      %2700 = vmatprep.subr.mxu0 0.0
      %2701 = vmatpush1.xpose.msra.mxu0 0.0
      %2702 = vmatprep.subr.mxu0 0.0
      %2703 = vmatpush1.xpose.msra.mxu0 0.0
      %2704 = vmatprep.subr.mxu0 0.0
      %2705 = vmatpush1.xpose.msra.mxu0 0.0
      %2706 = vmatprep.subr.mxu0 0.0
      %2707 = vmatpush1.xpose.msra.mxu0 0.0
      %2708 = vmatprep.subr.mxu0 0.0
      %2709 = vmatpush1.xpose.msra.mxu0 0.0
      %2710 = vmatprep.subr.mxu0 0.0
      %2711 = vmatpush1.xpose.msra.mxu0 0.0
      %2712 = vmatprep.subr.mxu0 0.0
      %2713 = vmatpush1.xpose.msra.mxu0 0.0
      %2714 = vmatprep.subr.mxu0 0.0
      %2715 = vmatpush1.xpose.msra.mxu0 0.0
      %2716 = vmatprep.subr.mxu0 0.0
      %2717 = vmatpush1.xpose.msra.mxu0 0.0
      %2718 = vmatprep.subr.mxu0 0.0
      %2719 = vmatpush1.xpose.msra.mxu0 0.0
      %2720 = vmatprep.subr.mxu0 0.0
      %2721 = vmatpush1.xpose.msra.mxu0 0.0
      %2722 = vmatprep.subr.mxu0 0.0
      %2723 = vmatpush1.xpose.msra.mxu0 0.0
      %2724 = vmatprep.subr.mxu0 0.0
      %2725 = vmatpush1.xpose.msra.mxu0 0.0
      %2726 = vmatprep.subr.mxu0 0.0
      %2727 = vmatpush1.xpose.msra.mxu0 0.0
      %2728 = vmatprep.subr.mxu0 0.0
      %2729 = vmatpush1.xpose.msra.mxu0 0.0
      %2730 = vmatprep.subr.mxu0 0.0
      %2731 = vmatpush1.xpose.msra.mxu0 0.0
      %2732 = vmatprep.subr.mxu0 0.0
      %2733 = vmatpush1.xpose.msra.mxu0 0.0
      %2734 = vmatprep.subr.mxu0 0.0
      %2735 = vmatpush1.xpose.msra.mxu0 0.0
      %2736 = vmatprep.mubr.f32.mxu0 0.0
      %2737 = vmatmul.mubr.f32.gmra.mrb[0].mxu0 %v2664
      %v2738 = vpop.f32.mrb[0].mxu0
      %v2739 = vadd.f32 0.0, %v2738
      %v2740 = vpop.f32.mrb[0].mxu0
      %2741 = vmatprep.mubr.f32.mxu0 0.0
      %2742 = vmatmul.mubr.f32.gmra.mrb[0].mxu0 %v2666
      %v2743 = vpop.f32.mrb[0].mxu0
      %v2744 = vadd.f32 0.0, %v2743
      %v2745 = vpop.f32.mrb[0].mxu0
      %2746 = vdwg.mxu0
      %2747 = vrot.lane.b32.xlu0 %v750, 112
      %v2748 = vpop.permute.xlu0 %2747
      %2749 = vrot.lane.b32.xlu0 %v755, 112
      %v2750 = vpop.permute.xlu0 %2749
      %2751 = vrot.lane.b32.xlu0 %v750, 80
      %v2752 = vpop.permute.xlu0 %2751
      %2753 = vrot.lane.b32.xlu0 %v755, 80
      %v2754 = vpop.permute.xlu0 %2753
      %v2755 = vsel %vm1018, %v2748, 0
      %v2757 = vsel %vm1018, %v2750, 0
      %v2759 = vsel %vm1018, %v2752, 0
      %v2761 = vsel %vm1018, %v2754, 0
      %2763 = vmatprep.subr.mxu0 0.0
      %2764 = vmatpush1.xpose.msra.mxu0 %v2759
      %2765 = vmatprep.subr.mxu0 0.0
      %2766 = vmatpush1.xpose.msra.mxu0 %v2761
      %2767 = vmatprep.subr.mxu0 0.0
      %2768 = vmatpush1.xpose.msra.mxu0 0.0
      %2769 = vmatprep.subr.mxu0 0.0
      %2770 = vmatpush1.xpose.msra.mxu0 0.0
      %2771 = vmatprep.subr.mxu0 0.0
      %2772 = vmatpush1.xpose.msra.mxu0 0.0
      %2773 = vmatprep.subr.mxu0 0.0
      %2774 = vmatpush1.xpose.msra.mxu0 0.0
      %2775 = vmatprep.subr.mxu0 0.0
      %2776 = vmatpush1.xpose.msra.mxu0 0.0
      %2777 = vmatprep.subr.mxu0 0.0
      %2778 = vmatpush1.xpose.msra.mxu0 0.0
      %2779 = vmatprep.subr.mxu0 0.0
      %2780 = vmatpush1.xpose.msra.mxu0 0.0
      %2781 = vmatprep.subr.mxu0 0.0
      %2782 = vmatpush1.xpose.msra.mxu0 0.0
      %2783 = vmatprep.subr.mxu0 0.0
      %2784 = vmatpush1.xpose.msra.mxu0 0.0
      %2785 = vmatprep.subr.mxu0 0.0
      %2786 = vmatpush1.xpose.msra.mxu0 0.0
      %2787 = vmatprep.subr.mxu0 0.0
      %2788 = vmatpush1.xpose.msra.mxu0 0.0
      %2789 = vmatprep.subr.mxu0 0.0
      %2790 = vmatpush1.xpose.msra.mxu0 0.0
      %2791 = vmatprep.subr.mxu0 0.0
      %2792 = vmatpush1.xpose.msra.mxu0 0.0
      %2793 = vmatprep.subr.mxu0 0.0
      %2794 = vmatpush1.xpose.msra.mxu0 0.0
      %2795 = vmatprep.subr.mxu0 0.0
      %2796 = vmatpush1.xpose.msra.mxu0 0.0
      %2797 = vmatprep.subr.mxu0 0.0
      %2798 = vmatpush1.xpose.msra.mxu0 0.0
      %2799 = vmatprep.subr.mxu0 0.0
      %2800 = vmatpush1.xpose.msra.mxu0 0.0
      %2801 = vmatprep.subr.mxu0 0.0
      %2802 = vmatpush1.xpose.msra.mxu0 0.0
      %2803 = vmatprep.subr.mxu0 0.0
      %2804 = vmatpush1.xpose.msra.mxu0 0.0
      %2805 = vmatprep.subr.mxu0 0.0
      %2806 = vmatpush1.xpose.msra.mxu0 0.0
      %2807 = vmatprep.subr.mxu0 0.0
      %2808 = vmatpush1.xpose.msra.mxu0 0.0
      %2809 = vmatprep.subr.mxu0 0.0
      %2810 = vmatpush1.xpose.msra.mxu0 0.0
      %2811 = vmatprep.subr.mxu0 0.0
      %2812 = vmatpush1.xpose.msra.mxu0 0.0
      %2813 = vmatprep.subr.mxu0 0.0
      %2814 = vmatpush1.xpose.msra.mxu0 0.0
      %2815 = vmatprep.subr.mxu0 0.0
      %2816 = vmatpush1.xpose.msra.mxu0 0.0
      %2817 = vmatprep.subr.mxu0 0.0
      %2818 = vmatpush1.xpose.msra.mxu0 0.0
      %2819 = vmatprep.subr.mxu0 0.0
      %2820 = vmatpush1.xpose.msra.mxu0 0.0
      %2821 = vmatprep.subr.mxu0 0.0
      %2822 = vmatpush1.xpose.msra.mxu0 0.0
      %2823 = vmatprep.subr.mxu0 0.0
      %2824 = vmatpush1.xpose.msra.mxu0 0.0
      %2825 = vmatprep.subr.mxu0 0.0
      %2826 = vmatpush1.xpose.msra.mxu0 0.0
      %2827 = vmatprep.mubr.f32.mxu0 0.0
      %2828 = vmatmul.mubr.f32.gmra.mrb[0].mxu0 %v2755
      %v2829 = vpop.f32.mrb[0].mxu0
      %v2830 = vadd.f32 0.0, %v2829
      %v2831 = vpop.f32.mrb[0].mxu0
      %2832 = vmatprep.mubr.f32.mxu0 0.0
      %2833 = vmatmul.mubr.f32.gmra.mrb[0].mxu0 %v2757
      %v2834 = vpop.f32.mrb[0].mxu0
      %v2835 = vadd.f32 0.0, %v2834
      %v2836 = vpop.f32.mrb[0].mxu0
      %2837 = vdwg.mxu0
      %2838 = vrot.lane.b32.xlu0 %v760, 112
      %v2839 = vpop.permute.xlu0 %2838
      %2840 = vrot.lane.b32.xlu0 %v765, 112
      %v2841 = vpop.permute.xlu0 %2840
      %2842 = vrot.lane.b32.xlu0 %v760, 80
      %v2843 = vpop.permute.xlu0 %2842
      %2844 = vrot.lane.b32.xlu0 %v765, 80
      %v2845 = vpop.permute.xlu0 %2844
      %v2846 = vsel %vm1018, %v2839, 0
      %v2848 = vsel %vm1018, %v2841, 0
      %v2850 = vsel %vm1018, %v2843, 0
      %v2852 = vsel %vm1018, %v2845, 0
      %2854 = vmatprep.subr.mxu0 0.0
      %2855 = vmatpush1.xpose.msra.mxu0 %v2850
      %2856 = vmatprep.subr.mxu0 0.0
      %2857 = vmatpush1.xpose.msra.mxu0 %v2852
      %2858 = vmatprep.subr.mxu0 0.0
      %2859 = vmatpush1.xpose.msra.mxu0 0.0
      %2860 = vmatprep.subr.mxu0 0.0
      %2861 = vmatpush1.xpose.msra.mxu0 0.0
      %2862 = vmatprep.subr.mxu0 0.0
      %2863 = vmatpush1.xpose.msra.mxu0 0.0
      %2864 = vmatprep.subr.mxu0 0.0
      %2865 = vmatpush1.xpose.msra.mxu0 0.0
      %2866 = vmatprep.subr.mxu0 0.0
      %2867 = vmatpush1.xpose.msra.mxu0 0.0
      %2868 = vmatprep.subr.mxu0 0.0
      %2869 = vmatpush1.xpose.msra.mxu0 0.0
      %2870 = vmatprep.subr.mxu0 0.0
      %2871 = vmatpush1.xpose.msra.mxu0 0.0
      %2872 = vmatprep.subr.mxu0 0.0
      %2873 = vmatpush1.xpose.msra.mxu0 0.0
      %2874 = vmatprep.subr.mxu0 0.0
      %2875 = vmatpush1.xpose.msra.mxu0 0.0
      %2876 = vmatprep.subr.mxu0 0.0
      %2877 = vmatpush1.xpose.msra.mxu0 0.0
      %2878 = vmatprep.subr.mxu0 0.0
      %2879 = vmatpush1.xpose.msra.mxu0 0.0
      %2880 = vmatprep.subr.mxu0 0.0
      %2881 = vmatpush1.xpose.msra.mxu0 0.0
      %2882 = vmatprep.subr.mxu0 0.0
      %2883 = vmatpush1.xpose.msra.mxu0 0.0
      %2884 = vmatprep.subr.mxu0 0.0
      %2885 = vmatpush1.xpose.msra.mxu0 0.0
      %2886 = vmatprep.subr.mxu0 0.0
      %2887 = vmatpush1.xpose.msra.mxu0 0.0
      %2888 = vmatprep.subr.mxu0 0.0
      %2889 = vmatpush1.xpose.msra.mxu0 0.0
      %2890 = vmatprep.subr.mxu0 0.0
      %2891 = vmatpush1.xpose.msra.mxu0 0.0
      %2892 = vmatprep.subr.mxu0 0.0
      %2893 = vmatpush1.xpose.msra.mxu0 0.0
      %2894 = vmatprep.subr.mxu0 0.0
      %2895 = vmatpush1.xpose.msra.mxu0 0.0
      %2896 = vmatprep.subr.mxu0 0.0
      %2897 = vmatpush1.xpose.msra.mxu0 0.0
      %2898 = vmatprep.subr.mxu0 0.0
      %2899 = vmatpush1.xpose.msra.mxu0 0.0
      %2900 = vmatprep.subr.mxu0 0.0
      %2901 = vmatpush1.xpose.msra.mxu0 0.0
      %2902 = vmatprep.subr.mxu0 0.0
      %2903 = vmatpush1.xpose.msra.mxu0 0.0
      %2904 = vmatprep.subr.mxu0 0.0
      %2905 = vmatpush1.xpose.msra.mxu0 0.0
      %2906 = vmatprep.subr.mxu0 0.0
      %2907 = vmatpush1.xpose.msra.mxu0 0.0
      %2908 = vmatprep.subr.mxu0 0.0
      %2909 = vmatpush1.xpose.msra.mxu0 0.0
      %2910 = vmatprep.subr.mxu0 0.0
      %2911 = vmatpush1.xpose.msra.mxu0 0.0
      %2912 = vmatprep.subr.mxu0 0.0
      %2913 = vmatpush1.xpose.msra.mxu0 0.0
      %2914 = vmatprep.subr.mxu0 0.0
      %2915 = vmatpush1.xpose.msra.mxu0 0.0
      %2916 = vmatprep.subr.mxu0 0.0
      %2917 = vmatpush1.xpose.msra.mxu0 0.0
      %2918 = vmatprep.mubr.f32.mxu0 0.0
      %2919 = vmatmul.mubr.f32.gmra.mrb[0].mxu0 %v2846
      %v2920 = vpop.f32.mrb[0].mxu0
      %v2921 = vadd.f32 0.0, %v2920
      %v2922 = vpop.f32.mrb[0].mxu0
      %2923 = vmatprep.mubr.f32.mxu0 0.0
      %2924 = vmatmul.mubr.f32.gmra.mrb[0].mxu0 %v2848
      %v2925 = vpop.f32.mrb[0].mxu0
      %v2926 = vadd.f32 0.0, %v2925
      %v2927 = vpop.f32.mrb[0].mxu0
      %2928 = vdwg.mxu0
      %2929 = vrot.lane.b32.xlu0 %v770, 112
      %v2930 = vpop.permute.xlu0 %2929
      %2931 = vrot.lane.b32.xlu0 %v775, 112
      %v2932 = vpop.permute.xlu0 %2931
      %2933 = vrot.lane.b32.xlu0 %v770, 80
      %v2934 = vpop.permute.xlu0 %2933
      %2935 = vrot.lane.b32.xlu0 %v775, 80
      %v2936 = vpop.permute.xlu0 %2935
      %v2937 = vsel %vm1018, %v2930, 0
      %v2939 = vsel %vm1018, %v2932, 0
      %v2941 = vsel %vm1018, %v2934, 0
      %v2943 = vsel %vm1018, %v2936, 0
      %2945 = vmatprep.subr.mxu0 0.0
      %2946 = vmatpush1.xpose.msra.mxu0 %v2941
      %2947 = vmatprep.subr.mxu0 0.0
      %2948 = vmatpush1.xpose.msra.mxu0 %v2943
      %2949 = vmatprep.subr.mxu0 0.0
      %2950 = vmatpush1.xpose.msra.mxu0 0.0
      %2951 = vmatprep.subr.mxu0 0.0
      %2952 = vmatpush1.xpose.msra.mxu0 0.0
      %2953 = vmatprep.subr.mxu0 0.0
      %2954 = vmatpush1.xpose.msra.mxu0 0.0
      %2955 = vmatprep.subr.mxu0 0.0
      %2956 = vmatpush1.xpose.msra.mxu0 0.0
      %2957 = vmatprep.subr.mxu0 0.0
      %2958 = vmatpush1.xpose.msra.mxu0 0.0
      %2959 = vmatprep.subr.mxu0 0.0
      %2960 = vmatpush1.xpose.msra.mxu0 0.0
      %2961 = vmatprep.subr.mxu0 0.0
      %2962 = vmatpush1.xpose.msra.mxu0 0.0
      %2963 = vmatprep.subr.mxu0 0.0
      %2964 = vmatpush1.xpose.msra.mxu0 0.0
      %2965 = vmatprep.subr.mxu0 0.0
      %2966 = vmatpush1.xpose.msra.mxu0 0.0
      %2967 = vmatprep.subr.mxu0 0.0
      %2968 = vmatpush1.xpose.msra.mxu0 0.0
      %2969 = vmatprep.subr.mxu0 0.0
      %2970 = vmatpush1.xpose.msra.mxu0 0.0
      %2971 = vmatprep.subr.mxu0 0.0
      %2972 = vmatpush1.xpose.msra.mxu0 0.0
      %2973 = vmatprep.subr.mxu0 0.0
      %2974 = vmatpush1.xpose.msra.mxu0 0.0
      %2975 = vmatprep.subr.mxu0 0.0
      %2976 = vmatpush1.xpose.msra.mxu0 0.0
      %2977 = vmatprep.subr.mxu0 0.0
      %2978 = vmatpush1.xpose.msra.mxu0 0.0
      %2979 = vmatprep.subr.mxu0 0.0
      %2980 = vmatpush1.xpose.msra.mxu0 0.0
      %2981 = vmatprep.subr.mxu0 0.0
      %2982 = vmatpush1.xpose.msra.mxu0 0.0
      %2983 = vmatprep.subr.mxu0 0.0
      %2984 = vmatpush1.xpose.msra.mxu0 0.0
      %2985 = vmatprep.subr.mxu0 0.0
      %2986 = vmatpush1.xpose.msra.mxu0 0.0
      %2987 = vmatprep.subr.mxu0 0.0
      %2988 = vmatpush1.xpose.msra.mxu0 0.0
      %2989 = vmatprep.subr.mxu0 0.0
      %2990 = vmatpush1.xpose.msra.mxu0 0.0
      %2991 = vmatprep.subr.mxu0 0.0
      %2992 = vmatpush1.xpose.msra.mxu0 0.0
      %2993 = vmatprep.subr.mxu0 0.0
      %2994 = vmatpush1.xpose.msra.mxu0 0.0
      %2995 = vmatprep.subr.mxu0 0.0
      %2996 = vmatpush1.xpose.msra.mxu0 0.0
      %2997 = vmatprep.subr.mxu0 0.0
      %2998 = vmatpush1.xpose.msra.mxu0 0.0
      %2999 = vmatprep.subr.mxu0 0.0
      %3000 = vmatpush1.xpose.msra.mxu0 0.0
      %3001 = vmatprep.subr.mxu0 0.0
      %3002 = vmatpush1.xpose.msra.mxu0 0.0
      %3003 = vmatprep.subr.mxu0 0.0
      %3004 = vmatpush1.xpose.msra.mxu0 0.0
      %3005 = vmatprep.subr.mxu0 0.0
      %3006 = vmatpush1.xpose.msra.mxu0 0.0
      %3007 = vmatprep.subr.mxu0 0.0
      %3008 = vmatpush1.xpose.msra.mxu0 0.0
      %3009 = vmatprep.mubr.f32.mxu0 0.0
      %3010 = vmatmul.mubr.f32.gmra.mrb[0].mxu0 %v2937
      %v3011 = vpop.f32.mrb[0].mxu0
      %v3012 = vadd.f32 0.0, %v3011
      %v3013 = vpop.f32.mrb[0].mxu0
      %3014 = vmatprep.mubr.f32.mxu0 0.0
      %3015 = vmatmul.mubr.f32.gmra.mrb[0].mxu0 %v2939
      %v3016 = vpop.f32.mrb[0].mxu0
      %v3017 = vadd.f32 0.0, %v3016
      %v3018 = vpop.f32.mrb[0].mxu0
      %3019 = vdwg.mxu0
      %3020 = vrot.lane.b32.xlu0 %v780, 112
      %v3021 = vpop.permute.xlu0 %3020
      %3022 = vrot.lane.b32.xlu0 %v785, 112
      %v3023 = vpop.permute.xlu0 %3022
      %3024 = vrot.lane.b32.xlu0 %v780, 80
      %v3025 = vpop.permute.xlu0 %3024
      %3026 = vrot.lane.b32.xlu0 %v785, 80
      %v3027 = vpop.permute.xlu0 %3026
      %v3028 = vsel %vm1018, %v3021, 0
      %v3030 = vsel %vm1018, %v3023, 0
      %v3032 = vsel %vm1018, %v3025, 0
      %v3034 = vsel %vm1018, %v3027, 0
      %3036 = vmatprep.subr.mxu0 0.0
      %3037 = vmatpush1.xpose.msra.mxu0 %v3032
      %3038 = vmatprep.subr.mxu0 0.0
      %3039 = vmatpush1.xpose.msra.mxu0 %v3034
      %3040 = vmatprep.subr.mxu0 0.0
      %3041 = vmatpush1.xpose.msra.mxu0 0.0
      %3042 = vmatprep.subr.mxu0 0.0
      %3043 = vmatpush1.xpose.msra.mxu0 0.0
      %3044 = vmatprep.subr.mxu0 0.0
      %3045 = vmatpush1.xpose.msra.mxu0 0.0
      %3046 = vmatprep.subr.mxu0 0.0
      %3047 = vmatpush1.xpose.msra.mxu0 0.0
      %3048 = vmatprep.subr.mxu0 0.0
      %3049 = vmatpush1.xpose.msra.mxu0 0.0
      %3050 = vmatprep.subr.mxu0 0.0
      %3051 = vmatpush1.xpose.msra.mxu0 0.0
      %3052 = vmatprep.subr.mxu0 0.0
      %3053 = vmatpush1.xpose.msra.mxu0 0.0
      %3054 = vmatprep.subr.mxu0 0.0
      %3055 = vmatpush1.xpose.msra.mxu0 0.0
      %3056 = vmatprep.subr.mxu0 0.0
      %3057 = vmatpush1.xpose.msra.mxu0 0.0
      %3058 = vmatprep.subr.mxu0 0.0
      %3059 = vmatpush1.xpose.msra.mxu0 0.0
      %3060 = vmatprep.subr.mxu0 0.0
      %3061 = vmatpush1.xpose.msra.mxu0 0.0
      %3062 = vmatprep.subr.mxu0 0.0
      %3063 = vmatpush1.xpose.msra.mxu0 0.0
      %3064 = vmatprep.subr.mxu0 0.0
      %3065 = vmatpush1.xpose.msra.mxu0 0.0
      %3066 = vmatprep.subr.mxu0 0.0
      %3067 = vmatpush1.xpose.msra.mxu0 0.0
      %3068 = vmatprep.subr.mxu0 0.0
      %3069 = vmatpush1.xpose.msra.mxu0 0.0
      %3070 = vmatprep.subr.mxu0 0.0
      %3071 = vmatpush1.xpose.msra.mxu0 0.0
      %3072 = vmatprep.subr.mxu0 0.0
      %3073 = vmatpush1.xpose.msra.mxu0 0.0
      %3074 = vmatprep.subr.mxu0 0.0
      %3075 = vmatpush1.xpose.msra.mxu0 0.0
      %3076 = vmatprep.subr.mxu0 0.0
      %3077 = vmatpush1.xpose.msra.mxu0 0.0
      %3078 = vmatprep.subr.mxu0 0.0
      %3079 = vmatpush1.xpose.msra.mxu0 0.0
      %3080 = vmatprep.subr.mxu0 0.0
      %3081 = vmatpush1.xpose.msra.mxu0 0.0
      %3082 = vmatprep.subr.mxu0 0.0
      %3083 = vmatpush1.xpose.msra.mxu0 0.0
      %3084 = vmatprep.subr.mxu0 0.0
      %3085 = vmatpush1.xpose.msra.mxu0 0.0
      %3086 = vmatprep.subr.mxu0 0.0
      %3087 = vmatpush1.xpose.msra.mxu0 0.0
      %3088 = vmatprep.subr.mxu0 0.0
      %3089 = vmatpush1.xpose.msra.mxu0 0.0
      %3090 = vmatprep.subr.mxu0 0.0
      %3091 = vmatpush1.xpose.msra.mxu0 0.0
      %3092 = vmatprep.subr.mxu0 0.0
      %3093 = vmatpush1.xpose.msra.mxu0 0.0
      %3094 = vmatprep.subr.mxu0 0.0
      %3095 = vmatpush1.xpose.msra.mxu0 0.0
      %3096 = vmatprep.subr.mxu0 0.0
      %3097 = vmatpush1.xpose.msra.mxu0 0.0
      %3098 = vmatprep.subr.mxu0 0.0
      %3099 = vmatpush1.xpose.msra.mxu0 0.0
      %3100 = vmatprep.mubr.f32.mxu0 0.0
      %3101 = vmatmul.mubr.f32.gmra.mrb[0].mxu0 %v3028
      %v3102 = vpop.f32.mrb[0].mxu0
      %v3103 = vadd.f32 0.0, %v3102
      %v3104 = vpop.f32.mrb[0].mxu0
      %3105 = vmatprep.mubr.f32.mxu0 0.0
      %3106 = vmatmul.mubr.f32.gmra.mrb[0].mxu0 %v3030
      %v3107 = vpop.f32.mrb[0].mxu0
      %v3108 = vadd.f32 0.0, %v3107
      %v3109 = vpop.f32.mrb[0].mxu0
      %3110 = vdwg.mxu0
      %3111 = vrot.lane.b32.xlu0 %v790, 112
      %v3112 = vpop.permute.xlu0 %3111
      %3113 = vrot.lane.b32.xlu0 %v795, 112
      %v3114 = vpop.permute.xlu0 %3113
      %3115 = vrot.lane.b32.xlu0 %v790, 80
      %v3116 = vpop.permute.xlu0 %3115
      %3117 = vrot.lane.b32.xlu0 %v795, 80
      %v3118 = vpop.permute.xlu0 %3117
      %v3119 = vsel %vm1018, %v3112, 0
      %v3121 = vsel %vm1018, %v3114, 0
      %v3123 = vsel %vm1018, %v3116, 0
      %v3125 = vsel %vm1018, %v3118, 0
      %3127 = vmatprep.subr.mxu0 0.0
      %3128 = vmatpush1.xpose.msra.mxu0 %v3123
      %3129 = vmatprep.subr.mxu0 0.0
      %3130 = vmatpush1.xpose.msra.mxu0 %v3125
      %3131 = vmatprep.subr.mxu0 0.0
      %3132 = vmatpush1.xpose.msra.mxu0 0.0
      %3133 = vmatprep.subr.mxu0 0.0
      %3134 = vmatpush1.xpose.msra.mxu0 0.0
      %3135 = vmatprep.subr.mxu0 0.0
      %3136 = vmatpush1.xpose.msra.mxu0 0.0
      %3137 = vmatprep.subr.mxu0 0.0
      %3138 = vmatpush1.xpose.msra.mxu0 0.0
      %3139 = vmatprep.subr.mxu0 0.0
      %3140 = vmatpush1.xpose.msra.mxu0 0.0
      %3141 = vmatprep.subr.mxu0 0.0
      %3142 = vmatpush1.xpose.msra.mxu0 0.0
      %3143 = vmatprep.subr.mxu0 0.0
      %3144 = vmatpush1.xpose.msra.mxu0 0.0
      %3145 = vmatprep.subr.mxu0 0.0
      %3146 = vmatpush1.xpose.msra.mxu0 0.0
      %3147 = vmatprep.subr.mxu0 0.0
      %3148 = vmatpush1.xpose.msra.mxu0 0.0
      %3149 = vmatprep.subr.mxu0 0.0
      %3150 = vmatpush1.xpose.msra.mxu0 0.0
      %3151 = vmatprep.subr.mxu0 0.0
      %3152 = vmatpush1.xpose.msra.mxu0 0.0
      %3153 = vmatprep.subr.mxu0 0.0
      %3154 = vmatpush1.xpose.msra.mxu0 0.0
      %3155 = vmatprep.subr.mxu0 0.0
      %3156 = vmatpush1.xpose.msra.mxu0 0.0
      %3157 = vmatprep.subr.mxu0 0.0
      %3158 = vmatpush1.xpose.msra.mxu0 0.0
      %3159 = vmatprep.subr.mxu0 0.0
      %3160 = vmatpush1.xpose.msra.mxu0 0.0
      %3161 = vmatprep.subr.mxu0 0.0
      %3162 = vmatpush1.xpose.msra.mxu0 0.0
      %3163 = vmatprep.subr.mxu0 0.0
      %3164 = vmatpush1.xpose.msra.mxu0 0.0
      %3165 = vmatprep.subr.mxu0 0.0
      %3166 = vmatpush1.xpose.msra.mxu0 0.0
      %3167 = vmatprep.subr.mxu0 0.0
      %3168 = vmatpush1.xpose.msra.mxu0 0.0
      %3169 = vmatprep.subr.mxu0 0.0
      %3170 = vmatpush1.xpose.msra.mxu0 0.0
      %3171 = vmatprep.subr.mxu0 0.0
      %3172 = vmatpush1.xpose.msra.mxu0 0.0
      %3173 = vmatprep.subr.mxu0 0.0
      %3174 = vmatpush1.xpose.msra.mxu0 0.0
      %3175 = vmatprep.subr.mxu0 0.0
      %3176 = vmatpush1.xpose.msra.mxu0 0.0
      %3177 = vmatprep.subr.mxu0 0.0
      %3178 = vmatpush1.xpose.msra.mxu0 0.0
      %3179 = vmatprep.subr.mxu0 0.0
      %3180 = vmatpush1.xpose.msra.mxu0 0.0
      %3181 = vmatprep.subr.mxu0 0.0
      %3182 = vmatpush1.xpose.msra.mxu0 0.0
      %3183 = vmatprep.subr.mxu0 0.0
      %3184 = vmatpush1.xpose.msra.mxu0 0.0
      %3185 = vmatprep.subr.mxu0 0.0
      %3186 = vmatpush1.xpose.msra.mxu0 0.0
      %3187 = vmatprep.subr.mxu0 0.0
      %3188 = vmatpush1.xpose.msra.mxu0 0.0
      %3189 = vmatprep.subr.mxu0 0.0
      %3190 = vmatpush1.xpose.msra.mxu0 0.0
      %3191 = vmatprep.mubr.f32.mxu0 0.0
      %3192 = vmatmul.mubr.f32.gmra.mrb[0].mxu0 %v3119
      %v3193 = vpop.f32.mrb[0].mxu0
      %v3194 = vadd.f32 0.0, %v3193
      %v3195 = vpop.f32.mrb[0].mxu0
      %3196 = vmatprep.mubr.f32.mxu0 0.0
      %3197 = vmatmul.mubr.f32.gmra.mrb[0].mxu0 %v3121
      %v3198 = vpop.f32.mrb[0].mxu0
      %v3199 = vadd.f32 0.0, %v3198
      %v3200 = vpop.f32.mrb[0].mxu0
      %3201 = vdwg.mxu0
      %3202 = vrot.lane.b32.xlu0 %v800, 112
      %v3203 = vpop.permute.xlu0 %3202
      %3204 = vrot.lane.b32.xlu0 %v805, 112
      %v3205 = vpop.permute.xlu0 %3204
      %3206 = vrot.lane.b32.xlu0 %v800, 80
      %v3207 = vpop.permute.xlu0 %3206
      %3208 = vrot.lane.b32.xlu0 %v805, 80
      %v3209 = vpop.permute.xlu0 %3208
      %v3210 = vsel %vm1018, %v3203, 0
      %v3212 = vsel %vm1018, %v3205, 0
      %v3214 = vsel %vm1018, %v3207, 0
      %v3216 = vsel %vm1018, %v3209, 0
      %3218 = vmatprep.subr.mxu0 0.0
      %3219 = vmatpush1.xpose.msra.mxu0 %v3214
      %3220 = vmatprep.subr.mxu0 0.0
      %3221 = vmatpush1.xpose.msra.mxu0 %v3216
      %3222 = vmatprep.subr.mxu0 0.0
      %3223 = vmatpush1.xpose.msra.mxu0 0.0
      %3224 = vmatprep.subr.mxu0 0.0
      %3225 = vmatpush1.xpose.msra.mxu0 0.0
      %3226 = vmatprep.subr.mxu0 0.0
      %3227 = vmatpush1.xpose.msra.mxu0 0.0
      %3228 = vmatprep.subr.mxu0 0.0
      %3229 = vmatpush1.xpose.msra.mxu0 0.0
      %3230 = vmatprep.subr.mxu0 0.0
      %3231 = vmatpush1.xpose.msra.mxu0 0.0
      %3232 = vmatprep.subr.mxu0 0.0
      %3233 = vmatpush1.xpose.msra.mxu0 0.0
      %3234 = vmatprep.subr.mxu0 0.0
      %3235 = vmatpush1.xpose.msra.mxu0 0.0
      %3236 = vmatprep.subr.mxu0 0.0
      %3237 = vmatpush1.xpose.msra.mxu0 0.0
      %3238 = vmatprep.subr.mxu0 0.0
      %3239 = vmatpush1.xpose.msra.mxu0 0.0
      %3240 = vmatprep.subr.mxu0 0.0
      %3241 = vmatpush1.xpose.msra.mxu0 0.0
      %3242 = vmatprep.subr.mxu0 0.0
      %3243 = vmatpush1.xpose.msra.mxu0 0.0
      %3244 = vmatprep.subr.mxu0 0.0
      %3245 = vmatpush1.xpose.msra.mxu0 0.0
      %3246 = vmatprep.subr.mxu0 0.0
      %3247 = vmatpush1.xpose.msra.mxu0 0.0
      %3248 = vmatprep.subr.mxu0 0.0
      %3249 = vmatpush1.xpose.msra.mxu0 0.0
      %3250 = vmatprep.subr.mxu0 0.0
      %3251 = vmatpush1.xpose.msra.mxu0 0.0
      %3252 = vmatprep.subr.mxu0 0.0
      %3253 = vmatpush1.xpose.msra.mxu0 0.0
      %3254 = vmatprep.subr.mxu0 0.0
      %3255 = vmatpush1.xpose.msra.mxu0 0.0
      %3256 = vmatprep.subr.mxu0 0.0
      %3257 = vmatpush1.xpose.msra.mxu0 0.0
      %3258 = vmatprep.subr.mxu0 0.0
      %3259 = vmatpush1.xpose.msra.mxu0 0.0
      %3260 = vmatprep.subr.mxu0 0.0
      %3261 = vmatpush1.xpose.msra.mxu0 0.0
      %3262 = vmatprep.subr.mxu0 0.0
      %3263 = vmatpush1.xpose.msra.mxu0 0.0
      %3264 = vmatprep.subr.mxu0 0.0
      %3265 = vmatpush1.xpose.msra.mxu0 0.0
      %3266 = vmatprep.subr.mxu0 0.0
      %3267 = vmatpush1.xpose.msra.mxu0 0.0
      %3268 = vmatprep.subr.mxu0 0.0
      %3269 = vmatpush1.xpose.msra.mxu0 0.0
      %3270 = vmatprep.subr.mxu0 0.0
      %3271 = vmatpush1.xpose.msra.mxu0 0.0
      %3272 = vmatprep.subr.mxu0 0.0
      %3273 = vmatpush1.xpose.msra.mxu0 0.0
      %3274 = vmatprep.subr.mxu0 0.0
      %3275 = vmatpush1.xpose.msra.mxu0 0.0
      %3276 = vmatprep.subr.mxu0 0.0
      %3277 = vmatpush1.xpose.msra.mxu0 0.0
      %3278 = vmatprep.subr.mxu0 0.0
      %3279 = vmatpush1.xpose.msra.mxu0 0.0
      %3280 = vmatprep.subr.mxu0 0.0
      %3281 = vmatpush1.xpose.msra.mxu0 0.0
      %3282 = vmatprep.mubr.f32.mxu0 0.0
      %3283 = vmatmul.mubr.f32.gmra.mrb[0].mxu0 %v3210
      %v3284 = vpop.f32.mrb[0].mxu0
      %v3285 = vadd.f32 0.0, %v3284
      %v3286 = vpop.f32.mrb[0].mxu0
      %3287 = vmatprep.mubr.f32.mxu0 0.0
      %3288 = vmatmul.mubr.f32.gmra.mrb[0].mxu0 %v3212
      %v3289 = vpop.f32.mrb[0].mxu0
      %v3290 = vadd.f32 0.0, %v3289
      %v3291 = vpop.f32.mrb[0].mxu0
      %3292 = vdwg.mxu0
      %v3293 = vmul.f32 %v2648, 0.25
      %v3294 = vmul.f32 %v2653, 0.25
      %v3295 = vmul.f32 %v2739, 0.25
      %v3296 = vmul.f32 %v2744, 0.25
      %v3297 = vmul.f32 %v2830, 0.25
      %v3298 = vmul.f32 %v2835, 0.25
      %v3299 = vmul.f32 %v2921, 0.25
      %v3300 = vmul.f32 %v2926, 0.25
      %v3301 = vmul.f32 %v3012, 0.25
      %v3302 = vmul.f32 %v3017, 0.25
      %v3303 = vmul.f32 %v3103, 0.25
      %v3304 = vmul.f32 %v3108, 0.25
      %v3305 = vmul.f32 %v3194, 0.25
      %v3306 = vmul.f32 %v3199, 0.25
      %v3307 = vmul.f32 %v3285, 0.25
      %v3308 = vmul.f32 %v3290, 0.25
      %v3309 = vsel %vm1018, %v3293, -inf
      %3310 = vmax.xlane.f32.xlu0 %v3309
      %v3311 = vpop.xlane.xlu0 %3310
      %v3312 = vsel %vm1018, %v3294, -inf
      %3313 = vmax.xlane.f32.xlu0 %v3312
      %v3314 = vpop.xlane.xlu0 %3313
      %v3315 = vsel %vm1018, %v3295, -inf
      %3316 = vmax.xlane.f32.xlu0 %v3315
      %v3317 = vpop.xlane.xlu0 %3316
      %v3318 = vsel %vm1018, %v3296, -inf
      %3319 = vmax.xlane.f32.xlu0 %v3318
      %v3320 = vpop.xlane.xlu0 %3319
      %v3321 = vsel %vm1018, %v3297, -inf
      %3322 = vmax.xlane.f32.xlu0 %v3321
      %v3323 = vpop.xlane.xlu0 %3322
      %v3324 = vsel %vm1018, %v3298, -inf
      %3325 = vmax.xlane.f32.xlu0 %v3324
      %v3326 = vpop.xlane.xlu0 %3325
      %v3327 = vsel %vm1018, %v3299, -inf
      %3328 = vmax.xlane.f32.xlu0 %v3327
      %v3329 = vpop.xlane.xlu0 %3328
      %v3330 = vsel %vm1018, %v3300, -inf
      %3331 = vmax.xlane.f32.xlu0 %v3330
      %v3332 = vpop.xlane.xlu0 %3331
      %v3333 = vsel %vm1018, %v3301, -inf
      %3334 = vmax.xlane.f32.xlu0 %v3333
      %v3335 = vpop.xlane.xlu0 %3334
      %v3336 = vsel %vm1018, %v3302, -inf
      %3337 = vmax.xlane.f32.xlu0 %v3336
      %v3338 = vpop.xlane.xlu0 %3337
      %v3339 = vsel %vm1018, %v3303, -inf
      %3340 = vmax.xlane.f32.xlu0 %v3339
      %v3341 = vpop.xlane.xlu0 %3340
      %v3342 = vsel %vm1018, %v3304, -inf
      %3343 = vmax.xlane.f32.xlu0 %v3342
      %v3344 = vpop.xlane.xlu0 %3343
      %v3345 = vsel %vm1018, %v3305, -inf
      %3346 = vmax.xlane.f32.xlu0 %v3345
      %v3347 = vpop.xlane.xlu0 %3346
      %v3348 = vsel %vm1018, %v3306, -inf
      %3349 = vmax.xlane.f32.xlu0 %v3348
      %v3350 = vpop.xlane.xlu0 %3349
      %v3351 = vsel %vm1018, %v3307, -inf
      %3352 = vmax.xlane.f32.xlu0 %v3351
      %v3353 = vpop.xlane.xlu0 %3352
      %v3354 = vsel %vm1018, %v3308, -inf
      %3355 = vmax.xlane.f32.xlu0 %v3354
      %v3356 = vpop.xlane.xlu0 %3355
      %v3357 = vsub.f32 %v3293, %v3311
      %v3358 = vsub.f32 %v3294, %v3314
      %v3359 = vsub.f32 %v3295, %v3317
      %v3360 = vsub.f32 %v3296, %v3320
      %v3361 = vsub.f32 %v3297, %v3323
      %v3362 = vsub.f32 %v3298, %v3326
      %v3363 = vsub.f32 %v3299, %v3329
      %v3364 = vsub.f32 %v3300, %v3332
      %v3365 = vsub.f32 %v3301, %v3335
      %v3366 = vsub.f32 %v3302, %v3338
      %v3367 = vsub.f32 %v3303, %v3341
      %v3368 = vsub.f32 %v3304, %v3344
      %v3369 = vsub.f32 %v3305, %v3347
      %v3370 = vsub.f32 %v3306, %v3350
      %v3371 = vsub.f32 %v3307, %v3353
      %v3372 = vsub.f32 %v3308, %v3356
      %v3373 = vmul.f32 %v3357, 1.442695
      %v3374 = vpow.pop %v3373
      %v3375 = vmul.f32 %v3358, 1.442695
      %v3376 = vpow.pop %v3375
      %v3377 = vmul.f32 %v3359, 1.442695
      %v3378 = vpow.pop %v3377
      %v3379 = vmul.f32 %v3360, 1.442695
      %v3380 = vpow.pop %v3379
      %v3381 = vmul.f32 %v3361, 1.442695
      %v3382 = vpow.pop %v3381
      %v3383 = vmul.f32 %v3362, 1.442695
      %v3384 = vpow.pop %v3383
      %v3385 = vmul.f32 %v3363, 1.442695
      %v3386 = vpow.pop %v3385
      %v3387 = vmul.f32 %v3364, 1.442695
      %v3388 = vpow.pop %v3387
      %v3389 = vmul.f32 %v3365, 1.442695
      %v3390 = vpow.pop %v3389
      %v3391 = vmul.f32 %v3366, 1.442695
      %v3392 = vpow.pop %v3391
      %v3393 = vmul.f32 %v3367, 1.442695
      %v3394 = vpow.pop %v3393
      %v3395 = vmul.f32 %v3368, 1.442695
      %v3396 = vpow.pop %v3395
      %v3397 = vmul.f32 %v3369, 1.442695
      %v3398 = vpow.pop %v3397
      %v3399 = vmul.f32 %v3370, 1.442695
      %v3400 = vpow.pop %v3399
      %v3401 = vmul.f32 %v3371, 1.442695
      %v3402 = vpow.pop %v3401
      %v3403 = vmul.f32 %v3372, 1.442695
      %v3404 = vpow.pop %v3403
      %v3405 = vsel %vm1018, %v3374, 0.0
      %3406 = vadd.xlane.f32.xlu0 %v3405
      %v3407 = vpop.xlane.xlu0 %3406
      %v3408 = vsel %vm1018, %v3376, 0.0
      %3409 = vadd.xlane.f32.xlu0 %v3408
      %v3410 = vpop.xlane.xlu0 %3409
      %v3411 = vsel %vm1018, %v3378, 0.0
      %3412 = vadd.xlane.f32.xlu0 %v3411
      %v3413 = vpop.xlane.xlu0 %3412
      %v3414 = vsel %vm1018, %v3380, 0.0
      %3415 = vadd.xlane.f32.xlu0 %v3414
      %v3416 = vpop.xlane.xlu0 %3415
      %v3417 = vsel %vm1018, %v3382, 0.0
      %3418 = vadd.xlane.f32.xlu0 %v3417
      %v3419 = vpop.xlane.xlu0 %3418
      %v3420 = vsel %vm1018, %v3384, 0.0
      %3421 = vadd.xlane.f32.xlu0 %v3420
      %v3422 = vpop.xlane.xlu0 %3421
      %v3423 = vsel %vm1018, %v3386, 0.0
      %3424 = vadd.xlane.f32.xlu0 %v3423
      %v3425 = vpop.xlane.xlu0 %3424
      %v3426 = vsel %vm1018, %v3388, 0.0
      %3427 = vadd.xlane.f32.xlu0 %v3426
      %v3428 = vpop.xlane.xlu0 %3427
      %v3429 = vsel %vm1018, %v3390, 0.0
      %3430 = vadd.xlane.f32.xlu0 %v3429
      %v3431 = vpop.xlane.xlu0 %3430
      %v3432 = vsel %vm1018, %v3392, 0.0
      %3433 = vadd.xlane.f32.xlu0 %v3432
      %v3434 = vpop.xlane.xlu0 %3433
      %v3435 = vsel %vm1018, %v3394, 0.0
      %3436 = vadd.xlane.f32.xlu0 %v3435
      %v3437 = vpop.xlane.xlu0 %3436
      %v3438 = vsel %vm1018, %v3396, 0.0
      %3439 = vadd.xlane.f32.xlu0 %v3438
      %v3440 = vpop.xlane.xlu0 %3439
      %v3441 = vsel %vm1018, %v3398, 0.0
      %3442 = vadd.xlane.f32.xlu0 %v3441
      %v3443 = vpop.xlane.xlu0 %3442
      %v3444 = vsel %vm1018, %v3400, 0.0
      %3445 = vadd.xlane.f32.xlu0 %v3444
      %v3446 = vpop.xlane.xlu0 %3445
      %v3447 = vsel %vm1018, %v3402, 0.0
      %3448 = vadd.xlane.f32.xlu0 %v3447
      %v3449 = vpop.xlane.xlu0 %3448
      %v3450 = vsel %vm1018, %v3404, 0.0
      %3451 = vadd.xlane.f32.xlu0 %v3450
      %v3452 = vpop.xlane.xlu0 %3451
      %v3453 = vrcp.pop %v3407
      %v3454 = vmul.f32 %v3374, %v3453
      %v3455 = vrcp.pop %v3410
      %v3456 = vmul.f32 %v3376, %v3455
      %v3457 = vrcp.pop %v3413
      %v3458 = vmul.f32 %v3378, %v3457
      %v3459 = vrcp.pop %v3416
      %v3460 = vmul.f32 %v3380, %v3459
      %v3461 = vrcp.pop %v3419
      %v3462 = vmul.f32 %v3382, %v3461
      %v3463 = vrcp.pop %v3422
      %v3464 = vmul.f32 %v3384, %v3463
      %v3465 = vrcp.pop %v3425
      %v3466 = vmul.f32 %v3386, %v3465
      %v3467 = vrcp.pop %v3428
      %v3468 = vmul.f32 %v3388, %v3467
      %v3469 = vrcp.pop %v3431
      %v3470 = vmul.f32 %v3390, %v3469
      %v3471 = vrcp.pop %v3434
      %v3472 = vmul.f32 %v3392, %v3471
      %v3473 = vrcp.pop %v3437
      %v3474 = vmul.f32 %v3394, %v3473
      %v3475 = vrcp.pop %v3440
      %v3476 = vmul.f32 %v3396, %v3475
      %v3477 = vrcp.pop %v3443
      %v3478 = vmul.f32 %v3398, %v3477
      %v3479 = vrcp.pop %v3446
      %v3480 = vmul.f32 %v3400, %v3479
      %v3481 = vrcp.pop %v3449
      %v3482 = vmul.f32 %v3402, %v3481
      %v3483 = vrcp.pop %v3452
      %v3484 = vmul.f32 %v3404, %v3483
      %3487 = vrot.lane.b32.xlu0 %v934, 112
      %v3488 = vpop.permute.xlu0 %3487
      %3489 = vrot.lane.b32.xlu0 %v939, 112
      %v3490 = vpop.permute.xlu0 %3489
      %v3494 = vsel %vm1018, %v3454, 0
      %v3497 = vsel %vm1018, %v3456, 0
      %3499 = vmatprep.subr.mxu0 0.0
      %3500 = vmatpush1.msra.mxu0 %v3488
      %3501 = vmatprep.subr.mxu0 0.0
      %3502 = vmatpush1.msra.mxu0 %v3490
      %3503 = vmatprep.subr.mxu0 0.0
      %3504 = vmatpush1.msra.mxu0 0.0
      %3505 = vmatprep.subr.mxu0 0.0
      %3506 = vmatpush1.msra.mxu0 0.0
      %3507 = vmatprep.subr.mxu0 0.0
      %3508 = vmatpush1.msra.mxu0 0.0
      %3509 = vmatprep.subr.mxu0 0.0
      %3510 = vmatpush1.msra.mxu0 0.0
      %3511 = vmatprep.subr.mxu0 0.0
      %3512 = vmatpush1.msra.mxu0 0.0
      %3513 = vmatprep.subr.mxu0 0.0
      %3514 = vmatpush1.msra.mxu0 0.0
      %3515 = vmatprep.subr.mxu0 0.0
      %3516 = vmatpush1.msra.mxu0 0.0
      %3517 = vmatprep.subr.mxu0 0.0
      %3518 = vmatpush1.msra.mxu0 0.0
      %3519 = vmatprep.subr.mxu0 0.0
      %3520 = vmatpush1.msra.mxu0 0.0
      %3521 = vmatprep.subr.mxu0 0.0
      %3522 = vmatpush1.msra.mxu0 0.0
      %3523 = vmatprep.subr.mxu0 0.0
      %3524 = vmatpush1.msra.mxu0 0.0
      %3525 = vmatprep.subr.mxu0 0.0
      %3526 = vmatpush1.msra.mxu0 0.0
      %3527 = vmatprep.subr.mxu0 0.0
      %3528 = vmatpush1.msra.mxu0 0.0
      %3529 = vmatprep.subr.mxu0 0.0
      %3530 = vmatpush1.msra.mxu0 0.0
      %3531 = vmatprep.subr.mxu0 0.0
      %3532 = vmatpush1.msra.mxu0 0.0
      %3533 = vmatprep.subr.mxu0 0.0
      %3534 = vmatpush1.msra.mxu0 0.0
      %3535 = vmatprep.subr.mxu0 0.0
      %3536 = vmatpush1.msra.mxu0 0.0
      %3537 = vmatprep.subr.mxu0 0.0
      %3538 = vmatpush1.msra.mxu0 0.0
      %3539 = vmatprep.subr.mxu0 0.0
      %3540 = vmatpush1.msra.mxu0 0.0
      %3541 = vmatprep.subr.mxu0 0.0
      %3542 = vmatpush1.msra.mxu0 0.0
      %3543 = vmatprep.subr.mxu0 0.0
      %3544 = vmatpush1.msra.mxu0 0.0
      %3545 = vmatprep.subr.mxu0 0.0
      %3546 = vmatpush1.msra.mxu0 0.0
      %3547 = vmatprep.subr.mxu0 0.0
      %3548 = vmatpush1.msra.mxu0 0.0
      %3549 = vmatprep.subr.mxu0 0.0
      %3550 = vmatpush1.msra.mxu0 0.0
      %3551 = vmatprep.subr.mxu0 0.0
      %3552 = vmatpush1.msra.mxu0 0.0
      %3553 = vmatprep.subr.mxu0 0.0
      %3554 = vmatpush1.msra.mxu0 0.0
      %3555 = vmatprep.subr.mxu0 0.0
      %3556 = vmatpush1.msra.mxu0 0.0
      %3557 = vmatprep.subr.mxu0 0.0
      %3558 = vmatpush1.msra.mxu0 0.0
      %3559 = vmatprep.subr.mxu0 0.0
      %3560 = vmatpush1.msra.mxu0 0.0
      %3561 = vmatprep.subr.mxu0 0.0
      %3562 = vmatpush1.msra.mxu0 0.0
      %3563 = vmatprep.mubr.f32.mxu0 0.0
      %3564 = vmatmul.mubr.f32.gmra.mrb[0].mxu0 %v3494
      %v3565 = vpop.f32.mrb[0].mxu0
      %v3566 = vadd.f32 0.0, %v3565
      %v3567 = vpop.f32.mrb[0].mxu0
      %3568 = vmatprep.mubr.f32.mxu0 0.0
      %3569 = vmatmul.mubr.f32.gmra.mrb[0].mxu0 %v3497
      %v3570 = vpop.f32.mrb[0].mxu0
      %v3571 = vadd.f32 0.0, %v3570
      %v3572 = vpop.f32.mrb[0].mxu0
      %3573 = vdwg.mxu0
      %3576 = vrot.lane.b32.xlu0 %v944, 112
      %v3577 = vpop.permute.xlu0 %3576
      %3578 = vrot.lane.b32.xlu0 %v949, 112
      %v3579 = vpop.permute.xlu0 %3578
      %v3583 = vsel %vm1018, %v3458, 0
      %v3586 = vsel %vm1018, %v3460, 0
      %3588 = vmatprep.subr.mxu0 0.0
      %3589 = vmatpush1.msra.mxu0 %v3577
      %3590 = vmatprep.subr.mxu0 0.0
      %3591 = vmatpush1.msra.mxu0 %v3579
      %3592 = vmatprep.subr.mxu0 0.0
      %3593 = vmatpush1.msra.mxu0 0.0
      %3594 = vmatprep.subr.mxu0 0.0
      %3595 = vmatpush1.msra.mxu0 0.0
      %3596 = vmatprep.subr.mxu0 0.0
      %3597 = vmatpush1.msra.mxu0 0.0
      %3598 = vmatprep.subr.mxu0 0.0
      %3599 = vmatpush1.msra.mxu0 0.0
      %3600 = vmatprep.subr.mxu0 0.0
      %3601 = vmatpush1.msra.mxu0 0.0
      %3602 = vmatprep.subr.mxu0 0.0
      %3603 = vmatpush1.msra.mxu0 0.0
      %3604 = vmatprep.subr.mxu0 0.0
      %3605 = vmatpush1.msra.mxu0 0.0
      %3606 = vmatprep.subr.mxu0 0.0
      %3607 = vmatpush1.msra.mxu0 0.0
      %3608 = vmatprep.subr.mxu0 0.0
      %3609 = vmatpush1.msra.mxu0 0.0
      %3610 = vmatprep.subr.mxu0 0.0
      %3611 = vmatpush1.msra.mxu0 0.0
      %3612 = vmatprep.subr.mxu0 0.0
      %3613 = vmatpush1.msra.mxu0 0.0
      %3614 = vmatprep.subr.mxu0 0.0
      %3615 = vmatpush1.msra.mxu0 0.0
      %3616 = vmatprep.subr.mxu0 0.0
      %3617 = vmatpush1.msra.mxu0 0.0
      %3618 = vmatprep.subr.mxu0 0.0
      %3619 = vmatpush1.msra.mxu0 0.0
      %3620 = vmatprep.subr.mxu0 0.0
      %3621 = vmatpush1.msra.mxu0 0.0
      %3622 = vmatprep.subr.mxu0 0.0
      %3623 = vmatpush1.msra.mxu0 0.0
      %3624 = vmatprep.subr.mxu0 0.0
      %3625 = vmatpush1.msra.mxu0 0.0
      %3626 = vmatprep.subr.mxu0 0.0
      %3627 = vmatpush1.msra.mxu0 0.0
      %3628 = vmatprep.subr.mxu0 0.0
      %3629 = vmatpush1.msra.mxu0 0.0
      %3630 = vmatprep.subr.mxu0 0.0
      %3631 = vmatpush1.msra.mxu0 0.0
      %3632 = vmatprep.subr.mxu0 0.0
      %3633 = vmatpush1.msra.mxu0 0.0
      %3634 = vmatprep.subr.mxu0 0.0
      %3635 = vmatpush1.msra.mxu0 0.0
      %3636 = vmatprep.subr.mxu0 0.0
      %3637 = vmatpush1.msra.mxu0 0.0
      %3638 = vmatprep.subr.mxu0 0.0
      %3639 = vmatpush1.msra.mxu0 0.0
      %3640 = vmatprep.subr.mxu0 0.0
      %3641 = vmatpush1.msra.mxu0 0.0
      %3642 = vmatprep.subr.mxu0 0.0
      %3643 = vmatpush1.msra.mxu0 0.0
      %3644 = vmatprep.subr.mxu0 0.0
      %3645 = vmatpush1.msra.mxu0 0.0
      %3646 = vmatprep.subr.mxu0 0.0
      %3647 = vmatpush1.msra.mxu0 0.0
      %3648 = vmatprep.subr.mxu0 0.0
      %3649 = vmatpush1.msra.mxu0 0.0
      %3650 = vmatprep.subr.mxu0 0.0
      %3651 = vmatpush1.msra.mxu0 0.0
      %3652 = vmatprep.mubr.f32.mxu0 0.0
      %3653 = vmatmul.mubr.f32.gmra.mrb[0].mxu0 %v3583
      %v3654 = vpop.f32.mrb[0].mxu0
      %v3655 = vadd.f32 0.0, %v3654
      %v3656 = vpop.f32.mrb[0].mxu0
      %3657 = vmatprep.mubr.f32.mxu0 0.0
      %3658 = vmatmul.mubr.f32.gmra.mrb[0].mxu0 %v3586
      %v3659 = vpop.f32.mrb[0].mxu0
      %v3660 = vadd.f32 0.0, %v3659
      %v3661 = vpop.f32.mrb[0].mxu0
      %3662 = vdwg.mxu0
      %3665 = vrot.lane.b32.xlu0 %v954, 112
      %v3666 = vpop.permute.xlu0 %3665
      %3667 = vrot.lane.b32.xlu0 %v959, 112
      %v3668 = vpop.permute.xlu0 %3667
      %v3672 = vsel %vm1018, %v3462, 0
      %v3675 = vsel %vm1018, %v3464, 0
      %3677 = vmatprep.subr.mxu0 0.0
      %3678 = vmatpush1.msra.mxu0 %v3666
      %3679 = vmatprep.subr.mxu0 0.0
      %3680 = vmatpush1.msra.mxu0 %v3668
      %3681 = vmatprep.subr.mxu0 0.0
      %3682 = vmatpush1.msra.mxu0 0.0
      %3683 = vmatprep.subr.mxu0 0.0
      %3684 = vmatpush1.msra.mxu0 0.0
      %3685 = vmatprep.subr.mxu0 0.0
      %3686 = vmatpush1.msra.mxu0 0.0
      %3687 = vmatprep.subr.mxu0 0.0
      %3688 = vmatpush1.msra.mxu0 0.0
      %3689 = vmatprep.subr.mxu0 0.0
      %3690 = vmatpush1.msra.mxu0 0.0
      %3691 = vmatprep.subr.mxu0 0.0
      %3692 = vmatpush1.msra.mxu0 0.0
      %3693 = vmatprep.subr.mxu0 0.0
      %3694 = vmatpush1.msra.mxu0 0.0
      %3695 = vmatprep.subr.mxu0 0.0
      %3696 = vmatpush1.msra.mxu0 0.0
      %3697 = vmatprep.subr.mxu0 0.0
      %3698 = vmatpush1.msra.mxu0 0.0
      %3699 = vmatprep.subr.mxu0 0.0
      %3700 = vmatpush1.msra.mxu0 0.0
      %3701 = vmatprep.subr.mxu0 0.0
      %3702 = vmatpush1.msra.mxu0 0.0
      %3703 = vmatprep.subr.mxu0 0.0
      %3704 = vmatpush1.msra.mxu0 0.0
      %3705 = vmatprep.subr.mxu0 0.0
      %3706 = vmatpush1.msra.mxu0 0.0
      %3707 = vmatprep.subr.mxu0 0.0
      %3708 = vmatpush1.msra.mxu0 0.0
      %3709 = vmatprep.subr.mxu0 0.0
      %3710 = vmatpush1.msra.mxu0 0.0
      %3711 = vmatprep.subr.mxu0 0.0
      %3712 = vmatpush1.msra.mxu0 0.0
      %3713 = vmatprep.subr.mxu0 0.0
      %3714 = vmatpush1.msra.mxu0 0.0
      %3715 = vmatprep.subr.mxu0 0.0
      %3716 = vmatpush1.msra.mxu0 0.0
      %3717 = vmatprep.subr.mxu0 0.0
      %3718 = vmatpush1.msra.mxu0 0.0
      %3719 = vmatprep.subr.mxu0 0.0
      %3720 = vmatpush1.msra.mxu0 0.0
      %3721 = vmatprep.subr.mxu0 0.0
      %3722 = vmatpush1.msra.mxu0 0.0
      %3723 = vmatprep.subr.mxu0 0.0
      %3724 = vmatpush1.msra.mxu0 0.0
      %3725 = vmatprep.subr.mxu0 0.0
      %3726 = vmatpush1.msra.mxu0 0.0
      %3727 = vmatprep.subr.mxu0 0.0
      %3728 = vmatpush1.msra.mxu0 0.0
      %3729 = vmatprep.subr.mxu0 0.0
      %3730 = vmatpush1.msra.mxu0 0.0
      %3731 = vmatprep.subr.mxu0 0.0
      %3732 = vmatpush1.msra.mxu0 0.0
      %3733 = vmatprep.subr.mxu0 0.0
      %3734 = vmatpush1.msra.mxu0 0.0
      %3735 = vmatprep.subr.mxu0 0.0
      %3736 = vmatpush1.msra.mxu0 0.0
      %3737 = vmatprep.subr.mxu0 0.0
      %3738 = vmatpush1.msra.mxu0 0.0
      %3739 = vmatprep.subr.mxu0 0.0
      %3740 = vmatpush1.msra.mxu0 0.0
      %3741 = vmatprep.mubr.f32.mxu0 0.0
      %3742 = vmatmul.mubr.f32.gmra.mrb[0].mxu0 %v3672
      %v3743 = vpop.f32.mrb[0].mxu0
      %v3744 = vadd.f32 0.0, %v3743
      %v3745 = vpop.f32.mrb[0].mxu0
      %3746 = vmatprep.mubr.f32.mxu0 0.0
      %3747 = vmatmul.mubr.f32.gmra.mrb[0].mxu0 %v3675
      %v3748 = vpop.f32.mrb[0].mxu0
      %v3749 = vadd.f32 0.0, %v3748
      %v3750 = vpop.f32.mrb[0].mxu0
      %3751 = vdwg.mxu0
      %3754 = vrot.lane.b32.xlu0 %v964, 112
      %v3755 = vpop.permute.xlu0 %3754
      %3756 = vrot.lane.b32.xlu0 %v969, 112
      %v3757 = vpop.permute.xlu0 %3756
      %v3761 = vsel %vm1018, %v3466, 0
      %v3764 = vsel %vm1018, %v3468, 0
      %3766 = vmatprep.subr.mxu0 0.0
      %3767 = vmatpush1.msra.mxu0 %v3755
      %3768 = vmatprep.subr.mxu0 0.0
      %3769 = vmatpush1.msra.mxu0 %v3757
      %3770 = vmatprep.subr.mxu0 0.0
      %3771 = vmatpush1.msra.mxu0 0.0
      %3772 = vmatprep.subr.mxu0 0.0
      %3773 = vmatpush1.msra.mxu0 0.0
      %3774 = vmatprep.subr.mxu0 0.0
      %3775 = vmatpush1.msra.mxu0 0.0
      %3776 = vmatprep.subr.mxu0 0.0
      %3777 = vmatpush1.msra.mxu0 0.0
      %3778 = vmatprep.subr.mxu0 0.0
      %3779 = vmatpush1.msra.mxu0 0.0
      %3780 = vmatprep.subr.mxu0 0.0
      %3781 = vmatpush1.msra.mxu0 0.0
      %3782 = vmatprep.subr.mxu0 0.0
      %3783 = vmatpush1.msra.mxu0 0.0
      %3784 = vmatprep.subr.mxu0 0.0
      %3785 = vmatpush1.msra.mxu0 0.0
      %3786 = vmatprep.subr.mxu0 0.0
      %3787 = vmatpush1.msra.mxu0 0.0
      %3788 = vmatprep.subr.mxu0 0.0
      %3789 = vmatpush1.msra.mxu0 0.0
      %3790 = vmatprep.subr.mxu0 0.0
      %3791 = vmatpush1.msra.mxu0 0.0
      %3792 = vmatprep.subr.mxu0 0.0
      %3793 = vmatpush1.msra.mxu0 0.0
      %3794 = vmatprep.subr.mxu0 0.0
      %3795 = vmatpush1.msra.mxu0 0.0
      %3796 = vmatprep.subr.mxu0 0.0
      %3797 = vmatpush1.msra.mxu0 0.0
      %3798 = vmatprep.subr.mxu0 0.0
      %3799 = vmatpush1.msra.mxu0 0.0
      %3800 = vmatprep.subr.mxu0 0.0
      %3801 = vmatpush1.msra.mxu0 0.0
      %3802 = vmatprep.subr.mxu0 0.0
      %3803 = vmatpush1.msra.mxu0 0.0
      %3804 = vmatprep.subr.mxu0 0.0
      %3805 = vmatpush1.msra.mxu0 0.0
      %3806 = vmatprep.subr.mxu0 0.0
      %3807 = vmatpush1.msra.mxu0 0.0
      %3808 = vmatprep.subr.mxu0 0.0
      %3809 = vmatpush1.msra.mxu0 0.0
      %3810 = vmatprep.subr.mxu0 0.0
      %3811 = vmatpush1.msra.mxu0 0.0
      %3812 = vmatprep.subr.mxu0 0.0
      %3813 = vmatpush1.msra.mxu0 0.0
      %3814 = vmatprep.subr.mxu0 0.0
      %3815 = vmatpush1.msra.mxu0 0.0
      %3816 = vmatprep.subr.mxu0 0.0
      %3817 = vmatpush1.msra.mxu0 0.0
      %3818 = vmatprep.subr.mxu0 0.0
      %3819 = vmatpush1.msra.mxu0 0.0
      %3820 = vmatprep.subr.mxu0 0.0
      %3821 = vmatpush1.msra.mxu0 0.0
      %3822 = vmatprep.subr.mxu0 0.0
      %3823 = vmatpush1.msra.mxu0 0.0
      %3824 = vmatprep.subr.mxu0 0.0
      %3825 = vmatpush1.msra.mxu0 0.0
      %3826 = vmatprep.subr.mxu0 0.0
      %3827 = vmatpush1.msra.mxu0 0.0
      %3828 = vmatprep.subr.mxu0 0.0
      %3829 = vmatpush1.msra.mxu0 0.0
      %3830 = vmatprep.mubr.f32.mxu0 0.0
      %3831 = vmatmul.mubr.f32.gmra.mrb[0].mxu0 %v3761
      %v3832 = vpop.f32.mrb[0].mxu0
      %v3833 = vadd.f32 0.0, %v3832
      %v3834 = vpop.f32.mrb[0].mxu0
      %3835 = vmatprep.mubr.f32.mxu0 0.0
      %3836 = vmatmul.mubr.f32.gmra.mrb[0].mxu0 %v3764
      %v3837 = vpop.f32.mrb[0].mxu0
      %v3838 = vadd.f32 0.0, %v3837
      %v3839 = vpop.f32.mrb[0].mxu0
      %3840 = vdwg.mxu0
      %3843 = vrot.lane.b32.xlu0 %v974, 112
      %v3844 = vpop.permute.xlu0 %3843
      %3845 = vrot.lane.b32.xlu0 %v979, 112
      %v3846 = vpop.permute.xlu0 %3845
      %v3850 = vsel %vm1018, %v3470, 0
      %v3853 = vsel %vm1018, %v3472, 0
      %3855 = vmatprep.subr.mxu0 0.0
      %3856 = vmatpush1.msra.mxu0 %v3844
      %3857 = vmatprep.subr.mxu0 0.0
      %3858 = vmatpush1.msra.mxu0 %v3846
      %3859 = vmatprep.subr.mxu0 0.0
      %3860 = vmatpush1.msra.mxu0 0.0
      %3861 = vmatprep.subr.mxu0 0.0
      %3862 = vmatpush1.msra.mxu0 0.0
      %3863 = vmatprep.subr.mxu0 0.0
      %3864 = vmatpush1.msra.mxu0 0.0
      %3865 = vmatprep.subr.mxu0 0.0
      %3866 = vmatpush1.msra.mxu0 0.0
      %3867 = vmatprep.subr.mxu0 0.0
      %3868 = vmatpush1.msra.mxu0 0.0
      %3869 = vmatprep.subr.mxu0 0.0
      %3870 = vmatpush1.msra.mxu0 0.0
      %3871 = vmatprep.subr.mxu0 0.0
      %3872 = vmatpush1.msra.mxu0 0.0
      %3873 = vmatprep.subr.mxu0 0.0
      %3874 = vmatpush1.msra.mxu0 0.0
      %3875 = vmatprep.subr.mxu0 0.0
      %3876 = vmatpush1.msra.mxu0 0.0
      %3877 = vmatprep.subr.mxu0 0.0
      %3878 = vmatpush1.msra.mxu0 0.0
      %3879 = vmatprep.subr.mxu0 0.0
      %3880 = vmatpush1.msra.mxu0 0.0
      %3881 = vmatprep.subr.mxu0 0.0
      %3882 = vmatpush1.msra.mxu0 0.0
      %3883 = vmatprep.subr.mxu0 0.0
      %3884 = vmatpush1.msra.mxu0 0.0
      %3885 = vmatprep.subr.mxu0 0.0
      %3886 = vmatpush1.msra.mxu0 0.0
      %3887 = vmatprep.subr.mxu0 0.0
      %3888 = vmatpush1.msra.mxu0 0.0
      %3889 = vmatprep.subr.mxu0 0.0
      %3890 = vmatpush1.msra.mxu0 0.0
      %3891 = vmatprep.subr.mxu0 0.0
      %3892 = vmatpush1.msra.mxu0 0.0
      %3893 = vmatprep.subr.mxu0 0.0
      %3894 = vmatpush1.msra.mxu0 0.0
      %3895 = vmatprep.subr.mxu0 0.0
      %3896 = vmatpush1.msra.mxu0 0.0
      %3897 = vmatprep.subr.mxu0 0.0
      %3898 = vmatpush1.msra.mxu0 0.0
      %3899 = vmatprep.subr.mxu0 0.0
      %3900 = vmatpush1.msra.mxu0 0.0
      %3901 = vmatprep.subr.mxu0 0.0
      %3902 = vmatpush1.msra.mxu0 0.0
      %3903 = vmatprep.subr.mxu0 0.0
      %3904 = vmatpush1.msra.mxu0 0.0
      %3905 = vmatprep.subr.mxu0 0.0
      %3906 = vmatpush1.msra.mxu0 0.0
      %3907 = vmatprep.subr.mxu0 0.0
      %3908 = vmatpush1.msra.mxu0 0.0
      %3909 = vmatprep.subr.mxu0 0.0
      %3910 = vmatpush1.msra.mxu0 0.0
      %3911 = vmatprep.subr.mxu0 0.0
      %3912 = vmatpush1.msra.mxu0 0.0
      %3913 = vmatprep.subr.mxu0 0.0
      %3914 = vmatpush1.msra.mxu0 0.0
      %3915 = vmatprep.subr.mxu0 0.0
      %3916 = vmatpush1.msra.mxu0 0.0
      %3917 = vmatprep.subr.mxu0 0.0
      %3918 = vmatpush1.msra.mxu0 0.0
      %3919 = vmatprep.mubr.f32.mxu0 0.0
      %3920 = vmatmul.mubr.f32.gmra.mrb[0].mxu0 %v3850
      %v3921 = vpop.f32.mrb[0].mxu0
      %v3922 = vadd.f32 0.0, %v3921
      %v3923 = vpop.f32.mrb[0].mxu0
      %3924 = vmatprep.mubr.f32.mxu0 0.0
      %3925 = vmatmul.mubr.f32.gmra.mrb[0].mxu0 %v3853
      %v3926 = vpop.f32.mrb[0].mxu0
      %v3927 = vadd.f32 0.0, %v3926
      %v3928 = vpop.f32.mrb[0].mxu0
      %3929 = vdwg.mxu0
      %3932 = vrot.lane.b32.xlu0 %v984, 112
      %v3933 = vpop.permute.xlu0 %3932
      %3934 = vrot.lane.b32.xlu0 %v989, 112
      %v3935 = vpop.permute.xlu0 %3934
      %v3939 = vsel %vm1018, %v3474, 0
      %v3942 = vsel %vm1018, %v3476, 0
      %3944 = vmatprep.subr.mxu0 0.0
      %3945 = vmatpush1.msra.mxu0 %v3933
      %3946 = vmatprep.subr.mxu0 0.0
      %3947 = vmatpush1.msra.mxu0 %v3935
      %3948 = vmatprep.subr.mxu0 0.0
      %3949 = vmatpush1.msra.mxu0 0.0
      %3950 = vmatprep.subr.mxu0 0.0
      %3951 = vmatpush1.msra.mxu0 0.0
      %3952 = vmatprep.subr.mxu0 0.0
      %3953 = vmatpush1.msra.mxu0 0.0
      %3954 = vmatprep.subr.mxu0 0.0
      %3955 = vmatpush1.msra.mxu0 0.0
      %3956 = vmatprep.subr.mxu0 0.0
      %3957 = vmatpush1.msra.mxu0 0.0
      %3958 = vmatprep.subr.mxu0 0.0
      %3959 = vmatpush1.msra.mxu0 0.0
      %3960 = vmatprep.subr.mxu0 0.0
      %3961 = vmatpush1.msra.mxu0 0.0
      %3962 = vmatprep.subr.mxu0 0.0
      %3963 = vmatpush1.msra.mxu0 0.0
      %3964 = vmatprep.subr.mxu0 0.0
      %3965 = vmatpush1.msra.mxu0 0.0
      %3966 = vmatprep.subr.mxu0 0.0
      %3967 = vmatpush1.msra.mxu0 0.0
      %3968 = vmatprep.subr.mxu0 0.0
      %3969 = vmatpush1.msra.mxu0 0.0
      %3970 = vmatprep.subr.mxu0 0.0
      %3971 = vmatpush1.msra.mxu0 0.0
      %3972 = vmatprep.subr.mxu0 0.0
      %3973 = vmatpush1.msra.mxu0 0.0
      %3974 = vmatprep.subr.mxu0 0.0
      %3975 = vmatpush1.msra.mxu0 0.0
      %3976 = vmatprep.subr.mxu0 0.0
      %3977 = vmatpush1.msra.mxu0 0.0
      %3978 = vmatprep.subr.mxu0 0.0
      %3979 = vmatpush1.msra.mxu0 0.0
      %3980 = vmatprep.subr.mxu0 0.0
      %3981 = vmatpush1.msra.mxu0 0.0
      %3982 = vmatprep.subr.mxu0 0.0
      %3983 = vmatpush1.msra.mxu0 0.0
      %3984 = vmatprep.subr.mxu0 0.0
      %3985 = vmatpush1.msra.mxu0 0.0
      %3986 = vmatprep.subr.mxu0 0.0
      %3987 = vmatpush1.msra.mxu0 0.0
      %3988 = vmatprep.subr.mxu0 0.0
      %3989 = vmatpush1.msra.mxu0 0.0
      %3990 = vmatprep.subr.mxu0 0.0
      %3991 = vmatpush1.msra.mxu0 0.0
      %3992 = vmatprep.subr.mxu0 0.0
      %3993 = vmatpush1.msra.mxu0 0.0
      %3994 = vmatprep.subr.mxu0 0.0
      %3995 = vmatpush1.msra.mxu0 0.0
      %3996 = vmatprep.subr.mxu0 0.0
      %3997 = vmatpush1.msra.mxu0 0.0
      %3998 = vmatprep.subr.mxu0 0.0
      %3999 = vmatpush1.msra.mxu0 0.0
      %4000 = vmatprep.subr.mxu0 0.0
      %4001 = vmatpush1.msra.mxu0 0.0
      %4002 = vmatprep.subr.mxu0 0.0
      %4003 = vmatpush1.msra.mxu0 0.0
      %4004 = vmatprep.subr.mxu0 0.0
      %4005 = vmatpush1.msra.mxu0 0.0
      %4006 = vmatprep.subr.mxu0 0.0
      %4007 = vmatpush1.msra.mxu0 0.0
      %4008 = vmatprep.mubr.f32.mxu0 0.0
      %4009 = vmatmul.mubr.f32.gmra.mrb[0].mxu0 %v3939
      %v4010 = vpop.f32.mrb[0].mxu0
      %v4011 = vadd.f32 0.0, %v4010
      %v4012 = vpop.f32.mrb[0].mxu0
      %4013 = vmatprep.mubr.f32.mxu0 0.0
      %4014 = vmatmul.mubr.f32.gmra.mrb[0].mxu0 %v3942
      %v4015 = vpop.f32.mrb[0].mxu0
      %v4016 = vadd.f32 0.0, %v4015
      %v4017 = vpop.f32.mrb[0].mxu0
      %4018 = vdwg.mxu0
      %4021 = vrot.lane.b32.xlu0 %v994, 112
      %v4022 = vpop.permute.xlu0 %4021
      %4023 = vrot.lane.b32.xlu0 %v999, 112
      %v4024 = vpop.permute.xlu0 %4023
      %v4028 = vsel %vm1018, %v3478, 0
      %v4031 = vsel %vm1018, %v3480, 0
      %4033 = vmatprep.subr.mxu0 0.0
      %4034 = vmatpush1.msra.mxu0 %v4022
      %4035 = vmatprep.subr.mxu0 0.0
      %4036 = vmatpush1.msra.mxu0 %v4024
      %4037 = vmatprep.subr.mxu0 0.0
      %4038 = vmatpush1.msra.mxu0 0.0
      %4039 = vmatprep.subr.mxu0 0.0
      %4040 = vmatpush1.msra.mxu0 0.0
      %4041 = vmatprep.subr.mxu0 0.0
      %4042 = vmatpush1.msra.mxu0 0.0
      %4043 = vmatprep.subr.mxu0 0.0
      %4044 = vmatpush1.msra.mxu0 0.0
      %4045 = vmatprep.subr.mxu0 0.0
      %4046 = vmatpush1.msra.mxu0 0.0
      %4047 = vmatprep.subr.mxu0 0.0
      %4048 = vmatpush1.msra.mxu0 0.0
      %4049 = vmatprep.subr.mxu0 0.0
      %4050 = vmatpush1.msra.mxu0 0.0
      %4051 = vmatprep.subr.mxu0 0.0
      %4052 = vmatpush1.msra.mxu0 0.0
      %4053 = vmatprep.subr.mxu0 0.0
      %4054 = vmatpush1.msra.mxu0 0.0
      %4055 = vmatprep.subr.mxu0 0.0
      %4056 = vmatpush1.msra.mxu0 0.0
      %4057 = vmatprep.subr.mxu0 0.0
      %4058 = vmatpush1.msra.mxu0 0.0
      %4059 = vmatprep.subr.mxu0 0.0
      %4060 = vmatpush1.msra.mxu0 0.0
      %4061 = vmatprep.subr.mxu0 0.0
      %4062 = vmatpush1.msra.mxu0 0.0
      %4063 = vmatprep.subr.mxu0 0.0
      %4064 = vmatpush1.msra.mxu0 0.0
      %4065 = vmatprep.subr.mxu0 0.0
      %4066 = vmatpush1.msra.mxu0 0.0
      %4067 = vmatprep.subr.mxu0 0.0
      %4068 = vmatpush1.msra.mxu0 0.0
      %4069 = vmatprep.subr.mxu0 0.0
      %4070 = vmatpush1.msra.mxu0 0.0
      %4071 = vmatprep.subr.mxu0 0.0
      %4072 = vmatpush1.msra.mxu0 0.0
      %4073 = vmatprep.subr.mxu0 0.0
      %4074 = vmatpush1.msra.mxu0 0.0
      %4075 = vmatprep.subr.mxu0 0.0
      %4076 = vmatpush1.msra.mxu0 0.0
      %4077 = vmatprep.subr.mxu0 0.0
      %4078 = vmatpush1.msra.mxu0 0.0
      %4079 = vmatprep.subr.mxu0 0.0
      %4080 = vmatpush1.msra.mxu0 0.0
      %4081 = vmatprep.subr.mxu0 0.0
      %4082 = vmatpush1.msra.mxu0 0.0
      %4083 = vmatprep.subr.mxu0 0.0
      %4084 = vmatpush1.msra.mxu0 0.0
      %4085 = vmatprep.subr.mxu0 0.0
      %4086 = vmatpush1.msra.mxu0 0.0
      %4087 = vmatprep.subr.mxu0 0.0
      %4088 = vmatpush1.msra.mxu0 0.0
      %4089 = vmatprep.subr.mxu0 0.0
      %4090 = vmatpush1.msra.mxu0 0.0
      %4091 = vmatprep.subr.mxu0 0.0
      %4092 = vmatpush1.msra.mxu0 0.0
      %4093 = vmatprep.subr.mxu0 0.0
      %4094 = vmatpush1.msra.mxu0 0.0
      %4095 = vmatprep.subr.mxu0 0.0
      %4096 = vmatpush1.msra.mxu0 0.0
      %4097 = vmatprep.mubr.f32.mxu0 0.0
      %4098 = vmatmul.mubr.f32.gmra.mrb[0].mxu0 %v4028
      %v4099 = vpop.f32.mrb[0].mxu0
      %v4100 = vadd.f32 0.0, %v4099
      %v4101 = vpop.f32.mrb[0].mxu0
      %4102 = vmatprep.mubr.f32.mxu0 0.0
      %4103 = vmatmul.mubr.f32.gmra.mrb[0].mxu0 %v4031
      %v4104 = vpop.f32.mrb[0].mxu0
      %v4105 = vadd.f32 0.0, %v4104
      %v4106 = vpop.f32.mrb[0].mxu0
      %4107 = vdwg.mxu0
      %4110 = vrot.lane.b32.xlu0 %v1004, 112
      %v4111 = vpop.permute.xlu0 %4110
      %4112 = vrot.lane.b32.xlu0 %v1009, 112
      %v4113 = vpop.permute.xlu0 %4112
      %v4117 = vsel %vm1018, %v3482, 0
      %v4120 = vsel %vm1018, %v3484, 0
      %4122 = vmatprep.subr.mxu0 0.0
      %4123 = vmatpush1.msra.mxu0 %v4111
      %4124 = vmatprep.subr.mxu0 0.0
      %4125 = vmatpush1.msra.mxu0 %v4113
      %4126 = vmatprep.subr.mxu0 0.0
      %4127 = vmatpush1.msra.mxu0 0.0
      %4128 = vmatprep.subr.mxu0 0.0
      %4129 = vmatpush1.msra.mxu0 0.0
      %4130 = vmatprep.subr.mxu0 0.0
      %4131 = vmatpush1.msra.mxu0 0.0
      %4132 = vmatprep.subr.mxu0 0.0
      %4133 = vmatpush1.msra.mxu0 0.0
      %4134 = vmatprep.subr.mxu0 0.0
      %4135 = vmatpush1.msra.mxu0 0.0
      %4136 = vmatprep.subr.mxu0 0.0
      %4137 = vmatpush1.msra.mxu0 0.0
      %4138 = vmatprep.subr.mxu0 0.0
      %4139 = vmatpush1.msra.mxu0 0.0
      %4140 = vmatprep.subr.mxu0 0.0
      %4141 = vmatpush1.msra.mxu0 0.0
      %4142 = vmatprep.subr.mxu0 0.0
      %4143 = vmatpush1.msra.mxu0 0.0
      %4144 = vmatprep.subr.mxu0 0.0
      %4145 = vmatpush1.msra.mxu0 0.0
      %4146 = vmatprep.subr.mxu0 0.0
      %4147 = vmatpush1.msra.mxu0 0.0
      %4148 = vmatprep.subr.mxu0 0.0
      %4149 = vmatpush1.msra.mxu0 0.0
      %4150 = vmatprep.subr.mxu0 0.0
      %4151 = vmatpush1.msra.mxu0 0.0
      %4152 = vmatprep.subr.mxu0 0.0
      %4153 = vmatpush1.msra.mxu0 0.0
      %4154 = vmatprep.subr.mxu0 0.0
      %4155 = vmatpush1.msra.mxu0 0.0
      %4156 = vmatprep.subr.mxu0 0.0
      %4157 = vmatpush1.msra.mxu0 0.0
      %4158 = vmatprep.subr.mxu0 0.0
      %4159 = vmatpush1.msra.mxu0 0.0
      %4160 = vmatprep.subr.mxu0 0.0
      %4161 = vmatpush1.msra.mxu0 0.0
      %4162 = vmatprep.subr.mxu0 0.0
      %4163 = vmatpush1.msra.mxu0 0.0
      %4164 = vmatprep.subr.mxu0 0.0
      %4165 = vmatpush1.msra.mxu0 0.0
      %4166 = vmatprep.subr.mxu0 0.0
      %4167 = vmatpush1.msra.mxu0 0.0
      %4168 = vmatprep.subr.mxu0 0.0
      %4169 = vmatpush1.msra.mxu0 0.0
      %4170 = vmatprep.subr.mxu0 0.0
      %4171 = vmatpush1.msra.mxu0 0.0
      %4172 = vmatprep.subr.mxu0 0.0
      %4173 = vmatpush1.msra.mxu0 0.0
      %4174 = vmatprep.subr.mxu0 0.0
      %4175 = vmatpush1.msra.mxu0 0.0
      %4176 = vmatprep.subr.mxu0 0.0
      %4177 = vmatpush1.msra.mxu0 0.0
      %4178 = vmatprep.subr.mxu0 0.0
      %4179 = vmatpush1.msra.mxu0 0.0
      %4180 = vmatprep.subr.mxu0 0.0
      %4181 = vmatpush1.msra.mxu0 0.0
      %4182 = vmatprep.subr.mxu0 0.0
      %4183 = vmatpush1.msra.mxu0 0.0
      %4184 = vmatprep.subr.mxu0 0.0
      %4185 = vmatpush1.msra.mxu0 0.0
      %4186 = vmatprep.mubr.f32.mxu0 0.0
      %4187 = vmatmul.mubr.f32.gmra.mrb[0].mxu0 %v4117
      %v4188 = vpop.f32.mrb[0].mxu0
      %v4189 = vadd.f32 0.0, %v4188
      %v4190 = vpop.f32.mrb[0].mxu0
      %4191 = vmatprep.mubr.f32.mxu0 0.0
      %4192 = vmatmul.mubr.f32.gmra.mrb[0].mxu0 %v4120
      %v4193 = vpop.f32.mrb[0].mxu0
      %v4194 = vadd.f32 0.0, %v4193
      %v4195 = vpop.f32.mrb[0].mxu0
      %4196 = vdwg.mxu0
      %4213 = vrot.lane.b32.xlu0 %v3566, 16
      %v4214 = vpop.permute.xlu0 %4213
      %4215 = vrot.lane.b32.xlu0 %v3571, 16
      %v4216 = vpop.permute.xlu0 %4215
      %4217 = vrot.lane.b32.xlu0 %v3655, 16
      %v4218 = vpop.permute.xlu0 %4217
      %4219 = vrot.lane.b32.xlu0 %v3660, 16
      %v4220 = vpop.permute.xlu0 %4219
      %4221 = vrot.lane.b32.xlu0 %v3744, 16
      %v4222 = vpop.permute.xlu0 %4221
      %4223 = vrot.lane.b32.xlu0 %v3749, 16
      %v4224 = vpop.permute.xlu0 %4223
      %4225 = vrot.lane.b32.xlu0 %v3833, 16
      %v4226 = vpop.permute.xlu0 %4225
      %4227 = vrot.lane.b32.xlu0 %v3838, 16
      %v4228 = vpop.permute.xlu0 %4227
      %4229 = vrot.lane.b32.xlu0 %v3922, 16
      %v4230 = vpop.permute.xlu0 %4229
      %4231 = vrot.lane.b32.xlu0 %v3927, 16
      %v4232 = vpop.permute.xlu0 %4231
      %4233 = vrot.lane.b32.xlu0 %v4011, 16
      %v4234 = vpop.permute.xlu0 %4233
      %4235 = vrot.lane.b32.xlu0 %v4016, 16
      %v4236 = vpop.permute.xlu0 %4235
      %4237 = vrot.lane.b32.xlu0 %v4100, 16
      %v4238 = vpop.permute.xlu0 %4237
      %4239 = vrot.lane.b32.xlu0 %v4105, 16
      %v4240 = vpop.permute.xlu0 %4239
      %4241 = vrot.lane.b32.xlu0 %v4189, 16
      %v4242 = vpop.permute.xlu0 %4241
      %4243 = vrot.lane.b32.xlu0 %v4194, 16
      %v4244 = vpop.permute.xlu0 %4243
      %v4261 = vsel %vm1018, %v1990, %v4214
      %v4262 = vsel %vm1018, %v1995, %v4216
      %v4263 = vsel %vm1018, %v2071, %v4218
      %v4264 = vsel %vm1018, %v2076, %v4220
      %v4265 = vsel %vm1018, %v2152, %v4222
      %v4266 = vsel %vm1018, %v2157, %v4224
      %v4267 = vsel %vm1018, %v2233, %v4226
      %v4268 = vsel %vm1018, %v2238, %v4228
      %v4269 = vsel %vm1018, %v2314, %v4230
      %v4270 = vsel %vm1018, %v2319, %v4232
      %v4271 = vsel %vm1018, %v2395, %v4234
      %v4272 = vsel %vm1018, %v2400, %v4236
      %v4273 = vsel %vm1018, %v2476, %v4238
      %v4274 = vsel %vm1018, %v2481, %v4240
      %v4275 = vsel %vm1018, %v2557, %v4242
      %v4276 = vsel %vm1018, %v2562, %v4244
      %v4277 = vld [vmem:[%s6] sm:$0xff]
      %v4278 = vld [vmem:[%s6 + $0x8] sm:$0xff]
      %v4279 = vld [vmem:[%s6 + $0x10] sm:$0xff]
      %v4280 = vld [vmem:[%s6 + $0x18] sm:$0xff]
      %v4281 = vld [vmem:[%s7] sm:$0x1]
      %v4283 = vlaneseq
      %v4284 = vshrl.u32 %v4283, 7
      %v4285 = vsub.s32 0, %v4284
      %v4286 = vrot.slane %v4281, %v4285
      %v4289 = vsel %vm614, %v4261, 0
      %v4292 = vsel %vm614, %v4262, 0
      %v4295 = vsel %vm614, %v4263, 0
      %v4298 = vsel %vm614, %v4264, 0
      %v4301 = vsel %vm614, %v4265, 0
      %v4304 = vsel %vm614, %v4266, 0
      %v4307 = vsel %vm614, %v4267, 0
      %v4310 = vsel %vm614, %v4268, 0
      %v4313 = vsel %vm614, %v4269, 0
      %v4316 = vsel %vm614, %v4270, 0
      %v4319 = vsel %vm614, %v4271, 0
      %v4322 = vsel %vm614, %v4272, 0
      %v4325 = vsel %vm614, %v4273, 0
      %v4328 = vsel %vm614, %v4274, 0
      %v4331 = vsel %vm614, %v4275, 0
      %v4334 = vsel %vm614, %v4276, 0
      %4336 = vmatprep.subr.mxu0 0.0
      %4337 = vmatpush1.msra.mxu0 %v4277
      %4338 = vmatprep.subr.mxu0 0.0
      %4339 = vmatpush1.msra.mxu0 %v4278
      %4340 = vmatprep.subr.mxu0 0.0
      %4341 = vmatpush1.msra.mxu0 %v4279
      %4342 = vmatprep.subr.mxu0 0.0
      %4343 = vmatpush1.msra.mxu0 %v4280
      %4344 = vmatprep.subr.mxu0 0.0
      %4345 = vmatpush1.msra.mxu0 0.0
      %4346 = vmatprep.subr.mxu0 0.0
      %4347 = vmatpush1.msra.mxu0 0.0
      %4348 = vmatprep.subr.mxu0 0.0
      %4349 = vmatpush1.msra.mxu0 0.0
      %4350 = vmatprep.subr.mxu0 0.0
      %4351 = vmatpush1.msra.mxu0 0.0
      %4352 = vmatprep.subr.mxu0 0.0
      %4353 = vmatpush1.msra.mxu0 0.0
      %4354 = vmatprep.subr.mxu0 0.0
      %4355 = vmatpush1.msra.mxu0 0.0
      %4356 = vmatprep.subr.mxu0 0.0
      %4357 = vmatpush1.msra.mxu0 0.0
      %4358 = vmatprep.subr.mxu0 0.0
      %4359 = vmatpush1.msra.mxu0 0.0
      %4360 = vmatprep.subr.mxu0 0.0
      %4361 = vmatpush1.msra.mxu0 0.0
      %4362 = vmatprep.subr.mxu0 0.0
      %4363 = vmatpush1.msra.mxu0 0.0
      %4364 = vmatprep.subr.mxu0 0.0
      %4365 = vmatpush1.msra.mxu0 0.0
      %4366 = vmatprep.subr.mxu0 0.0
      %4367 = vmatpush1.msra.mxu0 0.0
      %4368 = vmatprep.subr.mxu0 0.0
      %4369 = vmatpush1.msra.mxu0 0.0
      %4370 = vmatprep.subr.mxu0 0.0
      %4371 = vmatpush1.msra.mxu0 0.0
      %4372 = vmatprep.subr.mxu0 0.0
      %4373 = vmatpush1.msra.mxu0 0.0
      %4374 = vmatprep.subr.mxu0 0.0
      %4375 = vmatpush1.msra.mxu0 0.0
      %4376 = vmatprep.subr.mxu0 0.0
      %4377 = vmatpush1.msra.mxu0 0.0
      %4378 = vmatprep.subr.mxu0 0.0
      %4379 = vmatpush1.msra.mxu0 0.0
      %4380 = vmatprep.subr.mxu0 0.0
      %4381 = vmatpush1.msra.mxu0 0.0
      %4382 = vmatprep.subr.mxu0 0.0
      %4383 = vmatpush1.msra.mxu0 0.0
      %4384 = vmatprep.subr.mxu0 0.0
      %4385 = vmatpush1.msra.mxu0 0.0
      %4386 = vmatprep.subr.mxu0 0.0
      %4387 = vmatpush1.msra.mxu0 0.0
      %4388 = vmatprep.subr.mxu0 0.0
      %4389 = vmatpush1.msra.mxu0 0.0
      %4390 = vmatprep.subr.mxu0 0.0
      %4391 = vmatpush1.msra.mxu0 0.0
      %4392 = vmatprep.subr.mxu0 0.0
      %4393 = vmatpush1.msra.mxu0 0.0
      %4394 = vmatprep.subr.mxu0 0.0
      %4395 = vmatpush1.msra.mxu0 0.0
      %4396 = vmatprep.subr.mxu0 0.0
      %4397 = vmatpush1.msra.mxu0 0.0
      %4398 = vmatprep.subr.mxu0 0.0
      %4399 = vmatpush1.msra.mxu0 0.0
      %4400 = vmatprep.mubr.f32.mxu0 0.0
      %4401 = vmatmul.mubr.f32.gmra.mrb[0].mxu0 %v4289
      %v4402 = vpop.f32.mrb[0].mxu0
      %v4403 = vadd.f32 %v4286, %v4402
      %v4404 = vpop.f32.mrb[0].mxu0
      %4405 = vmatprep.mubr.f32.mxu0 0.0
      %4406 = vmatmul.mubr.f32.gmra.mrb[0].mxu0 %v4292
      %v4407 = vpop.f32.mrb[0].mxu0
      %v4408 = vadd.f32 %v4286, %v4407
      %v4409 = vpop.f32.mrb[0].mxu0
      %4410 = vmatprep.mubr.f32.mxu0 0.0
      %4411 = vmatmul.mubr.f32.gmra.mrb[0].mxu0 %v4295
      %v4412 = vpop.f32.mrb[0].mxu0
      %v4413 = vadd.f32 %v4286, %v4412
      %v4414 = vpop.f32.mrb[0].mxu0
      %4415 = vmatprep.mubr.f32.mxu0 0.0
      %4416 = vmatmul.mubr.f32.gmra.mrb[0].mxu0 %v4298
      %v4417 = vpop.f32.mrb[0].mxu0
      %v4418 = vadd.f32 %v4286, %v4417
      %v4419 = vpop.f32.mrb[0].mxu0
      %4420 = vmatprep.mubr.f32.mxu0 0.0
      %4421 = vmatmul.mubr.f32.gmra.mrb[0].mxu0 %v4301
      %v4422 = vpop.f32.mrb[0].mxu0
      %v4423 = vadd.f32 %v4286, %v4422
      %v4424 = vpop.f32.mrb[0].mxu0
      %4425 = vmatprep.mubr.f32.mxu0 0.0
      %4426 = vmatmul.mubr.f32.gmra.mrb[0].mxu0 %v4304
      %v4427 = vpop.f32.mrb[0].mxu0
      %v4428 = vadd.f32 %v4286, %v4427
      %v4429 = vpop.f32.mrb[0].mxu0
      %4430 = vmatprep.mubr.f32.mxu0 0.0
      %4431 = vmatmul.mubr.f32.gmra.mrb[0].mxu0 %v4307
      %v4432 = vpop.f32.mrb[0].mxu0
      %v4433 = vadd.f32 %v4286, %v4432
      %v4434 = vpop.f32.mrb[0].mxu0
      %4435 = vmatprep.mubr.f32.mxu0 0.0
      %4436 = vmatmul.mubr.f32.gmra.mrb[0].mxu0 %v4310
      %v4437 = vpop.f32.mrb[0].mxu0
      %v4438 = vadd.f32 %v4286, %v4437
      %v4439 = vpop.f32.mrb[0].mxu0
      %4440 = vmatprep.mubr.f32.mxu0 0.0
      %4441 = vmatmul.mubr.f32.gmra.mrb[0].mxu0 %v4313
      %v4442 = vpop.f32.mrb[0].mxu0
      %v4443 = vadd.f32 %v4286, %v4442
      %v4444 = vpop.f32.mrb[0].mxu0
      %4445 = vmatprep.mubr.f32.mxu0 0.0
      %4446 = vmatmul.mubr.f32.gmra.mrb[0].mxu0 %v4316
      %v4447 = vpop.f32.mrb[0].mxu0
      %v4448 = vadd.f32 %v4286, %v4447
      %v4449 = vpop.f32.mrb[0].mxu0
      %4450 = vmatprep.mubr.f32.mxu0 0.0
      %4451 = vmatmul.mubr.f32.gmra.mrb[0].mxu0 %v4319
      %v4452 = vpop.f32.mrb[0].mxu0
      %v4453 = vadd.f32 %v4286, %v4452
      %v4454 = vpop.f32.mrb[0].mxu0
      %4455 = vmatprep.mubr.f32.mxu0 0.0
      %4456 = vmatmul.mubr.f32.gmra.mrb[0].mxu0 %v4322
      %v4457 = vpop.f32.mrb[0].mxu0
      %v4458 = vadd.f32 %v4286, %v4457
      %v4459 = vpop.f32.mrb[0].mxu0
      %4460 = vmatprep.mubr.f32.mxu0 0.0
      %4461 = vmatmul.mubr.f32.gmra.mrb[0].mxu0 %v4325
      %v4462 = vpop.f32.mrb[0].mxu0
      %v4463 = vadd.f32 %v4286, %v4462
      %v4464 = vpop.f32.mrb[0].mxu0
      %4465 = vmatprep.mubr.f32.mxu0 0.0
      %4466 = vmatmul.mubr.f32.gmra.mrb[0].mxu0 %v4328
      %v4467 = vpop.f32.mrb[0].mxu0
      %v4468 = vadd.f32 %v4286, %v4467
      %v4469 = vpop.f32.mrb[0].mxu0
      %4470 = vmatprep.mubr.f32.mxu0 0.0
      %4471 = vmatmul.mubr.f32.gmra.mrb[0].mxu0 %v4331
      %v4472 = vpop.f32.mrb[0].mxu0
      %v4473 = vadd.f32 %v4286, %v4472
      %v4474 = vpop.f32.mrb[0].mxu0
      %4475 = vmatprep.mubr.f32.mxu0 0.0
      %4476 = vmatmul.mubr.f32.gmra.mrb[0].mxu0 %v4334
      %v4477 = vpop.f32.mrb[0].mxu0
      %v4478 = vadd.f32 %v4286, %v4477
      %v4479 = vpop.f32.mrb[0].mxu0
      %4480 = vdwg.mxu0
      %v4481 = vadd.f32 %v555, %v4403
      %v4482 = vadd.f32 %v556, %v4408
      %v4483 = vadd.f32 %v557, %v4413
      %v4484 = vadd.f32 %v558, %v4418
      %v4485 = vadd.f32 %v559, %v4423
      %v4486 = vadd.f32 %v560, %v4428
      %v4487 = vadd.f32 %v561, %v4433
      %v4488 = vadd.f32 %v562, %v4438
      %v4489 = vadd.f32 %v563, %v4443
      %v4490 = vadd.f32 %v564, %v4448
      %v4491 = vadd.f32 %v565, %v4453
      %v4492 = vadd.f32 %v566, %v4458
      %v4493 = vadd.f32 %v567, %v4463
      %v4494 = vadd.f32 %v568, %v4468
      %v4495 = vadd.f32 %v569, %v4473
      %v4496 = vadd.f32 %v570, %v4478
      %v4497 = vld [vmem:[%s8] sm:$0x1]
      %v4498 = vld [vmem:[%s9] sm:$0x1]
      %v4499 = vsel %vm614, %v4481, 0.0
      %4500 = vadd.xlane.f32.xlu0 %v4499
      %v4501 = vpop.xlane.xlu0 %4500
      %v4502 = vsel %vm614, %v4482, 0.0
      %4503 = vadd.xlane.f32.xlu0 %v4502
      %v4504 = vpop.xlane.xlu0 %4503
      %v4505 = vsel %vm614, %v4483, 0.0
      %4506 = vadd.xlane.f32.xlu0 %v4505
      %v4507 = vpop.xlane.xlu0 %4506
      %v4508 = vsel %vm614, %v4484, 0.0
      %4509 = vadd.xlane.f32.xlu0 %v4508
      %v4510 = vpop.xlane.xlu0 %4509
      %v4511 = vsel %vm614, %v4485, 0.0
      %4512 = vadd.xlane.f32.xlu0 %v4511
      %v4513 = vpop.xlane.xlu0 %4512
      %v4514 = vsel %vm614, %v4486, 0.0
      %4515 = vadd.xlane.f32.xlu0 %v4514
      %v4516 = vpop.xlane.xlu0 %4515
      %v4517 = vsel %vm614, %v4487, 0.0
      %4518 = vadd.xlane.f32.xlu0 %v4517
      %v4519 = vpop.xlane.xlu0 %4518
      %v4520 = vsel %vm614, %v4488, 0.0
      %4521 = vadd.xlane.f32.xlu0 %v4520
      %v4522 = vpop.xlane.xlu0 %4521
      %v4523 = vsel %vm614, %v4489, 0.0
      %4524 = vadd.xlane.f32.xlu0 %v4523
      %v4525 = vpop.xlane.xlu0 %4524
      %v4526 = vsel %vm614, %v4490, 0.0
      %4527 = vadd.xlane.f32.xlu0 %v4526
      %v4528 = vpop.xlane.xlu0 %4527
      %v4529 = vsel %vm614, %v4491, 0.0
      %4530 = vadd.xlane.f32.xlu0 %v4529
      %v4531 = vpop.xlane.xlu0 %4530
      %v4532 = vsel %vm614, %v4492, 0.0
      %4533 = vadd.xlane.f32.xlu0 %v4532
      %v4534 = vpop.xlane.xlu0 %4533
      %v4535 = vsel %vm614, %v4493, 0.0
      %4536 = vadd.xlane.f32.xlu0 %v4535
      %v4537 = vpop.xlane.xlu0 %4536
      %v4538 = vsel %vm614, %v4494, 0.0
      %4539 = vadd.xlane.f32.xlu0 %v4538
      %v4540 = vpop.xlane.xlu0 %4539
      %v4541 = vsel %vm614, %v4495, 0.0
      %4542 = vadd.xlane.f32.xlu0 %v4541
      %v4543 = vpop.xlane.xlu0 %4542
      %v4544 = vsel %vm614, %v4496, 0.0
      %4545 = vadd.xlane.f32.xlu0 %v4544
      %v4546 = vpop.xlane.xlu0 %4545
      %v4547 = vrcp.pop 32.0
      %v4548 = vmul.f32 %v4501, %v4547
      %v4549 = vmul.f32 %v4504, %v4547
      %v4550 = vmul.f32 %v4507, %v4547
      %v4551 = vmul.f32 %v4510, %v4547
      %v4552 = vmul.f32 %v4513, %v4547
      %v4553 = vmul.f32 %v4516, %v4547
      %v4554 = vmul.f32 %v4519, %v4547
      %v4555 = vmul.f32 %v4522, %v4547
      %v4556 = vmul.f32 %v4525, %v4547
      %v4557 = vmul.f32 %v4528, %v4547
      %v4558 = vmul.f32 %v4531, %v4547
      %v4559 = vmul.f32 %v4534, %v4547
      %v4560 = vmul.f32 %v4537, %v4547
      %v4561 = vmul.f32 %v4540, %v4547
      %v4562 = vmul.f32 %v4543, %v4547
      %v4563 = vmul.f32 %v4546, %v4547
      %v4564 = vsub.f32 %v4481, %v4548
      %v4565 = vsub.f32 %v4482, %v4549
      %v4566 = vsub.f32 %v4483, %v4550
      %v4567 = vsub.f32 %v4484, %v4551
      %v4568 = vsub.f32 %v4485, %v4552
      %v4569 = vsub.f32 %v4486, %v4553
      %v4570 = vsub.f32 %v4487, %v4554
      %v4571 = vsub.f32 %v4488, %v4555
      %v4572 = vsub.f32 %v4489, %v4556
      %v4573 = vsub.f32 %v4490, %v4557
      %v4574 = vsub.f32 %v4491, %v4558
      %v4575 = vsub.f32 %v4492, %v4559
      %v4576 = vsub.f32 %v4493, %v4560
      %v4577 = vsub.f32 %v4494, %v4561
      %v4578 = vsub.f32 %v4495, %v4562
      %v4579 = vsub.f32 %v4496, %v4563
      %v4580 = vmul.f32 %v4564, %v4564
      %v4581 = vmul.f32 %v4565, %v4565
      %v4582 = vmul.f32 %v4566, %v4566
      %v4583 = vmul.f32 %v4567, %v4567
      %v4584 = vmul.f32 %v4568, %v4568
      %v4585 = vmul.f32 %v4569, %v4569
      %v4586 = vmul.f32 %v4570, %v4570
      %v4587 = vmul.f32 %v4571, %v4571
      %v4588 = vmul.f32 %v4572, %v4572
      %v4589 = vmul.f32 %v4573, %v4573
      %v4590 = vmul.f32 %v4574, %v4574
      %v4591 = vmul.f32 %v4575, %v4575
      %v4592 = vmul.f32 %v4576, %v4576
      %v4593 = vmul.f32 %v4577, %v4577
      %v4594 = vmul.f32 %v4578, %v4578
      %v4595 = vmul.f32 %v4579, %v4579
      %v4596 = vsel %vm614, %v4580, 0.0
      %4597 = vadd.xlane.f32.xlu0 %v4596
      %v4598 = vpop.xlane.xlu0 %4597
      %v4599 = vsel %vm614, %v4581, 0.0
      %4600 = vadd.xlane.f32.xlu0 %v4599
      %v4601 = vpop.xlane.xlu0 %4600
      %v4602 = vsel %vm614, %v4582, 0.0
      %4603 = vadd.xlane.f32.xlu0 %v4602
      %v4604 = vpop.xlane.xlu0 %4603
      %v4605 = vsel %vm614, %v4583, 0.0
      %4606 = vadd.xlane.f32.xlu0 %v4605
      %v4607 = vpop.xlane.xlu0 %4606
      %v4608 = vsel %vm614, %v4584, 0.0
      %4609 = vadd.xlane.f32.xlu0 %v4608
      %v4610 = vpop.xlane.xlu0 %4609
      %v4611 = vsel %vm614, %v4585, 0.0
      %4612 = vadd.xlane.f32.xlu0 %v4611
      %v4613 = vpop.xlane.xlu0 %4612
      %v4614 = vsel %vm614, %v4586, 0.0
      %4615 = vadd.xlane.f32.xlu0 %v4614
      %v4616 = vpop.xlane.xlu0 %4615
      %v4617 = vsel %vm614, %v4587, 0.0
      %4618 = vadd.xlane.f32.xlu0 %v4617
      %v4619 = vpop.xlane.xlu0 %4618
      %v4620 = vsel %vm614, %v4588, 0.0
      %4621 = vadd.xlane.f32.xlu0 %v4620
      %v4622 = vpop.xlane.xlu0 %4621
      %v4623 = vsel %vm614, %v4589, 0.0
      %4624 = vadd.xlane.f32.xlu0 %v4623
      %v4625 = vpop.xlane.xlu0 %4624
      %v4626 = vsel %vm614, %v4590, 0.0
      %4627 = vadd.xlane.f32.xlu0 %v4626
      %v4628 = vpop.xlane.xlu0 %4627
      %v4629 = vsel %vm614, %v4591, 0.0
      %4630 = vadd.xlane.f32.xlu0 %v4629
      %v4631 = vpop.xlane.xlu0 %4630
      %v4632 = vsel %vm614, %v4592, 0.0
      %4633 = vadd.xlane.f32.xlu0 %v4632
      %v4634 = vpop.xlane.xlu0 %4633
      %v4635 = vsel %vm614, %v4593, 0.0
      %4636 = vadd.xlane.f32.xlu0 %v4635
      %v4637 = vpop.xlane.xlu0 %4636
      %v4638 = vsel %vm614, %v4594, 0.0
      %4639 = vadd.xlane.f32.xlu0 %v4638
      %v4640 = vpop.xlane.xlu0 %4639
      %v4641 = vsel %vm614, %v4595, 0.0
      %4642 = vadd.xlane.f32.xlu0 %v4641
      %v4643 = vpop.xlane.xlu0 %4642
      %v4644 = vmul.f32 %v4598, %v4547
      %v4645 = vmul.f32 %v4601, %v4547
      %v4646 = vmul.f32 %v4604, %v4547
      %v4647 = vmul.f32 %v4607, %v4547
      %v4648 = vmul.f32 %v4610, %v4547
      %v4649 = vmul.f32 %v4613, %v4547
      %v4650 = vmul.f32 %v4616, %v4547
      %v4651 = vmul.f32 %v4619, %v4547
      %v4652 = vmul.f32 %v4622, %v4547
      %v4653 = vmul.f32 %v4625, %v4547
      %v4654 = vmul.f32 %v4628, %v4547
      %v4655 = vmul.f32 %v4631, %v4547
      %v4656 = vmul.f32 %v4634, %v4547
      %v4657 = vmul.f32 %v4637, %v4547
      %v4658 = vmul.f32 %v4640, %v4547
      %v4659 = vmul.f32 %v4643, %v4547
      %v4660 = vadd.f32 %v4644, 1e-05
      %v4661 = vadd.f32 %v4645, 1e-05
      %v4662 = vadd.f32 %v4646, 1e-05
      %v4663 = vadd.f32 %v4647, 1e-05
      %v4664 = vadd.f32 %v4648, 1e-05
      %v4665 = vadd.f32 %v4649, 1e-05
      %v4666 = vadd.f32 %v4650, 1e-05
      %v4667 = vadd.f32 %v4651, 1e-05
      %v4668 = vadd.f32 %v4652, 1e-05
      %v4669 = vadd.f32 %v4653, 1e-05
      %v4670 = vadd.f32 %v4654, 1e-05
      %v4671 = vadd.f32 %v4655, 1e-05
      %v4672 = vadd.f32 %v4656, 1e-05
      %v4673 = vadd.f32 %v4657, 1e-05
      %v4674 = vadd.f32 %v4658, 1e-05
      %v4675 = vadd.f32 %v4659, 1e-05
      %v4676 = vrsqrt.pop %v4660
      %v4677 = vrsqrt.pop %v4661
      %v4678 = vrsqrt.pop %v4662
      %v4679 = vrsqrt.pop %v4663
      %v4680 = vrsqrt.pop %v4664
      %v4681 = vrsqrt.pop %v4665
      %v4682 = vrsqrt.pop %v4666
      %v4683 = vrsqrt.pop %v4667
      %v4684 = vrsqrt.pop %v4668
      %v4685 = vrsqrt.pop %v4669
      %v4686 = vrsqrt.pop %v4670
      %v4687 = vrsqrt.pop %v4671
      %v4688 = vrsqrt.pop %v4672
      %v4689 = vrsqrt.pop %v4673
      %v4690 = vrsqrt.pop %v4674
      %v4691 = vrsqrt.pop %v4675
      %v4692 = vmul.f32 %v4564, %v4676
      %v4693 = vmul.f32 %v4565, %v4677
      %v4694 = vmul.f32 %v4566, %v4678
      %v4695 = vmul.f32 %v4567, %v4679
      %v4696 = vmul.f32 %v4568, %v4680
      %v4697 = vmul.f32 %v4569, %v4681
      %v4698 = vmul.f32 %v4570, %v4682
      %v4699 = vmul.f32 %v4571, %v4683
      %v4700 = vmul.f32 %v4572, %v4684
      %v4701 = vmul.f32 %v4573, %v4685
      %v4702 = vmul.f32 %v4574, %v4686
      %v4703 = vmul.f32 %v4575, %v4687
      %v4704 = vmul.f32 %v4576, %v4688
      %v4705 = vmul.f32 %v4577, %v4689
      %v4706 = vmul.f32 %v4578, %v4690
      %v4707 = vmul.f32 %v4579, %v4691
      %v4709 = vlaneseq
      %v4710 = vshrl.u32 %v4709, 7
      %v4711 = vsub.s32 0, %v4710
      %v4712 = vrot.slane %v4497, %v4711
      %v4714 = vmul.f32 %v4692, %v4712
      %v4715 = vmul.f32 %v4693, %v4712
      %v4716 = vmul.f32 %v4694, %v4712
      %v4717 = vmul.f32 %v4695, %v4712
      %v4718 = vmul.f32 %v4696, %v4712
      %v4719 = vmul.f32 %v4697, %v4712
      %v4720 = vmul.f32 %v4698, %v4712
      %v4721 = vmul.f32 %v4699, %v4712
      %v4722 = vmul.f32 %v4700, %v4712
      %v4723 = vmul.f32 %v4701, %v4712
      %v4724 = vmul.f32 %v4702, %v4712
      %v4725 = vmul.f32 %v4703, %v4712
      %v4726 = vmul.f32 %v4704, %v4712
      %v4727 = vmul.f32 %v4705, %v4712
      %v4728 = vmul.f32 %v4706, %v4712
      %v4729 = vmul.f32 %v4707, %v4712
      %v4731 = vlaneseq
      %v4732 = vshrl.u32 %v4731, 7
      %v4733 = vsub.s32 0, %v4732
      %v4734 = vrot.slane %v4498, %v4733
      %v4736 = vadd.f32 %v4714, %v4734
      %v4737 = vadd.f32 %v4715, %v4734
      %v4738 = vadd.f32 %v4716, %v4734
      %v4739 = vadd.f32 %v4717, %v4734
      %v4740 = vadd.f32 %v4718, %v4734
      %v4741 = vadd.f32 %v4719, %v4734
      %v4742 = vadd.f32 %v4720, %v4734
      %v4743 = vadd.f32 %v4721, %v4734
      %v4744 = vadd.f32 %v4722, %v4734
      %v4745 = vadd.f32 %v4723, %v4734
      %v4746 = vadd.f32 %v4724, %v4734
      %v4747 = vadd.f32 %v4725, %v4734
      %v4748 = vadd.f32 %v4726, %v4734
      %v4749 = vadd.f32 %v4727, %v4734
      %v4750 = vadd.f32 %v4728, %v4734
      %v4751 = vadd.f32 %v4729, %v4734
      %v4752 = vld [vmem:[%s10] sm:$0xff]
      %v4753 = vld [vmem:[%s10 + $0x8] sm:$0xff]
      %v4754 = vld [vmem:[%s10 + $0x10] sm:$0xff]
      %v4755 = vld [vmem:[%s10 + $0x18] sm:$0xff]
      %v4756 = vld [vmem:[%s11] sm:$0x1]
      %v4758 = vlaneseq
      %v4759 = vshrl.u32 %v4758, 7
      %v4760 = vsub.s32 0, %v4759
      %v4761 = vrot.slane %v4756, %v4760
      %v4764 = vsel %vm614, %v4736, 0
      %v4767 = vsel %vm614, %v4737, 0
      %v4770 = vsel %vm614, %v4738, 0
      %v4773 = vsel %vm614, %v4739, 0
      %v4776 = vsel %vm614, %v4740, 0
      %v4779 = vsel %vm614, %v4741, 0
      %v4782 = vsel %vm614, %v4742, 0
      %v4785 = vsel %vm614, %v4743, 0
      %v4788 = vsel %vm614, %v4744, 0
      %v4791 = vsel %vm614, %v4745, 0
      %v4794 = vsel %vm614, %v4746, 0
      %v4797 = vsel %vm614, %v4747, 0
      %v4800 = vsel %vm614, %v4748, 0
      %v4803 = vsel %vm614, %v4749, 0
      %v4806 = vsel %vm614, %v4750, 0
      %v4809 = vsel %vm614, %v4751, 0
      %4811 = vmatprep.subr.mxu0 0.0
      %4812 = vmatpush1.msra.mxu0 %v4752
      %4813 = vmatprep.subr.mxu0 0.0
      %4814 = vmatpush1.msra.mxu0 %v4753
      %4815 = vmatprep.subr.mxu0 0.0
      %4816 = vmatpush1.msra.mxu0 %v4754
      %4817 = vmatprep.subr.mxu0 0.0
      %4818 = vmatpush1.msra.mxu0 %v4755
      %4819 = vmatprep.subr.mxu0 0.0
      %4820 = vmatpush1.msra.mxu0 0.0
      %4821 = vmatprep.subr.mxu0 0.0
      %4822 = vmatpush1.msra.mxu0 0.0
      %4823 = vmatprep.subr.mxu0 0.0
      %4824 = vmatpush1.msra.mxu0 0.0
      %4825 = vmatprep.subr.mxu0 0.0
      %4826 = vmatpush1.msra.mxu0 0.0
      %4827 = vmatprep.subr.mxu0 0.0
      %4828 = vmatpush1.msra.mxu0 0.0
      %4829 = vmatprep.subr.mxu0 0.0
      %4830 = vmatpush1.msra.mxu0 0.0
      %4831 = vmatprep.subr.mxu0 0.0
      %4832 = vmatpush1.msra.mxu0 0.0
      %4833 = vmatprep.subr.mxu0 0.0
      %4834 = vmatpush1.msra.mxu0 0.0
      %4835 = vmatprep.subr.mxu0 0.0
      %4836 = vmatpush1.msra.mxu0 0.0
      %4837 = vmatprep.subr.mxu0 0.0
      %4838 = vmatpush1.msra.mxu0 0.0
      %4839 = vmatprep.subr.mxu0 0.0
      %4840 = vmatpush1.msra.mxu0 0.0
      %4841 = vmatprep.subr.mxu0 0.0
      %4842 = vmatpush1.msra.mxu0 0.0
      %4843 = vmatprep.subr.mxu0 0.0
      %4844 = vmatpush1.msra.mxu0 0.0
      %4845 = vmatprep.subr.mxu0 0.0
      %4846 = vmatpush1.msra.mxu0 0.0
      %4847 = vmatprep.subr.mxu0 0.0
      %4848 = vmatpush1.msra.mxu0 0.0
      %4849 = vmatprep.subr.mxu0 0.0
      %4850 = vmatpush1.msra.mxu0 0.0
      %4851 = vmatprep.subr.mxu0 0.0
      %4852 = vmatpush1.msra.mxu0 0.0
      %4853 = vmatprep.subr.mxu0 0.0
      %4854 = vmatpush1.msra.mxu0 0.0
      %4855 = vmatprep.subr.mxu0 0.0
      %4856 = vmatpush1.msra.mxu0 0.0
      %4857 = vmatprep.subr.mxu0 0.0
      %4858 = vmatpush1.msra.mxu0 0.0
      %4859 = vmatprep.subr.mxu0 0.0
      %4860 = vmatpush1.msra.mxu0 0.0
      %4861 = vmatprep.subr.mxu0 0.0
      %4862 = vmatpush1.msra.mxu0 0.0
      %4863 = vmatprep.subr.mxu0 0.0
      %4864 = vmatpush1.msra.mxu0 0.0
      %4865 = vmatprep.subr.mxu0 0.0
      %4866 = vmatpush1.msra.mxu0 0.0
      %4867 = vmatprep.subr.mxu0 0.0
      %4868 = vmatpush1.msra.mxu0 0.0
      %4869 = vmatprep.subr.mxu0 0.0
      %4870 = vmatpush1.msra.mxu0 0.0
      %4871 = vmatprep.subr.mxu0 0.0
      %4872 = vmatpush1.msra.mxu0 0.0
      %4873 = vmatprep.subr.mxu0 0.0
      %4874 = vmatpush1.msra.mxu0 0.0
      %4875 = vmatprep.mubr.f32.mxu0 0.0
      %4876 = vmatmul.mubr.f32.gmra.mrb[0].mxu0 %v4764
      %v4877 = vpop.f32.mrb[0].mxu0
      %v4878 = vadd.f32 %v4761, %v4877
      %v4879 = vpop.f32.mrb[0].mxu0
      %4880 = vmatprep.mubr.f32.mxu0 0.0
      %4881 = vmatmul.mubr.f32.gmra.mrb[0].mxu0 %v4767
      %v4882 = vpop.f32.mrb[0].mxu0
      %v4883 = vadd.f32 %v4761, %v4882
      %v4884 = vpop.f32.mrb[0].mxu0
      %4885 = vmatprep.mubr.f32.mxu0 0.0
      %4886 = vmatmul.mubr.f32.gmra.mrb[0].mxu0 %v4770
      %v4887 = vpop.f32.mrb[0].mxu0
      %v4888 = vadd.f32 %v4761, %v4887
      %v4889 = vpop.f32.mrb[0].mxu0
      %4890 = vmatprep.mubr.f32.mxu0 0.0
      %4891 = vmatmul.mubr.f32.gmra.mrb[0].mxu0 %v4773
      %v4892 = vpop.f32.mrb[0].mxu0
      %v4893 = vadd.f32 %v4761, %v4892
      %v4894 = vpop.f32.mrb[0].mxu0
      %4895 = vmatprep.mubr.f32.mxu0 0.0
      %4896 = vmatmul.mubr.f32.gmra.mrb[0].mxu0 %v4776
      %v4897 = vpop.f32.mrb[0].mxu0
      %v4898 = vadd.f32 %v4761, %v4897
      %v4899 = vpop.f32.mrb[0].mxu0
      %4900 = vmatprep.mubr.f32.mxu0 0.0
      %4901 = vmatmul.mubr.f32.gmra.mrb[0].mxu0 %v4779
      %v4902 = vpop.f32.mrb[0].mxu0
      %v4903 = vadd.f32 %v4761, %v4902
      %v4904 = vpop.f32.mrb[0].mxu0
      %4905 = vmatprep.mubr.f32.mxu0 0.0
      %4906 = vmatmul.mubr.f32.gmra.mrb[0].mxu0 %v4782
      %v4907 = vpop.f32.mrb[0].mxu0
      %v4908 = vadd.f32 %v4761, %v4907
      %v4909 = vpop.f32.mrb[0].mxu0
      %4910 = vmatprep.mubr.f32.mxu0 0.0
      %4911 = vmatmul.mubr.f32.gmra.mrb[0].mxu0 %v4785
      %v4912 = vpop.f32.mrb[0].mxu0
      %v4913 = vadd.f32 %v4761, %v4912
      %v4914 = vpop.f32.mrb[0].mxu0
      %4915 = vmatprep.mubr.f32.mxu0 0.0
      %4916 = vmatmul.mubr.f32.gmra.mrb[0].mxu0 %v4788
      %v4917 = vpop.f32.mrb[0].mxu0
      %v4918 = vadd.f32 %v4761, %v4917
      %v4919 = vpop.f32.mrb[0].mxu0
      %4920 = vmatprep.mubr.f32.mxu0 0.0
      %4921 = vmatmul.mubr.f32.gmra.mrb[0].mxu0 %v4791
      %v4922 = vpop.f32.mrb[0].mxu0
      %v4923 = vadd.f32 %v4761, %v4922
      %v4924 = vpop.f32.mrb[0].mxu0
      %4925 = vmatprep.mubr.f32.mxu0 0.0
      %4926 = vmatmul.mubr.f32.gmra.mrb[0].mxu0 %v4794
      %v4927 = vpop.f32.mrb[0].mxu0
      %v4928 = vadd.f32 %v4761, %v4927
      %v4929 = vpop.f32.mrb[0].mxu0
      %4930 = vmatprep.mubr.f32.mxu0 0.0
      %4931 = vmatmul.mubr.f32.gmra.mrb[0].mxu0 %v4797
      %v4932 = vpop.f32.mrb[0].mxu0
      %v4933 = vadd.f32 %v4761, %v4932
      %v4934 = vpop.f32.mrb[0].mxu0
      %4935 = vmatprep.mubr.f32.mxu0 0.0
      %4936 = vmatmul.mubr.f32.gmra.mrb[0].mxu0 %v4800
      %v4937 = vpop.f32.mrb[0].mxu0
      %v4938 = vadd.f32 %v4761, %v4937
      %v4939 = vpop.f32.mrb[0].mxu0
      %4940 = vmatprep.mubr.f32.mxu0 0.0
      %4941 = vmatmul.mubr.f32.gmra.mrb[0].mxu0 %v4803
      %v4942 = vpop.f32.mrb[0].mxu0
      %v4943 = vadd.f32 %v4761, %v4942
      %v4944 = vpop.f32.mrb[0].mxu0
      %4945 = vmatprep.mubr.f32.mxu0 0.0
      %4946 = vmatmul.mubr.f32.gmra.mrb[0].mxu0 %v4806
      %v4947 = vpop.f32.mrb[0].mxu0
      %v4948 = vadd.f32 %v4761, %v4947
      %v4949 = vpop.f32.mrb[0].mxu0
      %4950 = vmatprep.mubr.f32.mxu0 0.0
      %4951 = vmatmul.mubr.f32.gmra.mrb[0].mxu0 %v4809
      %v4952 = vpop.f32.mrb[0].mxu0
      %v4953 = vadd.f32 %v4761, %v4952
      %v4954 = vpop.f32.mrb[0].mxu0
      %4955 = vdwg.mxu0
      %v4956 = vmul.f32 %v4878, 0.5
      %v4957 = vmul.f32 %v4883, 0.5
      %v4958 = vmul.f32 %v4888, 0.5
      %v4959 = vmul.f32 %v4893, 0.5
      %v4960 = vmul.f32 %v4898, 0.5
      %v4961 = vmul.f32 %v4903, 0.5
      %v4962 = vmul.f32 %v4908, 0.5
      %v4963 = vmul.f32 %v4913, 0.5
      %v4964 = vmul.f32 %v4918, 0.5
      %v4965 = vmul.f32 %v4923, 0.5
      %v4966 = vmul.f32 %v4928, 0.5
      %v4967 = vmul.f32 %v4933, 0.5
      %v4968 = vmul.f32 %v4938, 0.5
      %v4969 = vmul.f32 %v4943, 0.5
      %v4970 = vmul.f32 %v4948, 0.5
      %v4971 = vmul.f32 %v4953, 0.5
      %v4972 = vmul.f32 %v4878, 0.044715
      %v4973 = vmul.f32 %v4883, 0.044715
      %v4974 = vmul.f32 %v4888, 0.044715
      %v4975 = vmul.f32 %v4893, 0.044715
      %v4976 = vmul.f32 %v4898, 0.044715
      %v4977 = vmul.f32 %v4903, 0.044715
      %v4978 = vmul.f32 %v4908, 0.044715
      %v4979 = vmul.f32 %v4913, 0.044715
      %v4980 = vmul.f32 %v4918, 0.044715
      %v4981 = vmul.f32 %v4923, 0.044715
      %v4982 = vmul.f32 %v4928, 0.044715
      %v4983 = vmul.f32 %v4933, 0.044715
      %v4984 = vmul.f32 %v4938, 0.044715
      %v4985 = vmul.f32 %v4943, 0.044715
      %v4986 = vmul.f32 %v4948, 0.044715
      %v4987 = vmul.f32 %v4953, 0.044715
      %v4988 = vmul.f32 %v4972, %v4878
      %v4989 = vmul.f32 %v4973, %v4883
      %v4990 = vmul.f32 %v4974, %v4888
      %v4991 = vmul.f32 %v4975, %v4893
      %v4992 = vmul.f32 %v4976, %v4898
      %v4993 = vmul.f32 %v4977, %v4903
      %v4994 = vmul.f32 %v4978, %v4908
      %v4995 = vmul.f32 %v4979, %v4913
      %v4996 = vmul.f32 %v4980, %v4918
      %v4997 = vmul.f32 %v4981, %v4923
      %v4998 = vmul.f32 %v4982, %v4928
      %v4999 = vmul.f32 %v4983, %v4933
      %v5000 = vmul.f32 %v4984, %v4938
      %v5001 = vmul.f32 %v4985, %v4943
      %v5002 = vmul.f32 %v4986, %v4948
      %v5003 = vmul.f32 %v4987, %v4953
      %v5004 = vmul.f32 %v4988, %v4878
      %v5005 = vmul.f32 %v4989, %v4883
      %v5006 = vmul.f32 %v4990, %v4888
      %v5007 = vmul.f32 %v4991, %v4893
      %v5008 = vmul.f32 %v4992, %v4898
      %v5009 = vmul.f32 %v4993, %v4903
      %v5010 = vmul.f32 %v4994, %v4908
      %v5011 = vmul.f32 %v4995, %v4913
      %v5012 = vmul.f32 %v4996, %v4918
      %v5013 = vmul.f32 %v4997, %v4923
      %v5014 = vmul.f32 %v4998, %v4928
      %v5015 = vmul.f32 %v4999, %v4933
      %v5016 = vmul.f32 %v5000, %v4938
      %v5017 = vmul.f32 %v5001, %v4943
      %v5018 = vmul.f32 %v5002, %v4948
      %v5019 = vmul.f32 %v5003, %v4953
      %v5020 = vadd.f32 %v4878, %v5004
      %v5021 = vadd.f32 %v4883, %v5005
      %v5022 = vadd.f32 %v4888, %v5006
      %v5023 = vadd.f32 %v4893, %v5007
      %v5024 = vadd.f32 %v4898, %v5008
      %v5025 = vadd.f32 %v4903, %v5009
      %v5026 = vadd.f32 %v4908, %v5010
      %v5027 = vadd.f32 %v4913, %v5011
      %v5028 = vadd.f32 %v4918, %v5012
      %v5029 = vadd.f32 %v4923, %v5013
      %v5030 = vadd.f32 %v4928, %v5014
      %v5031 = vadd.f32 %v4933, %v5015
      %v5032 = vadd.f32 %v4938, %v5016
      %v5033 = vadd.f32 %v4943, %v5017
      %v5034 = vadd.f32 %v4948, %v5018
      %v5035 = vadd.f32 %v4953, %v5019
      %v5036 = vmul.f32 %v5020, 0.7978846
      %v5037 = vmul.f32 %v5021, 0.7978846
      %v5038 = vmul.f32 %v5022, 0.7978846
      %v5039 = vmul.f32 %v5023, 0.7978846
      %v5040 = vmul.f32 %v5024, 0.7978846
      %v5041 = vmul.f32 %v5025, 0.7978846
      %v5042 = vmul.f32 %v5026, 0.7978846
      %v5043 = vmul.f32 %v5027, 0.7978846
      %v5044 = vmul.f32 %v5028, 0.7978846
      %v5045 = vmul.f32 %v5029, 0.7978846
      %v5046 = vmul.f32 %v5030, 0.7978846
      %v5047 = vmul.f32 %v5031, 0.7978846
      %v5048 = vmul.f32 %v5032, 0.7978846
      %v5049 = vmul.f32 %v5033, 0.7978846
      %v5050 = vmul.f32 %v5034, 0.7978846
      %v5051 = vmul.f32 %v5035, 0.7978846
      %v5052 = vtanh.pop %v5036
      %v5053 = vtanh.pop %v5037
      %v5054 = vtanh.pop %v5038
      %v5055 = vtanh.pop %v5039
      %v5056 = vtanh.pop %v5040
      %v5057 = vtanh.pop %v5041
      %v5058 = vtanh.pop %v5042
      %v5059 = vtanh.pop %v5043
      %v5060 = vtanh.pop %v5044
      %v5061 = vtanh.pop %v5045
      %v5062 = vtanh.pop %v5046
      %v5063 = vtanh.pop %v5047
      %v5064 = vtanh.pop %v5048
      %v5065 = vtanh.pop %v5049
      %v5066 = vtanh.pop %v5050
      %v5067 = vtanh.pop %v5051
      %v5068 = vadd.f32 %v5052, 1.0
      %v5069 = vadd.f32 %v5053, 1.0
      %v5070 = vadd.f32 %v5054, 1.0
      %v5071 = vadd.f32 %v5055, 1.0
      %v5072 = vadd.f32 %v5056, 1.0
      %v5073 = vadd.f32 %v5057, 1.0
      %v5074 = vadd.f32 %v5058, 1.0
      %v5075 = vadd.f32 %v5059, 1.0
      %v5076 = vadd.f32 %v5060, 1.0
      %v5077 = vadd.f32 %v5061, 1.0
      %v5078 = vadd.f32 %v5062, 1.0
      %v5079 = vadd.f32 %v5063, 1.0
      %v5080 = vadd.f32 %v5064, 1.0
      %v5081 = vadd.f32 %v5065, 1.0
      %v5082 = vadd.f32 %v5066, 1.0
      %v5083 = vadd.f32 %v5067, 1.0
      %v5084 = vmul.f32 %v4956, %v5068
      %v5085 = vmul.f32 %v4957, %v5069
      %v5086 = vmul.f32 %v4958, %v5070
      %v5087 = vmul.f32 %v4959, %v5071
      %v5088 = vmul.f32 %v4960, %v5072
      %v5089 = vmul.f32 %v4961, %v5073
      %v5090 = vmul.f32 %v4962, %v5074
      %v5091 = vmul.f32 %v4963, %v5075
      %v5092 = vmul.f32 %v4964, %v5076
      %v5093 = vmul.f32 %v4965, %v5077
      %v5094 = vmul.f32 %v4966, %v5078
      %v5095 = vmul.f32 %v4967, %v5079
      %v5096 = vmul.f32 %v4968, %v5080
      %v5097 = vmul.f32 %v4969, %v5081
      %v5098 = vmul.f32 %v4970, %v5082
      %v5099 = vmul.f32 %v4971, %v5083
      %v5100 = vld [vmem:[%s12] sm:$0xff]
      %v5101 = vld [vmem:[%s12 + $0x8] sm:$0xff]
      %v5102 = vld [vmem:[%s12 + $0x10] sm:$0xff]
      %v5103 = vld [vmem:[%s12 + $0x18] sm:$0xff]
      %v5104 = vld [vmem:[%s12 + $0x20] sm:$0xff]
      %v5105 = vld [vmem:[%s12 + $0x28] sm:$0xff]
      %v5106 = vld [vmem:[%s12 + $0x30] sm:$0xff]
      %v5107 = vld [vmem:[%s12 + $0x38] sm:$0xff]
      %v5108 = vld [vmem:[%s13] sm:$0x1]
      %v5110 = vlaneseq
      %v5111 = vshrl.u32 %v5110, 7
      %v5112 = vsub.s32 0, %v5111
      %v5113 = vrot.slane %v5108, %v5112
      %vm5115 = vcmask 523264
      %v5117 = vsel %vm5115, %v5084, 0
      %v5120 = vsel %vm5115, %v5085, 0
      %v5123 = vsel %vm5115, %v5086, 0
      %v5126 = vsel %vm5115, %v5087, 0
      %v5129 = vsel %vm5115, %v5088, 0
      %v5132 = vsel %vm5115, %v5089, 0
      %v5135 = vsel %vm5115, %v5090, 0
      %v5138 = vsel %vm5115, %v5091, 0
      %v5141 = vsel %vm5115, %v5092, 0
      %v5144 = vsel %vm5115, %v5093, 0
      %v5147 = vsel %vm5115, %v5094, 0
      %v5150 = vsel %vm5115, %v5095, 0
      %v5153 = vsel %vm5115, %v5096, 0
      %v5156 = vsel %vm5115, %v5097, 0
      %v5159 = vsel %vm5115, %v5098, 0
      %v5162 = vsel %vm5115, %v5099, 0
      %5164 = vmatprep.subr.mxu0 0.0
      %5165 = vmatpush1.msra.mxu0 %v5100
      %5166 = vmatprep.subr.mxu0 0.0
      %5167 = vmatpush1.msra.mxu0 %v5101
      %5168 = vmatprep.subr.mxu0 0.0
      %5169 = vmatpush1.msra.mxu0 %v5102
      %5170 = vmatprep.subr.mxu0 0.0
      %5171 = vmatpush1.msra.mxu0 %v5103
      %5172 = vmatprep.subr.mxu0 0.0
      %5173 = vmatpush1.msra.mxu0 %v5104
      %5174 = vmatprep.subr.mxu0 0.0
      %5175 = vmatpush1.msra.mxu0 %v5105
      %5176 = vmatprep.subr.mxu0 0.0
      %5177 = vmatpush1.msra.mxu0 %v5106
      %5178 = vmatprep.subr.mxu0 0.0
      %5179 = vmatpush1.msra.mxu0 %v5107
      %5180 = vmatprep.subr.mxu0 0.0
      %5181 = vmatpush1.msra.mxu0 0.0
      %5182 = vmatprep.subr.mxu0 0.0
      %5183 = vmatpush1.msra.mxu0 0.0
      %5184 = vmatprep.subr.mxu0 0.0
      %5185 = vmatpush1.msra.mxu0 0.0
      %5186 = vmatprep.subr.mxu0 0.0
      %5187 = vmatpush1.msra.mxu0 0.0
      %5188 = vmatprep.subr.mxu0 0.0
      %5189 = vmatpush1.msra.mxu0 0.0
      %5190 = vmatprep.subr.mxu0 0.0
      %5191 = vmatpush1.msra.mxu0 0.0
      %5192 = vmatprep.subr.mxu0 0.0
      %5193 = vmatpush1.msra.mxu0 0.0
      %5194 = vmatprep.subr.mxu0 0.0
      %5195 = vmatpush1.msra.mxu0 0.0
      %5196 = vmatprep.subr.mxu0 0.0
      %5197 = vmatpush1.msra.mxu0 0.0
      %5198 = vmatprep.subr.mxu0 0.0
      %5199 = vmatpush1.msra.mxu0 0.0
      %5200 = vmatprep.subr.mxu0 0.0
      %5201 = vmatpush1.msra.mxu0 0.0
      %5202 = vmatprep.subr.mxu0 0.0
      %5203 = vmatpush1.msra.mxu0 0.0
      %5204 = vmatprep.subr.mxu0 0.0
      %5205 = vmatpush1.msra.mxu0 0.0
      %5206 = vmatprep.subr.mxu0 0.0
      %5207 = vmatpush1.msra.mxu0 0.0
      %5208 = vmatprep.subr.mxu0 0.0
      %5209 = vmatpush1.msra.mxu0 0.0
      %5210 = vmatprep.subr.mxu0 0.0
      %5211 = vmatpush1.msra.mxu0 0.0
      %5212 = vmatprep.subr.mxu0 0.0
      %5213 = vmatpush1.msra.mxu0 0.0
      %5214 = vmatprep.subr.mxu0 0.0
      %5215 = vmatpush1.msra.mxu0 0.0
      %5216 = vmatprep.subr.mxu0 0.0
      %5217 = vmatpush1.msra.mxu0 0.0
      %5218 = vmatprep.subr.mxu0 0.0
      %5219 = vmatpush1.msra.mxu0 0.0
      %5220 = vmatprep.subr.mxu0 0.0
      %5221 = vmatpush1.msra.mxu0 0.0
      %5222 = vmatprep.subr.mxu0 0.0
      %5223 = vmatpush1.msra.mxu0 0.0
      %5224 = vmatprep.subr.mxu0 0.0
      %5225 = vmatpush1.msra.mxu0 0.0
      %5226 = vmatprep.subr.mxu0 0.0
      %5227 = vmatpush1.msra.mxu0 0.0
      %5228 = vmatprep.mubr.f32.mxu0 0.0
      %5229 = vmatmul.mubr.f32.gmra.mrb[0].mxu0 %v5117
      %v5230 = vpop.f32.mrb[0].mxu0
      %v5231 = vadd.f32 %v5113, %v5230
      %v5232 = vpop.f32.mrb[0].mxu0
      %5233 = vmatprep.mubr.f32.mxu0 0.0
      %5234 = vmatmul.mubr.f32.gmra.mrb[0].mxu0 %v5120
      %v5235 = vpop.f32.mrb[0].mxu0
      %v5236 = vadd.f32 %v5113, %v5235
      %v5237 = vpop.f32.mrb[0].mxu0
      %5238 = vmatprep.mubr.f32.mxu0 0.0
      %5239 = vmatmul.mubr.f32.gmra.mrb[0].mxu0 %v5123
      %v5240 = vpop.f32.mrb[0].mxu0
      %v5241 = vadd.f32 %v5113, %v5240
      %v5242 = vpop.f32.mrb[0].mxu0
      %5243 = vmatprep.mubr.f32.mxu0 0.0
      %5244 = vmatmul.mubr.f32.gmra.mrb[0].mxu0 %v5126
      %v5245 = vpop.f32.mrb[0].mxu0
      %v5246 = vadd.f32 %v5113, %v5245
      %v5247 = vpop.f32.mrb[0].mxu0
      %5248 = vmatprep.mubr.f32.mxu0 0.0
      %5249 = vmatmul.mubr.f32.gmra.mrb[0].mxu0 %v5129
      %v5250 = vpop.f32.mrb[0].mxu0
      %v5251 = vadd.f32 %v5113, %v5250
      %v5252 = vpop.f32.mrb[0].mxu0
      %5253 = vmatprep.mubr.f32.mxu0 0.0
      %5254 = vmatmul.mubr.f32.gmra.mrb[0].mxu0 %v5132
      %v5255 = vpop.f32.mrb[0].mxu0
      %v5256 = vadd.f32 %v5113, %v5255
      %v5257 = vpop.f32.mrb[0].mxu0
      %5258 = vmatprep.mubr.f32.mxu0 0.0
      %5259 = vmatmul.mubr.f32.gmra.mrb[0].mxu0 %v5135
      %v5260 = vpop.f32.mrb[0].mxu0
      %v5261 = vadd.f32 %v5113, %v5260
      %v5262 = vpop.f32.mrb[0].mxu0
      %5263 = vmatprep.mubr.f32.mxu0 0.0
      %5264 = vmatmul.mubr.f32.gmra.mrb[0].mxu0 %v5138
      %v5265 = vpop.f32.mrb[0].mxu0
      %v5266 = vadd.f32 %v5113, %v5265
      %v5267 = vpop.f32.mrb[0].mxu0
      %5268 = vmatprep.mubr.f32.mxu0 0.0
      %5269 = vmatmul.mubr.f32.gmra.mrb[0].mxu0 %v5141
      %v5270 = vpop.f32.mrb[0].mxu0
      %v5271 = vadd.f32 %v5113, %v5270
      %v5272 = vpop.f32.mrb[0].mxu0
      %5273 = vmatprep.mubr.f32.mxu0 0.0
      %5274 = vmatmul.mubr.f32.gmra.mrb[0].mxu0 %v5144
      %v5275 = vpop.f32.mrb[0].mxu0
      %v5276 = vadd.f32 %v5113, %v5275
      %v5277 = vpop.f32.mrb[0].mxu0
      %5278 = vmatprep.mubr.f32.mxu0 0.0
      %5279 = vmatmul.mubr.f32.gmra.mrb[0].mxu0 %v5147
      %v5280 = vpop.f32.mrb[0].mxu0
      %v5281 = vadd.f32 %v5113, %v5280
      %v5282 = vpop.f32.mrb[0].mxu0
      %5283 = vmatprep.mubr.f32.mxu0 0.0
      %5284 = vmatmul.mubr.f32.gmra.mrb[0].mxu0 %v5150
      %v5285 = vpop.f32.mrb[0].mxu0
      %v5286 = vadd.f32 %v5113, %v5285
      %v5287 = vpop.f32.mrb[0].mxu0
      %5288 = vmatprep.mubr.f32.mxu0 0.0
      %5289 = vmatmul.mubr.f32.gmra.mrb[0].mxu0 %v5153
      %v5290 = vpop.f32.mrb[0].mxu0
      %v5291 = vadd.f32 %v5113, %v5290
      %v5292 = vpop.f32.mrb[0].mxu0
      %5293 = vmatprep.mubr.f32.mxu0 0.0
      %5294 = vmatmul.mubr.f32.gmra.mrb[0].mxu0 %v5156
      %v5295 = vpop.f32.mrb[0].mxu0
      %v5296 = vadd.f32 %v5113, %v5295
      %v5297 = vpop.f32.mrb[0].mxu0
      %5298 = vmatprep.mubr.f32.mxu0 0.0
      %5299 = vmatmul.mubr.f32.gmra.mrb[0].mxu0 %v5159
      %v5300 = vpop.f32.mrb[0].mxu0
      %v5301 = vadd.f32 %v5113, %v5300
      %v5302 = vpop.f32.mrb[0].mxu0
      %5303 = vmatprep.mubr.f32.mxu0 0.0
      %5304 = vmatmul.mubr.f32.gmra.mrb[0].mxu0 %v5162
      %v5305 = vpop.f32.mrb[0].mxu0
      %v5306 = vadd.f32 %v5113, %v5305
      %v5307 = vpop.f32.mrb[0].mxu0
      %5308 = vdwg.mxu0
      %v5309 = vadd.f32 %v4736, %v5231
      %v5310 = vadd.f32 %v4737, %v5236
      %v5311 = vadd.f32 %v4738, %v5241
      %v5312 = vadd.f32 %v4739, %v5246
      %v5313 = vadd.f32 %v4740, %v5251
      %v5314 = vadd.f32 %v4741, %v5256
      %v5315 = vadd.f32 %v4742, %v5261
      %v5316 = vadd.f32 %v4743, %v5266
      %v5317 = vadd.f32 %v4744, %v5271
      %v5318 = vadd.f32 %v4745, %v5276
      %v5319 = vadd.f32 %v4746, %v5281
      %v5320 = vadd.f32 %v4747, %v5286
      %v5321 = vadd.f32 %v4748, %v5291
      %v5322 = vadd.f32 %v4749, %v5296
      %v5323 = vadd.f32 %v4750, %v5301
      %v5324 = vadd.f32 %v4751, %v5306
      %v5325 = vld [vmem:[%s14] sm:$0x1]
      %v5326 = vld [vmem:[%s15] sm:$0x1]
      %v5327 = vsel %vm614, %v5309, 0.0
      %5328 = vadd.xlane.f32.xlu0 %v5327
      %v5329 = vpop.xlane.xlu0 %5328
      %v5330 = vsel %vm614, %v5310, 0.0
      %5331 = vadd.xlane.f32.xlu0 %v5330
      %v5332 = vpop.xlane.xlu0 %5331
      %v5333 = vsel %vm614, %v5311, 0.0
      %5334 = vadd.xlane.f32.xlu0 %v5333
      %v5335 = vpop.xlane.xlu0 %5334
      %v5336 = vsel %vm614, %v5312, 0.0
      %5337 = vadd.xlane.f32.xlu0 %v5336
      %v5338 = vpop.xlane.xlu0 %5337
      %v5339 = vsel %vm614, %v5313, 0.0
      %5340 = vadd.xlane.f32.xlu0 %v5339
      %v5341 = vpop.xlane.xlu0 %5340
      %v5342 = vsel %vm614, %v5314, 0.0
      %5343 = vadd.xlane.f32.xlu0 %v5342
      %v5344 = vpop.xlane.xlu0 %5343
      %v5345 = vsel %vm614, %v5315, 0.0
      %5346 = vadd.xlane.f32.xlu0 %v5345
      %v5347 = vpop.xlane.xlu0 %5346
      %v5348 = vsel %vm614, %v5316, 0.0
      %5349 = vadd.xlane.f32.xlu0 %v5348
      %v5350 = vpop.xlane.xlu0 %5349
      %v5351 = vsel %vm614, %v5317, 0.0
      %5352 = vadd.xlane.f32.xlu0 %v5351
      %v5353 = vpop.xlane.xlu0 %5352
      %v5354 = vsel %vm614, %v5318, 0.0
      %5355 = vadd.xlane.f32.xlu0 %v5354
      %v5356 = vpop.xlane.xlu0 %5355
      %v5357 = vsel %vm614, %v5319, 0.0
      %5358 = vadd.xlane.f32.xlu0 %v5357
      %v5359 = vpop.xlane.xlu0 %5358
      %v5360 = vsel %vm614, %v5320, 0.0
      %5361 = vadd.xlane.f32.xlu0 %v5360
      %v5362 = vpop.xlane.xlu0 %5361
      %v5363 = vsel %vm614, %v5321, 0.0
      %5364 = vadd.xlane.f32.xlu0 %v5363
      %v5365 = vpop.xlane.xlu0 %5364
      %v5366 = vsel %vm614, %v5322, 0.0
      %5367 = vadd.xlane.f32.xlu0 %v5366
      %v5368 = vpop.xlane.xlu0 %5367
      %v5369 = vsel %vm614, %v5323, 0.0
      %5370 = vadd.xlane.f32.xlu0 %v5369
      %v5371 = vpop.xlane.xlu0 %5370
      %v5372 = vsel %vm614, %v5324, 0.0
      %5373 = vadd.xlane.f32.xlu0 %v5372
      %v5374 = vpop.xlane.xlu0 %5373
      %v5375 = vmul.f32 %v5329, %v4547
      %v5376 = vmul.f32 %v5332, %v4547
      %v5377 = vmul.f32 %v5335, %v4547
      %v5378 = vmul.f32 %v5338, %v4547
      %v5379 = vmul.f32 %v5341, %v4547
      %v5380 = vmul.f32 %v5344, %v4547
      %v5381 = vmul.f32 %v5347, %v4547
      %v5382 = vmul.f32 %v5350, %v4547
      %v5383 = vmul.f32 %v5353, %v4547
      %v5384 = vmul.f32 %v5356, %v4547
      %v5385 = vmul.f32 %v5359, %v4547
      %v5386 = vmul.f32 %v5362, %v4547
      %v5387 = vmul.f32 %v5365, %v4547
      %v5388 = vmul.f32 %v5368, %v4547
      %v5389 = vmul.f32 %v5371, %v4547
      %v5390 = vmul.f32 %v5374, %v4547
      %v5391 = vsub.f32 %v5309, %v5375
      %v5392 = vsub.f32 %v5310, %v5376
      %v5393 = vsub.f32 %v5311, %v5377
      %v5394 = vsub.f32 %v5312, %v5378
      %v5395 = vsub.f32 %v5313, %v5379
      %v5396 = vsub.f32 %v5314, %v5380
      %v5397 = vsub.f32 %v5315, %v5381
      %v5398 = vsub.f32 %v5316, %v5382
      %v5399 = vsub.f32 %v5317, %v5383
      %v5400 = vsub.f32 %v5318, %v5384
      %v5401 = vsub.f32 %v5319, %v5385
      %v5402 = vsub.f32 %v5320, %v5386
      %v5403 = vsub.f32 %v5321, %v5387
      %v5404 = vsub.f32 %v5322, %v5388
      %v5405 = vsub.f32 %v5323, %v5389
      %v5406 = vsub.f32 %v5324, %v5390
      %v5407 = vmul.f32 %v5391, %v5391
      %v5408 = vmul.f32 %v5392, %v5392
      %v5409 = vmul.f32 %v5393, %v5393
      %v5410 = vmul.f32 %v5394, %v5394
      %v5411 = vmul.f32 %v5395, %v5395
      %v5412 = vmul.f32 %v5396, %v5396
      %v5413 = vmul.f32 %v5397, %v5397
      %v5414 = vmul.f32 %v5398, %v5398
      %v5415 = vmul.f32 %v5399, %v5399
      %v5416 = vmul.f32 %v5400, %v5400
      %v5417 = vmul.f32 %v5401, %v5401
      %v5418 = vmul.f32 %v5402, %v5402
      %v5419 = vmul.f32 %v5403, %v5403
      %v5420 = vmul.f32 %v5404, %v5404
      %v5421 = vmul.f32 %v5405, %v5405
      %v5422 = vmul.f32 %v5406, %v5406
      %v5423 = vsel %vm614, %v5407, 0.0
      %5424 = vadd.xlane.f32.xlu0 %v5423
      %v5425 = vpop.xlane.xlu0 %5424
      %v5426 = vsel %vm614, %v5408, 0.0
      %5427 = vadd.xlane.f32.xlu0 %v5426
      %v5428 = vpop.xlane.xlu0 %5427
      %v5429 = vsel %vm614, %v5409, 0.0
      %5430 = vadd.xlane.f32.xlu0 %v5429
      %v5431 = vpop.xlane.xlu0 %5430
      %v5432 = vsel %vm614, %v5410, 0.0
      %5433 = vadd.xlane.f32.xlu0 %v5432
      %v5434 = vpop.xlane.xlu0 %5433
      %v5435 = vsel %vm614, %v5411, 0.0
      %5436 = vadd.xlane.f32.xlu0 %v5435
      %v5437 = vpop.xlane.xlu0 %5436
      %v5438 = vsel %vm614, %v5412, 0.0
      %5439 = vadd.xlane.f32.xlu0 %v5438
      %v5440 = vpop.xlane.xlu0 %5439
      %v5441 = vsel %vm614, %v5413, 0.0
      %5442 = vadd.xlane.f32.xlu0 %v5441
      %v5443 = vpop.xlane.xlu0 %5442
      %v5444 = vsel %vm614, %v5414, 0.0
      %5445 = vadd.xlane.f32.xlu0 %v5444
      %v5446 = vpop.xlane.xlu0 %5445
      %v5447 = vsel %vm614, %v5415, 0.0
      %5448 = vadd.xlane.f32.xlu0 %v5447
      %v5449 = vpop.xlane.xlu0 %5448
      %v5450 = vsel %vm614, %v5416, 0.0
      %5451 = vadd.xlane.f32.xlu0 %v5450
      %v5452 = vpop.xlane.xlu0 %5451
      %v5453 = vsel %vm614, %v5417, 0.0
      %5454 = vadd.xlane.f32.xlu0 %v5453
      %v5455 = vpop.xlane.xlu0 %5454
      %v5456 = vsel %vm614, %v5418, 0.0
      %5457 = vadd.xlane.f32.xlu0 %v5456
      %v5458 = vpop.xlane.xlu0 %5457
      %v5459 = vsel %vm614, %v5419, 0.0
      %5460 = vadd.xlane.f32.xlu0 %v5459
      %v5461 = vpop.xlane.xlu0 %5460
      %v5462 = vsel %vm614, %v5420, 0.0
      %5463 = vadd.xlane.f32.xlu0 %v5462
      %v5464 = vpop.xlane.xlu0 %5463
      %v5465 = vsel %vm614, %v5421, 0.0
      %5466 = vadd.xlane.f32.xlu0 %v5465
      %v5467 = vpop.xlane.xlu0 %5466
      %v5468 = vsel %vm614, %v5422, 0.0
      %5469 = vadd.xlane.f32.xlu0 %v5468
      %v5470 = vpop.xlane.xlu0 %5469
      %v5471 = vmul.f32 %v5425, %v4547
      %v5472 = vmul.f32 %v5428, %v4547
      %v5473 = vmul.f32 %v5431, %v4547
      %v5474 = vmul.f32 %v5434, %v4547
      %v5475 = vmul.f32 %v5437, %v4547
      %v5476 = vmul.f32 %v5440, %v4547
      %v5477 = vmul.f32 %v5443, %v4547
      %v5478 = vmul.f32 %v5446, %v4547
      %v5479 = vmul.f32 %v5449, %v4547
      %v5480 = vmul.f32 %v5452, %v4547
      %v5481 = vmul.f32 %v5455, %v4547
      %v5482 = vmul.f32 %v5458, %v4547
      %v5483 = vmul.f32 %v5461, %v4547
      %v5484 = vmul.f32 %v5464, %v4547
      %v5485 = vmul.f32 %v5467, %v4547
      %v5486 = vmul.f32 %v5470, %v4547
      %v5487 = vadd.f32 %v5471, 1e-05
      %v5488 = vadd.f32 %v5472, 1e-05
      %v5489 = vadd.f32 %v5473, 1e-05
      %v5490 = vadd.f32 %v5474, 1e-05
      %v5491 = vadd.f32 %v5475, 1e-05
      %v5492 = vadd.f32 %v5476, 1e-05
      %v5493 = vadd.f32 %v5477, 1e-05
      %v5494 = vadd.f32 %v5478, 1e-05
      %v5495 = vadd.f32 %v5479, 1e-05
      %v5496 = vadd.f32 %v5480, 1e-05
      %v5497 = vadd.f32 %v5481, 1e-05
      %v5498 = vadd.f32 %v5482, 1e-05
      %v5499 = vadd.f32 %v5483, 1e-05
      %v5500 = vadd.f32 %v5484, 1e-05
      %v5501 = vadd.f32 %v5485, 1e-05
      %v5502 = vadd.f32 %v5486, 1e-05
      %v5503 = vrsqrt.pop %v5487
      %v5504 = vrsqrt.pop %v5488
      %v5505 = vrsqrt.pop %v5489
      %v5506 = vrsqrt.pop %v5490
      %v5507 = vrsqrt.pop %v5491
      %v5508 = vrsqrt.pop %v5492
      %v5509 = vrsqrt.pop %v5493
      %v5510 = vrsqrt.pop %v5494
      %v5511 = vrsqrt.pop %v5495
      %v5512 = vrsqrt.pop %v5496
      %v5513 = vrsqrt.pop %v5497
      %v5514 = vrsqrt.pop %v5498
      %v5515 = vrsqrt.pop %v5499
      %v5516 = vrsqrt.pop %v5500
      %v5517 = vrsqrt.pop %v5501
      %v5518 = vrsqrt.pop %v5502
      %v5519 = vmul.f32 %v5391, %v5503
      %v5520 = vmul.f32 %v5392, %v5504
      %v5521 = vmul.f32 %v5393, %v5505
      %v5522 = vmul.f32 %v5394, %v5506
      %v5523 = vmul.f32 %v5395, %v5507
      %v5524 = vmul.f32 %v5396, %v5508
      %v5525 = vmul.f32 %v5397, %v5509
      %v5526 = vmul.f32 %v5398, %v5510
      %v5527 = vmul.f32 %v5399, %v5511
      %v5528 = vmul.f32 %v5400, %v5512
      %v5529 = vmul.f32 %v5401, %v5513
      %v5530 = vmul.f32 %v5402, %v5514
      %v5531 = vmul.f32 %v5403, %v5515
      %v5532 = vmul.f32 %v5404, %v5516
      %v5533 = vmul.f32 %v5405, %v5517
      %v5534 = vmul.f32 %v5406, %v5518
      %v5536 = vlaneseq
      %v5537 = vshrl.u32 %v5536, 7
      %v5538 = vsub.s32 0, %v5537
      %v5539 = vrot.slane %v5325, %v5538
      %v5541 = vmul.f32 %v5519, %v5539
      %v5542 = vmul.f32 %v5520, %v5539
      %v5543 = vmul.f32 %v5521, %v5539
      %v5544 = vmul.f32 %v5522, %v5539
      %v5545 = vmul.f32 %v5523, %v5539
      %v5546 = vmul.f32 %v5524, %v5539
      %v5547 = vmul.f32 %v5525, %v5539
      %v5548 = vmul.f32 %v5526, %v5539
      %v5549 = vmul.f32 %v5527, %v5539
      %v5550 = vmul.f32 %v5528, %v5539
      %v5551 = vmul.f32 %v5529, %v5539
      %v5552 = vmul.f32 %v5530, %v5539
      %v5553 = vmul.f32 %v5531, %v5539
      %v5554 = vmul.f32 %v5532, %v5539
      %v5555 = vmul.f32 %v5533, %v5539
      %v5556 = vmul.f32 %v5534, %v5539
      %v5558 = vlaneseq
      %v5559 = vshrl.u32 %v5558, 7
      %v5560 = vsub.s32 0, %v5559
      %v5561 = vrot.slane %v5326, %v5560
      %v5563 = vadd.f32 %v5541, %v5561
      %v5564 = vadd.f32 %v5542, %v5561
      %v5565 = vadd.f32 %v5543, %v5561
      %v5566 = vadd.f32 %v5544, %v5561
      %v5567 = vadd.f32 %v5545, %v5561
      %v5568 = vadd.f32 %v5546, %v5561
      %v5569 = vadd.f32 %v5547, %v5561
      %v5570 = vadd.f32 %v5548, %v5561
      %v5571 = vadd.f32 %v5549, %v5561
      %v5572 = vadd.f32 %v5550, %v5561
      %v5573 = vadd.f32 %v5551, %v5561
      %v5574 = vadd.f32 %v5552, %v5561
      %v5575 = vadd.f32 %v5553, %v5561
      %v5576 = vadd.f32 %v5554, %v5561
      %v5577 = vadd.f32 %v5555, %v5561
      %v5578 = vadd.f32 %v5556, %v5561
      %5579 = vst.msk [vmem:[%s553] sm:$0xff] %vm614, %v5563
      %5580 = vst.msk [vmem:[%s553 + $0x8] sm:$0xff] %vm614, %v5564
      %5581 = vst.msk [vmem:[%s553 + $0x10] sm:$0xff] %vm614, %v5565
      %5582 = vst.msk [vmem:[%s553 + $0x18] sm:$0xff] %vm614, %v5566
      %5583 = vst.msk [vmem:[%s553 + $0x20] sm:$0xff] %vm614, %v5567
      %5584 = vst.msk [vmem:[%s553 + $0x28] sm:$0xff] %vm614, %v5568
      %5585 = vst.msk [vmem:[%s553 + $0x30] sm:$0xff] %vm614, %v5569
      %5586 = vst.msk [vmem:[%s553 + $0x38] sm:$0xff] %vm614, %v5570
      %5587 = vst.msk [vmem:[%s553 + $0x40] sm:$0xff] %vm614, %v5571
      %5588 = vst.msk [vmem:[%s553 + $0x48] sm:$0xff] %vm614, %v5572
      %5589 = vst.msk [vmem:[%s553 + $0x50] sm:$0xff] %vm614, %v5573
      %5590 = vst.msk [vmem:[%s553 + $0x58] sm:$0xff] %vm614, %v5574
      %5591 = vst.msk [vmem:[%s553 + $0x60] sm:$0xff] %vm614, %v5575
      %5592 = vst.msk [vmem:[%s553 + $0x68] sm:$0xff] %vm614, %v5576
      %5593 = vst.msk [vmem:[%s553 + $0x70] sm:$0xff] %vm614, %v5577
      %5594 = vst.msk [vmem:[%s553 + $0x78] sm:$0xff] %vm614, %v5578
      %s5595 = smul.u32 8, %s27
      %p5596 = scmp.lt.s32.totalorder %s5595, 31
      %s5597 = scalar_select %p5596, %s5595, 31
      %s5598 = smul.addr %s5597, 2
      %s5599 = smul.addr %s5598, 8
      %s5600 = scalar_lea.vmem %s16, %s5599
      // Predicated region
      $region85: #{basic_block_pallas.4} parent=83 // pred_check
        %p5601 = pneg %p391
      $region86: #{basic_block_pallas.4} parent=83 // pred_check_branch
        %5603 = sbr.rel (%p5601) target = $region88
      $region87: #{basic_block_pallas.4} parent=83 // pred_region
        %s5604 = smul.u32 8, %s27
      $region88: #{basic_block_pallas.4} parent=83 // pred_fallthru
        _
    $region84: #{basic_block_pallas.4} parent=5 // pred_fallthru
      _
    %p5605 = scmp.le.s32.totalorder 2, %s22
    // Predicated region
    $region89: #{basic_block_pallas.4} parent=5 // pred_check
      %p5606 = pneg %p5605
    $region90: #{basic_block_pallas.4} parent=5 // pred_check_branch
      %5608 = sbr.rel (%p5606) target = $region92
    $region91: #{basic_block_pallas.4} parent=5 // pred_region
      %s5609 = ssub.s32 %s22, 2
      // Predicated region
      $region93: #{basic_block_pallas.4} parent=91 // pred_check
        %p5610 = pneg %p397
      $region94: #{basic_block_pallas.4} parent=91 // pred_check_branch
        %5612 = sbr.rel (%p5610) target = $region96
      $region95: #{basic_block_pallas.4} parent=91 // pred_region
        %s5613 = smul.u32 8, %s28
        %p5614 = scmp.lt.s32.totalorder %s5613, 31
        %s5615 = scalar_select %p5614, %s5613, 31
        %s5616 = smul.addr %s5615, 2
        %s5617 = smul.addr %s5616, 8
        %s5618 = scalar_lea.vmem %s16, %s5617
      $region96: #{basic_block_pallas.4} parent=91 // pred_fallthru
        _
    $region92: #{basic_block_pallas.4} parent=5 // pred_fallthru
      _
  $region6: #{basic_block_pallas.4} parent=0 // loop_footer
    %s26 = sadd.s32 1, %s22
  $region7: #{basic_block_pallas.4} parent=0 // loop_footer_branch
    %21 = sbr.rel target = $region3
  $region8: #{basic_block_pallas.4} parent=0 // loop_exit
    _

</llo_original>
